<compile_context>
chip_gen: v7x
topology: tpu7x:2x2x1
jax: 0.10.0
libtpu: 0.0.40
codegen_flags: <defaults>
</compile_context>

<pallas_src>
import jax
import jax.numpy as jnp
from jax.experimental import pallas as pl
from jax.experimental.pallas import tpu as pltpu  # noqa: F401  (TPU backend)

# ---- small test-time hyperparameters (consistent with the module) ----
B = 2            # batch
T = 8            # sequence_length
D = 32           # dim_embedding
H = 4            # num_heads
HS = D // H      # head_size
L = 2            # num_stacks (small for the test)
VOCAB = 64       # vocab_size
VPAD = 128       # lm_head padded to a full lane tile for an unmasked store
BT = B * T
LN_EPS = 1e-5
NEG_INF = -1e30


def _layer_norm(x, g, b):
    mu = jnp.mean(x, axis=-1, keepdims=True)
    var = jnp.mean((x - mu) ** 2, axis=-1, keepdims=True)
    return (x - mu) * jax.lax.rsqrt(var + LN_EPS) * g + b


# ------------------------------------------------------------------
# Single fused kernel: embeddings -> L transformer blocks -> final LN
# -> lm_head.  Everything resident in VMEM; layers/heads statically
# unrolled (tiny, fixed trip counts).
# ------------------------------------------------------------------
def llm_kernel(idx_ref, tok_ref, pos_ref,
               ln1g_ref, ln1b_ref, wk_ref, wproj_ref, bproj_ref,
               ln2g_ref, ln2b_ref, w1_ref, b1_ref, w2_ref, b2_ref,
               lnfg_ref, lnfb_ref, wlm_ref, blm_ref,
               o_ref):
    # ---- token + position embeddings (gather as one-hot matmul in VMEM) ----
    idx = idx_ref[...]                                          # (BT, 1) int32
    vocab_iota = jax.lax.broadcasted_iota(jnp.int32, (BT, VOCAB), 1)
    onehot = (idx == vocab_iota).astype(jnp.float32)            # (BT, VOCAB)
    x = jnp.dot(onehot, tok_ref[...],
                preferred_element_type=jnp.float32) + pos_ref[...]   # (BT, D)

    # causal mask, shared across layers and heads
    row = jax.lax.broadcasted_iota(jnp.int32, (B, T, T), 1)
    col = jax.lax.broadcasted_iota(jnp.int32, (B, T, T), 2)
    causal = row >= col
    qk_scale = float(D) ** -0.25    # applied to both q and k -> D**-0.5 on scores

    for l in range(L):              # statically unrolled over layers
        # ---- self-attention branch ----
        # NOTE: reference uses the *key* projection for k, q AND v (faithful).
        xn = _layer_norm(x, ln1g_ref[l], ln1b_ref[l])
        kqv = jnp.dot(xn, wk_ref[l], preferred_element_type=jnp.float32)  # (BT, D)
        kqv3 = kqv.reshape(B, T, D)
        qk3 = kqv3 * qk_scale
        wproj = wproj_ref[l]                                    # (D, D)
        att = jnp.zeros((BT, D), jnp.float32)
        for h in range(H):          # statically unrolled over heads, batched over B
            vh = kqv3[:, :, h * HS:(h + 1) * HS]                # (B, T, HS) = v
            qh = qk3[:, :, h * HS:(h + 1) * HS]                 # (B, T, HS), q == k
            s = jnp.einsum('bqd,bkd->bqk', qh, qh,
                           preferred_element_type=jnp.float32)  # (B, T, T)
            s = jnp.where(causal, s, NEG_INF)
            s = s - jnp.max(s, axis=-1, keepdims=True)
            e = jnp.exp(s)
            p = e * pl.reciprocal(jnp.sum(e, axis=-1, keepdims=True), approx=True)
            # TODO(synk): attention-weight dropout skipped (eval-mode identity).
            oh = jnp.einsum('bqk,bkd->bqd', p, vh,
                            preferred_element_type=jnp.float32)  # (B, T, HS)
            # fold the head-concat into the output projection
            att = att + jnp.dot(oh.reshape(BT, HS),
                                wproj[h * HS:(h + 1) * HS, :],
                                preferred_element_type=jnp.float32)
        x = x + att + bproj_ref[l]                               # residual 1

        # ---- feed-forward branch ----
        xn2 = _layer_norm(x, ln2g_ref[l], ln2b_ref[l])
        h1 = jnp.maximum(
            jnp.dot(xn2, w1_ref[l], preferred_element_type=jnp.float32) + b1_ref[l],
            0.0)
        x = x + jnp.dot(h1, w2_ref[l],
                        preferred_element_type=jnp.float32) + b2_ref[l]  # residual 2
        # TODO(synk): residual-path dropouts skipped (eval-mode identity).

    # ---- final LayerNorm + lm_head (lane-dense padded store) ----
    xn = _layer_norm(x, lnfg_ref[...], lnfb_ref[...])
    o_ref[...] = jnp.dot(xn, wlm_ref[...],
                         preferred_element_type=jnp.float32) + blm_ref[...]


# ------------------------------------------------------------------
# Wrapper: one pallas_call, whole arrays in VMEM (no grid).
# ------------------------------------------------------------------
@jax.jit
def llm_forward(idx, params):
    idx2 = idx.reshape(BT, 1).astype(jnp.int32)
    out = pl.pallas_call(
        llm_kernel,
        out_shape=jax.ShapeDtypeStruct((BT, VPAD), jnp.float32),
    )(idx2,
      params["tok_emb"], params["pos_tiled"],
      params["ln1_g"], params["ln1_b"], params["w_key"],
      params["w_proj"], params["b_proj"],
      params["ln2_g"], params["ln2_b"],
      params["w1"], params["b1"], params["w2"], params["b2"],
      params["lnf_g"], params["lnf_b"], params["w_lm"], params["b_lm"])
    logits = out[:, :VOCAB].reshape(B, T, VOCAB)
    return logits                                    # loss is None (no targets)


# ------------------------------------------------------------------
# Parameter construction (deterministic, synthetic). Per-layer params are
# stacked on a leading layer axis; pos embedding is pre-tiled over batch.
# ------------------------------------------------------------------
def init_params(key):
    keys = iter(jax.random.split(key, 16))

    def nrm(shape, scale=0.02):
        return (scale * jax.random.normal(next(keys), shape)).astype(jnp.float32)

    pos_emb = nrm((T, D))
    w_lm = nrm((D, VOCAB))
    w_lm_pad = jnp.zeros((D, VPAD), jnp.float32).at[:, :VOCAB].set(w_lm)
    b_lm_pad = jnp.zeros((1, VPAD), jnp.float32)

    params = {
        "tok_emb": nrm((VOCAB, D)),
        "pos_tiled": jnp.tile(pos_emb, (B, 1)),          # (BT, D), precomputed once
        "lnf_g": jnp.ones((1, D), jnp.float32),
        "lnf_b": jnp.zeros((1, D), jnp.float32),
        "w_lm": w_lm_pad,                                # (D, VPAD)
        "b_lm": b_lm_pad,                                # (1, VPAD)
        # per-layer params stacked on a leading layer axis
        "ln1_g": jnp.ones((L, 1, D), jnp.float32),
        "ln1_b": jnp.zeros((L, 1, D), jnp.float32),
        "w_key": nrm((L, D, D)),     # per-head key projections concatenated on out dim
        "w_proj": nrm((L, D, D)),
        "b_proj": jnp.zeros((L, 1, D), jnp.float32),
        "ln2_g": jnp.ones((L, 1, D), jnp.float32),
        "ln2_b": jnp.zeros((L, 1, D), jnp.float32),
        "w1": nrm((L, D, 4 * D)),
        "b1": jnp.zeros((L, 1, 4 * D), jnp.float32),
        "w2": nrm((L, 4 * D, D)),
        "b2": jnp.zeros((L, 1, D), jnp.float32),
    }
    return params


if __name__ == "__main__":
    key = jax.random.PRNGKey(0)
    pkey, ikey = jax.random.split(key)
    params = init_params(pkey)
    idx = jax.random.randint(ikey, (B, T), 0, VOCAB, dtype=jnp.int32)

    logits = llm_forward(idx, params)
    jax.block_until_ready(logits)
    assert logits.shape == (B, T, VOCAB)
    assert bool(jnp.all(jnp.isfinite(logits)))
    print("KERNEL_OK")
</pallas_src>

<mosaic_0001>
module attributes {stable_mosaic.version = 11 : i64} {
  func.func @llm_kernel(%arg0: memref<16x1xi32, #tpu.memory_space<vmem>>, %arg1: memref<64x32xf32, #tpu.memory_space<vmem>>, %arg2: memref<16x32xf32, #tpu.memory_space<vmem>>, %arg3: memref<2x1x32xf32, #tpu.memory_space<vmem>>, %arg4: memref<2x1x32xf32, #tpu.memory_space<vmem>>, %arg5: memref<2x32x32xf32, #tpu.memory_space<vmem>>, %arg6: memref<2x32x32xf32, #tpu.memory_space<vmem>>, %arg7: memref<2x1x32xf32, #tpu.memory_space<vmem>>, %arg8: memref<2x1x32xf32, #tpu.memory_space<vmem>>, %arg9: memref<2x1x32xf32, #tpu.memory_space<vmem>>, %arg10: memref<2x32x128xf32, #tpu.memory_space<vmem>>, %arg11: memref<2x1x128xf32, #tpu.memory_space<vmem>>, %arg12: memref<2x128x32xf32, #tpu.memory_space<vmem>>, %arg13: memref<2x1x32xf32, #tpu.memory_space<vmem>>, %arg14: memref<1x32xf32, #tpu.memory_space<vmem>>, %arg15: memref<1x32xf32, #tpu.memory_space<vmem>>, %arg16: memref<32x128xf32, #tpu.memory_space<vmem>>, %arg17: memref<1x128xf32, #tpu.memory_space<vmem>>, %arg18: memref<16x128xf32, #tpu.memory_space<vmem>>) attributes {dimension_semantics = [], scalar_prefetch = 0 : i64, scratch_operands = 0 : i64, tpu.core_type = #tpu.core_type<tc>} {
    %c0 = arith.constant 0 : index
    %c0_0 = arith.constant 0 : index
    %0 = vector.load %arg0[%c0, %c0_0] : memref<16x1xi32, #tpu.memory_space<vmem>>, vector<16x1xi32>
    %1 = tpu.iota {dimensions = array<i32: 1>} : vector<16x64xi32>
    %2 = vector.broadcast %0 : vector<16x1xi32> to vector<16x64xi32>
    %3 = arith.cmpi eq, %2, %1 : vector<16x64xi32>
    %4 = arith.extui %3 : vector<16x64xi1> to vector<16x64xi32>
    %5 = arith.sitofp %4 : vector<16x64xi32> to vector<16x64xf32>
    %c0_1 = arith.constant 0 : index
    %c0_2 = arith.constant 0 : index
    %6 = vector.load %arg1[%c0_1, %c0_2] : memref<64x32xf32, #tpu.memory_space<vmem>>, vector<64x32xf32>
    %cst = arith.constant dense<0.000000e+00> : vector<16x32xf32>
    %7 = tpu.matmul %5, %6, %cst {dimension_numbers = #tpu.dot_dimension_numbers<[1], [0], [0], [1], [0, 0, 1, 1], [], []>} : vector<16x64xf32>, vector<64x32xf32>, vector<16x32xf32> -> vector<16x32xf32>
    %c0_3 = arith.constant 0 : index
    %c0_4 = arith.constant 0 : index
    %8 = vector.load %arg2[%c0_3, %c0_4] : memref<16x32xf32, #tpu.memory_space<vmem>>, vector<16x32xf32>
    %9 = arith.addf %7, %8 : vector<16x32xf32>
    %10 = tpu.iota {dimensions = array<i32: 1>} : vector<2x8x8xi32>
    %11 = tpu.iota {dimensions = array<i32: 2>} : vector<2x8x8xi32>
    %12 = arith.cmpi sge, %10, %11 : vector<2x8x8xi32>
    %c0_5 = arith.constant 0 : index
    %c0_6 = arith.constant 0 : index
    %c0_7 = arith.constant 0 : index
    %13 = vector.load %arg3[%c0_5, %c0_6, %c0_7] : memref<2x1x32xf32, #tpu.memory_space<vmem>>, vector<1x1x32xf32>
    %14 = vector.shape_cast %13 : vector<1x1x32xf32> to vector<1x32xf32>
    %c0_8 = arith.constant 0 : index
    %c0_9 = arith.constant 0 : index
    %c0_10 = arith.constant 0 : index
    %15 = vector.load %arg4[%c0_8, %c0_9, %c0_10] : memref<2x1x32xf32, #tpu.memory_space<vmem>>, vector<1x1x32xf32>
    %16 = vector.shape_cast %15 : vector<1x1x32xf32> to vector<1x32xf32>
    %cst_11 = arith.constant dense<0.000000e+00> : vector<16xf32>
    %17 = vector.multi_reduction <add>, %9, %cst_11 [1] : vector<16x32xf32> to vector<16xf32>
    %18 = vector.shape_cast %17 : vector<16xf32> to vector<16x1xf32>
    %cst_12 = arith.constant 3.200000e+01 : f32
    %19 = vector.broadcast %cst_12 : f32 to vector<16x1xf32>
    %20 = arith.divf %18, %19 : vector<16x1xf32>
    %21 = vector.broadcast %20 : vector<16x1xf32> to vector<16x32xf32>
    %22 = arith.subf %9, %21 : vector<16x32xf32>
    %23 = arith.mulf %22, %22 : vector<16x32xf32>
    %cst_13 = arith.constant dense<0.000000e+00> : vector<16xf32>
    %24 = vector.multi_reduction <add>, %23, %cst_13 [1] : vector<16x32xf32> to vector<16xf32>
    %25 = vector.shape_cast %24 : vector<16xf32> to vector<16x1xf32>
    %cst_14 = arith.constant 3.200000e+01 : f32
    %26 = vector.broadcast %cst_14 : f32 to vector<16x1xf32>
    %27 = arith.divf %25, %26 : vector<16x1xf32>
    %28 = vector.broadcast %20 : vector<16x1xf32> to vector<16x32xf32>
    %29 = arith.subf %9, %28 : vector<16x32xf32>
    %cst_15 = arith.constant 9.99999974E-6 : f32
    %30 = vector.broadcast %cst_15 : f32 to vector<16x1xf32>
    %31 = arith.addf %27, %30 : vector<16x1xf32>
    %32 = math.rsqrt %31 : vector<16x1xf32>
    %33 = vector.broadcast %32 : vector<16x1xf32> to vector<16x32xf32>
    %34 = arith.mulf %29, %33 : vector<16x32xf32>
    %35 = vector.broadcast %14 : vector<1x32xf32> to vector<16x32xf32>
    %36 = arith.mulf %34, %35 : vector<16x32xf32>
    %37 = vector.broadcast %16 : vector<1x32xf32> to vector<16x32xf32>
    %38 = arith.addf %36, %37 : vector<16x32xf32>
    %c0_16 = arith.constant 0 : index
    %c0_17 = arith.constant 0 : index
    %c0_18 = arith.constant 0 : index
    %39 = vector.load %arg5[%c0_16, %c0_17, %c0_18] : memref<2x32x32xf32, #tpu.memory_space<vmem>>, vector<1x32x32xf32>
    %40 = vector.shape_cast %39 : vector<1x32x32xf32> to vector<32x32xf32>
    %cst_19 = arith.constant dense<0.000000e+00> : vector<16x32xf32>
    %41 = tpu.matmul %38, %40, %cst_19 {dimension_numbers = #tpu.dot_dimension_numbers<[1], [0], [0], [1], [0, 0, 1, 1], [], []>} : vector<16x32xf32>, vector<32x32xf32>, vector<16x32xf32> -> vector<16x32xf32>
    %42 = vector.shape_cast %41 : vector<16x32xf32> to vector<2x8x32xf32>
    %cst_20 = arith.constant 0.420448214 : f32
    %43 = vector.broadcast %cst_20 : f32 to vector<2x8x32xf32>
    %44 = arith.mulf %42, %43 : vector<2x8x32xf32>
    %c0_21 = arith.constant 0 : index
    %c0_22 = arith.constant 0 : index
    %c0_23 = arith.constant 0 : index
    %45 = vector.load %arg6[%c0_21, %c0_22, %c0_23] : memref<2x32x32xf32, #tpu.memory_space<vmem>>, vector<1x32x32xf32>
    %46 = vector.shape_cast %45 : vector<1x32x32xf32> to vector<32x32xf32>
    %cst_24 = arith.constant 0.000000e+00 : f32
    %47 = vector.broadcast %cst_24 : f32 to vector<16x32xf32>
    %48 = vector.extract_strided_slice %42 {offsets = [0, 0, 0], sizes = [2, 8, 8], strides = [1, 1, 1]} : vector<2x8x32xf32> to vector<2x8x8xf32>
    %49 = vector.extract_strided_slice %44 {offsets = [0, 0, 0], sizes = [2, 8, 8], strides = [1, 1, 1]} : vector<2x8x32xf32> to vector<2x8x8xf32>
    "tpu.trace_start"() <{level = 10 : i32, message = "bqd,bkd->bqk"}> : () -> ()
    %cst_25 = arith.constant dense<0.000000e+00> : vector<2x8x8xf32>
    %50 = tpu.matmul %49, %49, %cst_25 {dimension_numbers = #tpu.dot_dimension_numbers<[2], [2], [1], [1], [0, 0, 0, 1, 1, 1], [0], [0]>} : vector<2x8x8xf32>, vector<2x8x8xf32>, vector<2x8x8xf32> -> vector<2x8x8xf32>
    %cst_26 = arith.constant -1.000000e+30 : f32
    "tpu.trace_stop"() : () -> ()
    %51 = vector.broadcast %cst_26 : f32 to vector<2x8x8xf32>
    %52 = arith.select %12, %50, %51 : vector<2x8x8xi1>, vector<2x8x8xf32>
    %cst_27 = arith.constant dense<0xFF800000> : vector<2x8xf32>
    %53 = vector.multi_reduction <maximumf>, %52, %cst_27 [2] : vector<2x8x8xf32> to vector<2x8xf32>
    %54 = vector.shape_cast %53 : vector<2x8xf32> to vector<2x8x1xf32>
    %55 = vector.broadcast %54 : vector<2x8x1xf32> to vector<2x8x8xf32>
    %56 = arith.subf %52, %55 : vector<2x8x8xf32>
    %57 = math.exp %56 : vector<2x8x8xf32>
    %cst_28 = arith.constant dense<0.000000e+00> : vector<2x8xf32>
    %58 = vector.multi_reduction <add>, %57, %cst_28 [2] : vector<2x8x8xf32> to vector<2x8xf32>
    %59 = vector.shape_cast %58 : vector<2x8xf32> to vector<2x8x1xf32>
    %60 = tpu.reciprocal %59 {approx = true} : vector<2x8x1xf32> -> vector<2x8x1xf32>
    %61 = vector.broadcast %60 : vector<2x8x1xf32> to vector<2x8x8xf32>
    %62 = arith.mulf %57, %61 : vector<2x8x8xf32>
    "tpu.trace_start"() <{level = 10 : i32, message = "bqk,bkd->bqd"}> : () -> ()
    %cst_29 = arith.constant dense<0.000000e+00> : vector<2x8x8xf32>
    %63 = tpu.matmul %62, %48, %cst_29 {dimension_numbers = #tpu.dot_dimension_numbers<[2], [1], [1], [2], [0, 0, 0, 1, 1, 2], [0], [0]>} : vector<2x8x8xf32>, vector<2x8x8xf32>, vector<2x8x8xf32> -> vector<2x8x8xf32>
    "tpu.trace_stop"() : () -> ()
    %64 = vector.shape_cast %63 : vector<2x8x8xf32> to vector<16x8xf32>
    %65 = vector.extract_strided_slice %46 {offsets = [0, 0], sizes = [8, 32], strides = [1, 1]} : vector<32x32xf32> to vector<8x32xf32>
    %cst_30 = arith.constant dense<0.000000e+00> : vector<16x32xf32>
    %66 = tpu.matmul %64, %65, %cst_30 {dimension_numbers = #tpu.dot_dimension_numbers<[1], [0], [0], [1], [0, 0, 1, 1], [], []>} : vector<16x8xf32>, vector<8x32xf32>, vector<16x32xf32> -> vector<16x32xf32>
    %67 = arith.addf %47, %66 : vector<16x32xf32>
    %68 = vector.extract_strided_slice %42 {offsets = [0, 0, 8], sizes = [2, 8, 8], strides = [1, 1, 1]} : vector<2x8x32xf32> to vector<2x8x8xf32>
    %69 = vector.extract_strided_slice %44 {offsets = [0, 0, 8], sizes = [2, 8, 8], strides = [1, 1, 1]} : vector<2x8x32xf32> to vector<2x8x8xf32>
    "tpu.trace_start"() <{level = 10 : i32, message = "bqd,bkd->bqk"}> : () -> ()
    %cst_31 = arith.constant dense<0.000000e+00> : vector<2x8x8xf32>
    %70 = tpu.matmul %69, %69, %cst_31 {dimension_numbers = #tpu.dot_dimension_numbers<[2], [2], [1], [1], [0, 0, 0, 1, 1, 1], [0], [0]>} : vector<2x8x8xf32>, vector<2x8x8xf32>, vector<2x8x8xf32> -> vector<2x8x8xf32>
    %cst_32 = arith.constant -1.000000e+30 : f32
    "tpu.trace_stop"() : () -> ()
    %71 = vector.broadcast %cst_32 : f32 to vector<2x8x8xf32>
    %72 = arith.select %12, %70, %71 : vector<2x8x8xi1>, vector<2x8x8xf32>
    %cst_33 = arith.constant dense<0xFF800000> : vector<2x8xf32>
    %73 = vector.multi_reduction <maximumf>, %72, %cst_33 [2] : vector<2x8x8xf32> to vector<2x8xf32>
    %74 = vector.shape_cast %73 : vector<2x8xf32> to vector<2x8x1xf32>
    %75 = vector.broadcast %74 : vector<2x8x1xf32> to vector<2x8x8xf32>
    %76 = arith.subf %72, %75 : vector<2x8x8xf32>
    %77 = math.exp %76 : vector<2x8x8xf32>
    %cst_34 = arith.constant dense<0.000000e+00> : vector<2x8xf32>
    %78 = vector.multi_reduction <add>, %77, %cst_34 [2] : vector<2x8x8xf32> to vector<2x8xf32>
    %79 = vector.shape_cast %78 : vector<2x8xf32> to vector<2x8x1xf32>
    %80 = tpu.reciprocal %79 {approx = true} : vector<2x8x1xf32> -> vector<2x8x1xf32>
    %81 = vector.broadcast %80 : vector<2x8x1xf32> to vector<2x8x8xf32>
    %82 = arith.mulf %77, %81 : vector<2x8x8xf32>
    "tpu.trace_start"() <{level = 10 : i32, message = "bqk,bkd->bqd"}> : () -> ()
    %cst_35 = arith.constant dense<0.000000e+00> : vector<2x8x8xf32>
    %83 = tpu.matmul %82, %68, %cst_35 {dimension_numbers = #tpu.dot_dimension_numbers<[2], [1], [1], [2], [0, 0, 0, 1, 1, 2], [0], [0]>} : vector<2x8x8xf32>, vector<2x8x8xf32>, vector<2x8x8xf32> -> vector<2x8x8xf32>
    "tpu.trace_stop"() : () -> ()
    %84 = vector.shape_cast %83 : vector<2x8x8xf32> to vector<16x8xf32>
    %85 = vector.extract_strided_slice %46 {offsets = [8, 0], sizes = [8, 32], strides = [1, 1]} : vector<32x32xf32> to vector<8x32xf32>
    %cst_36 = arith.constant dense<0.000000e+00> : vector<16x32xf32>
    %86 = tpu.matmul %84, %85, %cst_36 {dimension_numbers = #tpu.dot_dimension_numbers<[1], [0], [0], [1], [0, 0, 1, 1], [], []>} : vector<16x8xf32>, vector<8x32xf32>, vector<16x32xf32> -> vector<16x32xf32>
    %87 = arith.addf %67, %86 : vector<16x32xf32>
    %88 = vector.extract_strided_slice %42 {offsets = [0, 0, 16], sizes = [2, 8, 8], strides = [1, 1, 1]} : vector<2x8x32xf32> to vector<2x8x8xf32>
    %89 = vector.extract_strided_slice %44 {offsets = [0, 0, 16], sizes = [2, 8, 8], strides = [1, 1, 1]} : vector<2x8x32xf32> to vector<2x8x8xf32>
    "tpu.trace_start"() <{level = 10 : i32, message = "bqd,bkd->bqk"}> : () -> ()
    %cst_37 = arith.constant dense<0.000000e+00> : vector<2x8x8xf32>
    %90 = tpu.matmul %89, %89, %cst_37 {dimension_numbers = #tpu.dot_dimension_numbers<[2], [2], [1], [1], [0, 0, 0, 1, 1, 1], [0], [0]>} : vector<2x8x8xf32>, vector<2x8x8xf32>, vector<2x8x8xf32> -> vector<2x8x8xf32>
    %cst_38 = arith.constant -1.000000e+30 : f32
    "tpu.trace_stop"() : () -> ()
    %91 = vector.broadcast %cst_38 : f32 to vector<2x8x8xf32>
    %92 = arith.select %12, %90, %91 : vector<2x8x8xi1>, vector<2x8x8xf32>
    %cst_39 = arith.constant dense<0xFF800000> : vector<2x8xf32>
    %93 = vector.multi_reduction <maximumf>, %92, %cst_39 [2] : vector<2x8x8xf32> to vector<2x8xf32>
    %94 = vector.shape_cast %93 : vector<2x8xf32> to vector<2x8x1xf32>
    %95 = vector.broadcast %94 : vector<2x8x1xf32> to vector<2x8x8xf32>
    %96 = arith.subf %92, %95 : vector<2x8x8xf32>
    %97 = math.exp %96 : vector<2x8x8xf32>
    %cst_40 = arith.constant dense<0.000000e+00> : vector<2x8xf32>
    %98 = vector.multi_reduction <add>, %97, %cst_40 [2] : vector<2x8x8xf32> to vector<2x8xf32>
    %99 = vector.shape_cast %98 : vector<2x8xf32> to vector<2x8x1xf32>
    %100 = tpu.reciprocal %99 {approx = true} : vector<2x8x1xf32> -> vector<2x8x1xf32>
    %101 = vector.broadcast %100 : vector<2x8x1xf32> to vector<2x8x8xf32>
    %102 = arith.mulf %97, %101 : vector<2x8x8xf32>
    "tpu.trace_start"() <{level = 10 : i32, message = "bqk,bkd->bqd"}> : () -> ()
    %cst_41 = arith.constant dense<0.000000e+00> : vector<2x8x8xf32>
    %103 = tpu.matmul %102, %88, %cst_41 {dimension_numbers = #tpu.dot_dimension_numbers<[2], [1], [1], [2], [0, 0, 0, 1, 1, 2], [0], [0]>} : vector<2x8x8xf32>, vector<2x8x8xf32>, vector<2x8x8xf32> -> vector<2x8x8xf32>
    "tpu.trace_stop"() : () -> ()
    %104 = vector.shape_cast %103 : vector<2x8x8xf32> to vector<16x8xf32>
    %105 = vector.extract_strided_slice %46 {offsets = [16, 0], sizes = [8, 32], strides = [1, 1]} : vector<32x32xf32> to vector<8x32xf32>
    %cst_42 = arith.constant dense<0.000000e+00> : vector<16x32xf32>
    %106 = tpu.matmul %104, %105, %cst_42 {dimension_numbers = #tpu.dot_dimension_numbers<[1], [0], [0], [1], [0, 0, 1, 1], [], []>} : vector<16x8xf32>, vector<8x32xf32>, vector<16x32xf32> -> vector<16x32xf32>
    %107 = arith.addf %87, %106 : vector<16x32xf32>
    %108 = vector.extract_strided_slice %42 {offsets = [0, 0, 24], sizes = [2, 8, 8], strides = [1, 1, 1]} : vector<2x8x32xf32> to vector<2x8x8xf32>
    %109 = vector.extract_strided_slice %44 {offsets = [0, 0, 24], sizes = [2, 8, 8], strides = [1, 1, 1]} : vector<2x8x32xf32> to vector<2x8x8xf32>
    "tpu.trace_start"() <{level = 10 : i32, message = "bqd,bkd->bqk"}> : () -> ()
    %cst_43 = arith.constant dense<0.000000e+00> : vector<2x8x8xf32>
    %110 = tpu.matmul %109, %109, %cst_43 {dimension_numbers = #tpu.dot_dimension_numbers<[2], [2], [1], [1], [0, 0, 0, 1, 1, 1], [0], [0]>} : vector<2x8x8xf32>, vector<2x8x8xf32>, vector<2x8x8xf32> -> vector<2x8x8xf32>
    %cst_44 = arith.constant -1.000000e+30 : f32
    "tpu.trace_stop"() : () -> ()
    %111 = vector.broadcast %cst_44 : f32 to vector<2x8x8xf32>
    %112 = arith.select %12, %110, %111 : vector<2x8x8xi1>, vector<2x8x8xf32>
    %cst_45 = arith.constant dense<0xFF800000> : vector<2x8xf32>
    %113 = vector.multi_reduction <maximumf>, %112, %cst_45 [2] : vector<2x8x8xf32> to vector<2x8xf32>
    %114 = vector.shape_cast %113 : vector<2x8xf32> to vector<2x8x1xf32>
    %115 = vector.broadcast %114 : vector<2x8x1xf32> to vector<2x8x8xf32>
    %116 = arith.subf %112, %115 : vector<2x8x8xf32>
    %117 = math.exp %116 : vector<2x8x8xf32>
    %cst_46 = arith.constant dense<0.000000e+00> : vector<2x8xf32>
    %118 = vector.multi_reduction <add>, %117, %cst_46 [2] : vector<2x8x8xf32> to vector<2x8xf32>
    %119 = vector.shape_cast %118 : vector<2x8xf32> to vector<2x8x1xf32>
    %120 = tpu.reciprocal %119 {approx = true} : vector<2x8x1xf32> -> vector<2x8x1xf32>
    %121 = vector.broadcast %120 : vector<2x8x1xf32> to vector<2x8x8xf32>
    %122 = arith.mulf %117, %121 : vector<2x8x8xf32>
    "tpu.trace_start"() <{level = 10 : i32, message = "bqk,bkd->bqd"}> : () -> ()
    %cst_47 = arith.constant dense<0.000000e+00> : vector<2x8x8xf32>
    %123 = tpu.matmul %122, %108, %cst_47 {dimension_numbers = #tpu.dot_dimension_numbers<[2], [1], [1], [2], [0, 0, 0, 1, 1, 2], [0], [0]>} : vector<2x8x8xf32>, vector<2x8x8xf32>, vector<2x8x8xf32> -> vector<2x8x8xf32>
    "tpu.trace_stop"() : () -> ()
    %124 = vector.shape_cast %123 : vector<2x8x8xf32> to vector<16x8xf32>
    %125 = vector.extract_strided_slice %46 {offsets = [24, 0], sizes = [8, 32], strides = [1, 1]} : vector<32x32xf32> to vector<8x32xf32>
    %cst_48 = arith.constant dense<0.000000e+00> : vector<16x32xf32>
    %126 = tpu.matmul %124, %125, %cst_48 {dimension_numbers = #tpu.dot_dimension_numbers<[1], [0], [0], [1], [0, 0, 1, 1], [], []>} : vector<16x8xf32>, vector<8x32xf32>, vector<16x32xf32> -> vector<16x32xf32>
    %127 = arith.addf %107, %126 : vector<16x32xf32>
    %128 = arith.addf %9, %127 : vector<16x32xf32>
    %c0_49 = arith.constant 0 : index
    %c0_50 = arith.constant 0 : index
    %c0_51 = arith.constant 0 : index
    %129 = vector.load %arg7[%c0_49, %c0_50, %c0_51] : memref<2x1x32xf32, #tpu.memory_space<vmem>>, vector<1x1x32xf32>
    %130 = vector.shape_cast %129 : vector<1x1x32xf32> to vector<1x32xf32>
    %131 = vector.broadcast %130 : vector<1x32xf32> to vector<16x32xf32>
    %132 = arith.addf %128, %131 : vector<16x32xf32>
    %c0_52 = arith.constant 0 : index
    %c0_53 = arith.constant 0 : index
    %c0_54 = arith.constant 0 : index
    %133 = vector.load %arg8[%c0_52, %c0_53, %c0_54] : memref<2x1x32xf32, #tpu.memory_space<vmem>>, vector<1x1x32xf32>
    %134 = vector.shape_cast %133 : vector<1x1x32xf32> to vector<1x32xf32>
    %c0_55 = arith.constant 0 : index
    %c0_56 = arith.constant 0 : index
    %c0_57 = arith.constant 0 : index
    %135 = vector.load %arg9[%c0_55, %c0_56, %c0_57] : memref<2x1x32xf32, #tpu.memory_space<vmem>>, vector<1x1x32xf32>
    %136 = vector.shape_cast %135 : vector<1x1x32xf32> to vector<1x32xf32>
    %cst_58 = arith.constant dense<0.000000e+00> : vector<16xf32>
    %137 = vector.multi_reduction <add>, %132, %cst_58 [1] : vector<16x32xf32> to vector<16xf32>
    %138 = vector.shape_cast %137 : vector<16xf32> to vector<16x1xf32>
    %cst_59 = arith.constant 3.200000e+01 : f32
    %139 = vector.broadcast %cst_59 : f32 to vector<16x1xf32>
    %140 = arith.divf %138, %139 : vector<16x1xf32>
    %141 = vector.broadcast %140 : vector<16x1xf32> to vector<16x32xf32>
    %142 = arith.subf %132, %141 : vector<16x32xf32>
    %143 = arith.mulf %142, %142 : vector<16x32xf32>
    %cst_60 = arith.constant dense<0.000000e+00> : vector<16xf32>
    %144 = vector.multi_reduction <add>, %143, %cst_60 [1] : vector<16x32xf32> to vector<16xf32>
    %145 = vector.shape_cast %144 : vector<16xf32> to vector<16x1xf32>
    %cst_61 = arith.constant 3.200000e+01 : f32
    %146 = vector.broadcast %cst_61 : f32 to vector<16x1xf32>
    %147 = arith.divf %145, %146 : vector<16x1xf32>
    %148 = vector.broadcast %140 : vector<16x1xf32> to vector<16x32xf32>
    %149 = arith.subf %132, %148 : vector<16x32xf32>
    %cst_62 = arith.constant 9.99999974E-6 : f32
    %150 = vector.broadcast %cst_62 : f32 to vector<16x1xf32>
    %151 = arith.addf %147, %150 : vector<16x1xf32>
    %152 = math.rsqrt %151 : vector<16x1xf32>
    %153 = vector.broadcast %152 : vector<16x1xf32> to vector<16x32xf32>
    %154 = arith.mulf %149, %153 : vector<16x32xf32>
    %155 = vector.broadcast %134 : vector<1x32xf32> to vector<16x32xf32>
    %156 = arith.mulf %154, %155 : vector<16x32xf32>
    %157 = vector.broadcast %136 : vector<1x32xf32> to vector<16x32xf32>
    %158 = arith.addf %156, %157 : vector<16x32xf32>
    %c0_63 = arith.constant 0 : index
    %c0_64 = arith.constant 0 : index
    %c0_65 = arith.constant 0 : index
    %159 = vector.load %arg10[%c0_63, %c0_64, %c0_65] : memref<2x32x128xf32, #tpu.memory_space<vmem>>, vector<1x32x128xf32>
    %160 = vector.shape_cast %159 : vector<1x32x128xf32> to vector<32x128xf32>
    %cst_66 = arith.constant dense<0.000000e+00> : vector<16x128xf32>
    %161 = tpu.matmul %158, %160, %cst_66 {dimension_numbers = #tpu.dot_dimension_numbers<[1], [0], [0], [1], [0, 0, 1, 1], [], []>} : vector<16x32xf32>, vector<32x128xf32>, vector<16x128xf32> -> vector<16x128xf32>
    %c0_67 = arith.constant 0 : index
    %c0_68 = arith.constant 0 : index
    %c0_69 = arith.constant 0 : index
    %162 = vector.load %arg11[%c0_67, %c0_68, %c0_69] : memref<2x1x128xf32, #tpu.memory_space<vmem>>, vector<1x1x128xf32>
    %163 = vector.shape_cast %162 : vector<1x1x128xf32> to vector<1x128xf32>
    %164 = vector.broadcast %163 : vector<1x128xf32> to vector<16x128xf32>
    %165 = arith.addf %161, %164 : vector<16x128xf32>
    %cst_70 = arith.constant 0.000000e+00 : f32
    %166 = vector.broadcast %cst_70 : f32 to vector<16x128xf32>
    %167 = arith.maximumf %165, %166 : vector<16x128xf32>
    %c0_71 = arith.constant 0 : index
    %c0_72 = arith.constant 0 : index
    %c0_73 = arith.constant 0 : index
    %168 = vector.load %arg12[%c0_71, %c0_72, %c0_73] : memref<2x128x32xf32, #tpu.memory_space<vmem>>, vector<1x128x32xf32>
    %169 = vector.shape_cast %168 : vector<1x128x32xf32> to vector<128x32xf32>
    %cst_74 = arith.constant dense<0.000000e+00> : vector<16x32xf32>
    %170 = tpu.matmul %167, %169, %cst_74 {dimension_numbers = #tpu.dot_dimension_numbers<[1], [0], [0], [1], [0, 0, 1, 1], [], []>} : vector<16x128xf32>, vector<128x32xf32>, vector<16x32xf32> -> vector<16x32xf32>
    %171 = arith.addf %132, %170 : vector<16x32xf32>
    %c0_75 = arith.constant 0 : index
    %c0_76 = arith.constant 0 : index
    %c0_77 = arith.constant 0 : index
    %172 = vector.load %arg13[%c0_75, %c0_76, %c0_77] : memref<2x1x32xf32, #tpu.memory_space<vmem>>, vector<1x1x32xf32>
    %173 = vector.shape_cast %172 : vector<1x1x32xf32> to vector<1x32xf32>
    %174 = vector.broadcast %173 : vector<1x32xf32> to vector<16x32xf32>
    %175 = arith.addf %171, %174 : vector<16x32xf32>
    %c1 = arith.constant 1 : index
    %c0_78 = arith.constant 0 : index
    %c0_79 = arith.constant 0 : index
    %176 = vector.load %arg3[%c1, %c0_78, %c0_79] : memref<2x1x32xf32, #tpu.memory_space<vmem>>, vector<1x1x32xf32>
    %177 = vector.shape_cast %176 : vector<1x1x32xf32> to vector<1x32xf32>
    %c1_80 = arith.constant 1 : index
    %c0_81 = arith.constant 0 : index
    %c0_82 = arith.constant 0 : index
    %178 = vector.load %arg4[%c1_80, %c0_81, %c0_82] : memref<2x1x32xf32, #tpu.memory_space<vmem>>, vector<1x1x32xf32>
    %179 = vector.shape_cast %178 : vector<1x1x32xf32> to vector<1x32xf32>
    %cst_83 = arith.constant dense<0.000000e+00> : vector<16xf32>
    %180 = vector.multi_reduction <add>, %175, %cst_83 [1] : vector<16x32xf32> to vector<16xf32>
    %181 = vector.shape_cast %180 : vector<16xf32> to vector<16x1xf32>
    %cst_84 = arith.constant 3.200000e+01 : f32
    %182 = vector.broadcast %cst_84 : f32 to vector<16x1xf32>
    %183 = arith.divf %181, %182 : vector<16x1xf32>
    %184 = vector.broadcast %183 : vector<16x1xf32> to vector<16x32xf32>
    %185 = arith.subf %175, %184 : vector<16x32xf32>
    %186 = arith.mulf %185, %185 : vector<16x32xf32>
    %cst_85 = arith.constant dense<0.000000e+00> : vector<16xf32>
    %187 = vector.multi_reduction <add>, %186, %cst_85 [1] : vector<16x32xf32> to vector<16xf32>
    %188 = vector.shape_cast %187 : vector<16xf32> to vector<16x1xf32>
    %cst_86 = arith.constant 3.200000e+01 : f32
    %189 = vector.broadcast %cst_86 : f32 to vector<16x1xf32>
    %190 = arith.divf %188, %189 : vector<16x1xf32>
    %191 = vector.broadcast %183 : vector<16x1xf32> to vector<16x32xf32>
    %192 = arith.subf %175, %191 : vector<16x32xf32>
    %cst_87 = arith.constant 9.99999974E-6 : f32
    %193 = vector.broadcast %cst_87 : f32 to vector<16x1xf32>
    %194 = arith.addf %190, %193 : vector<16x1xf32>
    %195 = math.rsqrt %194 : vector<16x1xf32>
    %196 = vector.broadcast %195 : vector<16x1xf32> to vector<16x32xf32>
    %197 = arith.mulf %192, %196 : vector<16x32xf32>
    %198 = vector.broadcast %177 : vector<1x32xf32> to vector<16x32xf32>
    %199 = arith.mulf %197, %198 : vector<16x32xf32>
    %200 = vector.broadcast %179 : vector<1x32xf32> to vector<16x32xf32>
    %201 = arith.addf %199, %200 : vector<16x32xf32>
    %c1_88 = arith.constant 1 : index
    %c0_89 = arith.constant 0 : index
    %c0_90 = arith.constant 0 : index
    %202 = vector.load %arg5[%c1_88, %c0_89, %c0_90] : memref<2x32x32xf32, #tpu.memory_space<vmem>>, vector<1x32x32xf32>
    %203 = vector.shape_cast %202 : vector<1x32x32xf32> to vector<32x32xf32>
    %cst_91 = arith.constant dense<0.000000e+00> : vector<16x32xf32>
    %204 = tpu.matmul %201, %203, %cst_91 {dimension_numbers = #tpu.dot_dimension_numbers<[1], [0], [0], [1], [0, 0, 1, 1], [], []>} : vector<16x32xf32>, vector<32x32xf32>, vector<16x32xf32> -> vector<16x32xf32>
    %205 = vector.shape_cast %204 : vector<16x32xf32> to vector<2x8x32xf32>
    %cst_92 = arith.constant 0.420448214 : f32
    %206 = vector.broadcast %cst_92 : f32 to vector<2x8x32xf32>
    %207 = arith.mulf %205, %206 : vector<2x8x32xf32>
    %c1_93 = arith.constant 1 : index
    %c0_94 = arith.constant 0 : index
    %c0_95 = arith.constant 0 : index
    %208 = vector.load %arg6[%c1_93, %c0_94, %c0_95] : memref<2x32x32xf32, #tpu.memory_space<vmem>>, vector<1x32x32xf32>
    %209 = vector.shape_cast %208 : vector<1x32x32xf32> to vector<32x32xf32>
    %cst_96 = arith.constant 0.000000e+00 : f32
    %210 = vector.broadcast %cst_96 : f32 to vector<16x32xf32>
    %211 = vector.extract_strided_slice %205 {offsets = [0, 0, 0], sizes = [2, 8, 8], strides = [1, 1, 1]} : vector<2x8x32xf32> to vector<2x8x8xf32>
    %212 = vector.extract_strided_slice %207 {offsets = [0, 0, 0], sizes = [2, 8, 8], strides = [1, 1, 1]} : vector<2x8x32xf32> to vector<2x8x8xf32>
    "tpu.trace_start"() <{level = 10 : i32, message = "bqd,bkd->bqk"}> : () -> ()
    %cst_97 = arith.constant dense<0.000000e+00> : vector<2x8x8xf32>
    %213 = tpu.matmul %212, %212, %cst_97 {dimension_numbers = #tpu.dot_dimension_numbers<[2], [2], [1], [1], [0, 0, 0, 1, 1, 1], [0], [0]>} : vector<2x8x8xf32>, vector<2x8x8xf32>, vector<2x8x8xf32> -> vector<2x8x8xf32>
    %cst_98 = arith.constant -1.000000e+30 : f32
    "tpu.trace_stop"() : () -> ()
    %214 = vector.broadcast %cst_98 : f32 to vector<2x8x8xf32>
    %215 = arith.select %12, %213, %214 : vector<2x8x8xi1>, vector<2x8x8xf32>
    %cst_99 = arith.constant dense<0xFF800000> : vector<2x8xf32>
    %216 = vector.multi_reduction <maximumf>, %215, %cst_99 [2] : vector<2x8x8xf32> to vector<2x8xf32>
    %217 = vector.shape_cast %216 : vector<2x8xf32> to vector<2x8x1xf32>
    %218 = vector.broadcast %217 : vector<2x8x1xf32> to vector<2x8x8xf32>
    %219 = arith.subf %215, %218 : vector<2x8x8xf32>
    %220 = math.exp %219 : vector<2x8x8xf32>
    %cst_100 = arith.constant dense<0.000000e+00> : vector<2x8xf32>
    %221 = vector.multi_reduction <add>, %220, %cst_100 [2] : vector<2x8x8xf32> to vector<2x8xf32>
    %222 = vector.shape_cast %221 : vector<2x8xf32> to vector<2x8x1xf32>
    %223 = tpu.reciprocal %222 {approx = true} : vector<2x8x1xf32> -> vector<2x8x1xf32>
    %224 = vector.broadcast %223 : vector<2x8x1xf32> to vector<2x8x8xf32>
    %225 = arith.mulf %220, %224 : vector<2x8x8xf32>
    "tpu.trace_start"() <{level = 10 : i32, message = "bqk,bkd->bqd"}> : () -> ()
    %cst_101 = arith.constant dense<0.000000e+00> : vector<2x8x8xf32>
    %226 = tpu.matmul %225, %211, %cst_101 {dimension_numbers = #tpu.dot_dimension_numbers<[2], [1], [1], [2], [0, 0, 0, 1, 1, 2], [0], [0]>} : vector<2x8x8xf32>, vector<2x8x8xf32>, vector<2x8x8xf32> -> vector<2x8x8xf32>
    "tpu.trace_stop"() : () -> ()
    %227 = vector.shape_cast %226 : vector<2x8x8xf32> to vector<16x8xf32>
    %228 = vector.extract_strided_slice %209 {offsets = [0, 0], sizes = [8, 32], strides = [1, 1]} : vector<32x32xf32> to vector<8x32xf32>
    %cst_102 = arith.constant dense<0.000000e+00> : vector<16x32xf32>
    %229 = tpu.matmul %227, %228, %cst_102 {dimension_numbers = #tpu.dot_dimension_numbers<[1], [0], [0], [1], [0, 0, 1, 1], [], []>} : vector<16x8xf32>, vector<8x32xf32>, vector<16x32xf32> -> vector<16x32xf32>
    %230 = arith.addf %210, %229 : vector<16x32xf32>
    %231 = vector.extract_strided_slice %205 {offsets = [0, 0, 8], sizes = [2, 8, 8], strides = [1, 1, 1]} : vector<2x8x32xf32> to vector<2x8x8xf32>
    %232 = vector.extract_strided_slice %207 {offsets = [0, 0, 8], sizes = [2, 8, 8], strides = [1, 1, 1]} : vector<2x8x32xf32> to vector<2x8x8xf32>
    "tpu.trace_start"() <{level = 10 : i32, message = "bqd,bkd->bqk"}> : () -> ()
    %cst_103 = arith.constant dense<0.000000e+00> : vector<2x8x8xf32>
    %233 = tpu.matmul %232, %232, %cst_103 {dimension_numbers = #tpu.dot_dimension_numbers<[2], [2], [1], [1], [0, 0, 0, 1, 1, 1], [0], [0]>} : vector<2x8x8xf32>, vector<2x8x8xf32>, vector<2x8x8xf32> -> vector<2x8x8xf32>
    %cst_104 = arith.constant -1.000000e+30 : f32
    "tpu.trace_stop"() : () -> ()
    %234 = vector.broadcast %cst_104 : f32 to vector<2x8x8xf32>
    %235 = arith.select %12, %233, %234 : vector<2x8x8xi1>, vector<2x8x8xf32>
    %cst_105 = arith.constant dense<0xFF800000> : vector<2x8xf32>
    %236 = vector.multi_reduction <maximumf>, %235, %cst_105 [2] : vector<2x8x8xf32> to vector<2x8xf32>
    %237 = vector.shape_cast %236 : vector<2x8xf32> to vector<2x8x1xf32>
    %238 = vector.broadcast %237 : vector<2x8x1xf32> to vector<2x8x8xf32>
    %239 = arith.subf %235, %238 : vector<2x8x8xf32>
    %240 = math.exp %239 : vector<2x8x8xf32>
    %cst_106 = arith.constant dense<0.000000e+00> : vector<2x8xf32>
    %241 = vector.multi_reduction <add>, %240, %cst_106 [2] : vector<2x8x8xf32> to vector<2x8xf32>
    %242 = vector.shape_cast %241 : vector<2x8xf32> to vector<2x8x1xf32>
    %243 = tpu.reciprocal %242 {approx = true} : vector<2x8x1xf32> -> vector<2x8x1xf32>
    %244 = vector.broadcast %243 : vector<2x8x1xf32> to vector<2x8x8xf32>
    %245 = arith.mulf %240, %244 : vector<2x8x8xf32>
    "tpu.trace_start"() <{level = 10 : i32, message = "bqk,bkd->bqd"}> : () -> ()
    %cst_107 = arith.constant dense<0.000000e+00> : vector<2x8x8xf32>
    %246 = tpu.matmul %245, %231, %cst_107 {dimension_numbers = #tpu.dot_dimension_numbers<[2], [1], [1], [2], [0, 0, 0, 1, 1, 2], [0], [0]>} : vector<2x8x8xf32>, vector<2x8x8xf32>, vector<2x8x8xf32> -> vector<2x8x8xf32>
    "tpu.trace_stop"() : () -> ()
    %247 = vector.shape_cast %246 : vector<2x8x8xf32> to vector<16x8xf32>
    %248 = vector.extract_strided_slice %209 {offsets = [8, 0], sizes = [8, 32], strides = [1, 1]} : vector<32x32xf32> to vector<8x32xf32>
    %cst_108 = arith.constant dense<0.000000e+00> : vector<16x32xf32>
    %249 = tpu.matmul %247, %248, %cst_108 {dimension_numbers = #tpu.dot_dimension_numbers<[1], [0], [0], [1], [0, 0, 1, 1], [], []>} : vector<16x8xf32>, vector<8x32xf32>, vector<16x32xf32> -> vector<16x32xf32>
    %250 = arith.addf %230, %249 : vector<16x32xf32>
    %251 = vector.extract_strided_slice %205 {offsets = [0, 0, 16], sizes = [2, 8, 8], strides = [1, 1, 1]} : vector<2x8x32xf32> to vector<2x8x8xf32>
    %252 = vector.extract_strided_slice %207 {offsets = [0, 0, 16], sizes = [2, 8, 8], strides = [1, 1, 1]} : vector<2x8x32xf32> to vector<2x8x8xf32>
    "tpu.trace_start"() <{level = 10 : i32, message = "bqd,bkd->bqk"}> : () -> ()
    %cst_109 = arith.constant dense<0.000000e+00> : vector<2x8x8xf32>
    %253 = tpu.matmul %252, %252, %cst_109 {dimension_numbers = #tpu.dot_dimension_numbers<[2], [2], [1], [1], [0, 0, 0, 1, 1, 1], [0], [0]>} : vector<2x8x8xf32>, vector<2x8x8xf32>, vector<2x8x8xf32> -> vector<2x8x8xf32>
    %cst_110 = arith.constant -1.000000e+30 : f32
    "tpu.trace_stop"() : () -> ()
    %254 = vector.broadcast %cst_110 : f32 to vector<2x8x8xf32>
    %255 = arith.select %12, %253, %254 : vector<2x8x8xi1>, vector<2x8x8xf32>
    %cst_111 = arith.constant dense<0xFF800000> : vector<2x8xf32>
    %256 = vector.multi_reduction <maximumf>, %255, %cst_111 [2] : vector<2x8x8xf32> to vector<2x8xf32>
    %257 = vector.shape_cast %256 : vector<2x8xf32> to vector<2x8x1xf32>
    %258 = vector.broadcast %257 : vector<2x8x1xf32> to vector<2x8x8xf32>
    %259 = arith.subf %255, %258 : vector<2x8x8xf32>
    %260 = math.exp %259 : vector<2x8x8xf32>
    %cst_112 = arith.constant dense<0.000000e+00> : vector<2x8xf32>
    %261 = vector.multi_reduction <add>, %260, %cst_112 [2] : vector<2x8x8xf32> to vector<2x8xf32>
    %262 = vector.shape_cast %261 : vector<2x8xf32> to vector<2x8x1xf32>
    %263 = tpu.reciprocal %262 {approx = true} : vector<2x8x1xf32> -> vector<2x8x1xf32>
    %264 = vector.broadcast %263 : vector<2x8x1xf32> to vector<2x8x8xf32>
    %265 = arith.mulf %260, %264 : vector<2x8x8xf32>
    "tpu.trace_start"() <{level = 10 : i32, message = "bqk,bkd->bqd"}> : () -> ()
    %cst_113 = arith.constant dense<0.000000e+00> : vector<2x8x8xf32>
    %266 = tpu.matmul %265, %251, %cst_113 {dimension_numbers = #tpu.dot_dimension_numbers<[2], [1], [1], [2], [0, 0, 0, 1, 1, 2], [0], [0]>} : vector<2x8x8xf32>, vector<2x8x8xf32>, vector<2x8x8xf32> -> vector<2x8x8xf32>
    "tpu.trace_stop"() : () -> ()
    %267 = vector.shape_cast %266 : vector<2x8x8xf32> to vector<16x8xf32>
    %268 = vector.extract_strided_slice %209 {offsets = [16, 0], sizes = [8, 32], strides = [1, 1]} : vector<32x32xf32> to vector<8x32xf32>
    %cst_114 = arith.constant dense<0.000000e+00> : vector<16x32xf32>
    %269 = tpu.matmul %267, %268, %cst_114 {dimension_numbers = #tpu.dot_dimension_numbers<[1], [0], [0], [1], [0, 0, 1, 1], [], []>} : vector<16x8xf32>, vector<8x32xf32>, vector<16x32xf32> -> vector<16x32xf32>
    %270 = arith.addf %250, %269 : vector<16x32xf32>
    %271 = vector.extract_strided_slice %205 {offsets = [0, 0, 24], sizes = [2, 8, 8], strides = [1, 1, 1]} : vector<2x8x32xf32> to vector<2x8x8xf32>
    %272 = vector.extract_strided_slice %207 {offsets = [0, 0, 24], sizes = [2, 8, 8], strides = [1, 1, 1]} : vector<2x8x32xf32> to vector<2x8x8xf32>
    "tpu.trace_start"() <{level = 10 : i32, message = "bqd,bkd->bqk"}> : () -> ()
    %cst_115 = arith.constant dense<0.000000e+00> : vector<2x8x8xf32>
    %273 = tpu.matmul %272, %272, %cst_115 {dimension_numbers = #tpu.dot_dimension_numbers<[2], [2], [1], [1], [0, 0, 0, 1, 1, 1], [0], [0]>} : vector<2x8x8xf32>, vector<2x8x8xf32>, vector<2x8x8xf32> -> vector<2x8x8xf32>
    %cst_116 = arith.constant -1.000000e+30 : f32
    "tpu.trace_stop"() : () -> ()
    %274 = vector.broadcast %cst_116 : f32 to vector<2x8x8xf32>
    %275 = arith.select %12, %273, %274 : vector<2x8x8xi1>, vector<2x8x8xf32>
    %cst_117 = arith.constant dense<0xFF800000> : vector<2x8xf32>
    %276 = vector.multi_reduction <maximumf>, %275, %cst_117 [2] : vector<2x8x8xf32> to vector<2x8xf32>
    %277 = vector.shape_cast %276 : vector<2x8xf32> to vector<2x8x1xf32>
    %278 = vector.broadcast %277 : vector<2x8x1xf32> to vector<2x8x8xf32>
    %279 = arith.subf %275, %278 : vector<2x8x8xf32>
    %280 = math.exp %279 : vector<2x8x8xf32>
    %cst_118 = arith.constant dense<0.000000e+00> : vector<2x8xf32>
    %281 = vector.multi_reduction <add>, %280, %cst_118 [2] : vector<2x8x8xf32> to vector<2x8xf32>
    %282 = vector.shape_cast %281 : vector<2x8xf32> to vector<2x8x1xf32>
    %283 = tpu.reciprocal %282 {approx = true} : vector<2x8x1xf32> -> vector<2x8x1xf32>
    %284 = vector.broadcast %283 : vector<2x8x1xf32> to vector<2x8x8xf32>
    %285 = arith.mulf %280, %284 : vector<2x8x8xf32>
    "tpu.trace_start"() <{level = 10 : i32, message = "bqk,bkd->bqd"}> : () -> ()
    %cst_119 = arith.constant dense<0.000000e+00> : vector<2x8x8xf32>
    %286 = tpu.matmul %285, %271, %cst_119 {dimension_numbers = #tpu.dot_dimension_numbers<[2], [1], [1], [2], [0, 0, 0, 1, 1, 2], [0], [0]>} : vector<2x8x8xf32>, vector<2x8x8xf32>, vector<2x8x8xf32> -> vector<2x8x8xf32>
    "tpu.trace_stop"() : () -> ()
    %287 = vector.shape_cast %286 : vector<2x8x8xf32> to vector<16x8xf32>
    %288 = vector.extract_strided_slice %209 {offsets = [24, 0], sizes = [8, 32], strides = [1, 1]} : vector<32x32xf32> to vector<8x32xf32>
    %cst_120 = arith.constant dense<0.000000e+00> : vector<16x32xf32>
    %289 = tpu.matmul %287, %288, %cst_120 {dimension_numbers = #tpu.dot_dimension_numbers<[1], [0], [0], [1], [0, 0, 1, 1], [], []>} : vector<16x8xf32>, vector<8x32xf32>, vector<16x32xf32> -> vector<16x32xf32>
    %290 = arith.addf %270, %289 : vector<16x32xf32>
    %291 = arith.addf %175, %290 : vector<16x32xf32>
    %c1_121 = arith.constant 1 : index
    %c0_122 = arith.constant 0 : index
    %c0_123 = arith.constant 0 : index
    %292 = vector.load %arg7[%c1_121, %c0_122, %c0_123] : memref<2x1x32xf32, #tpu.memory_space<vmem>>, vector<1x1x32xf32>
    %293 = vector.shape_cast %292 : vector<1x1x32xf32> to vector<1x32xf32>
    %294 = vector.broadcast %293 : vector<1x32xf32> to vector<16x32xf32>
    %295 = arith.addf %291, %294 : vector<16x32xf32>
    %c1_124 = arith.constant 1 : index
    %c0_125 = arith.constant 0 : index
    %c0_126 = arith.constant 0 : index
    %296 = vector.load %arg8[%c1_124, %c0_125, %c0_126] : memref<2x1x32xf32, #tpu.memory_space<vmem>>, vector<1x1x32xf32>
    %297 = vector.shape_cast %296 : vector<1x1x32xf32> to vector<1x32xf32>
    %c1_127 = arith.constant 1 : index
    %c0_128 = arith.constant 0 : index
    %c0_129 = arith.constant 0 : index
    %298 = vector.load %arg9[%c1_127, %c0_128, %c0_129] : memref<2x1x32xf32, #tpu.memory_space<vmem>>, vector<1x1x32xf32>
    %299 = vector.shape_cast %298 : vector<1x1x32xf32> to vector<1x32xf32>
    %cst_130 = arith.constant dense<0.000000e+00> : vector<16xf32>
    %300 = vector.multi_reduction <add>, %295, %cst_130 [1] : vector<16x32xf32> to vector<16xf32>
    %301 = vector.shape_cast %300 : vector<16xf32> to vector<16x1xf32>
    %cst_131 = arith.constant 3.200000e+01 : f32
    %302 = vector.broadcast %cst_131 : f32 to vector<16x1xf32>
    %303 = arith.divf %301, %302 : vector<16x1xf32>
    %304 = vector.broadcast %303 : vector<16x1xf32> to vector<16x32xf32>
    %305 = arith.subf %295, %304 : vector<16x32xf32>
    %306 = arith.mulf %305, %305 : vector<16x32xf32>
    %cst_132 = arith.constant dense<0.000000e+00> : vector<16xf32>
    %307 = vector.multi_reduction <add>, %306, %cst_132 [1] : vector<16x32xf32> to vector<16xf32>
    %308 = vector.shape_cast %307 : vector<16xf32> to vector<16x1xf32>
    %cst_133 = arith.constant 3.200000e+01 : f32
    %309 = vector.broadcast %cst_133 : f32 to vector<16x1xf32>
    %310 = arith.divf %308, %309 : vector<16x1xf32>
    %311 = vector.broadcast %303 : vector<16x1xf32> to vector<16x32xf32>
    %312 = arith.subf %295, %311 : vector<16x32xf32>
    %cst_134 = arith.constant 9.99999974E-6 : f32
    %313 = vector.broadcast %cst_134 : f32 to vector<16x1xf32>
    %314 = arith.addf %310, %313 : vector<16x1xf32>
    %315 = math.rsqrt %314 : vector<16x1xf32>
    %316 = vector.broadcast %315 : vector<16x1xf32> to vector<16x32xf32>
    %317 = arith.mulf %312, %316 : vector<16x32xf32>
    %318 = vector.broadcast %297 : vector<1x32xf32> to vector<16x32xf32>
    %319 = arith.mulf %317, %318 : vector<16x32xf32>
    %320 = vector.broadcast %299 : vector<1x32xf32> to vector<16x32xf32>
    %321 = arith.addf %319, %320 : vector<16x32xf32>
    %c1_135 = arith.constant 1 : index
    %c0_136 = arith.constant 0 : index
    %c0_137 = arith.constant 0 : index
    %322 = vector.load %arg10[%c1_135, %c0_136, %c0_137] : memref<2x32x128xf32, #tpu.memory_space<vmem>>, vector<1x32x128xf32>
    %323 = vector.shape_cast %322 : vector<1x32x128xf32> to vector<32x128xf32>
    %cst_138 = arith.constant dense<0.000000e+00> : vector<16x128xf32>
    %324 = tpu.matmul %321, %323, %cst_138 {dimension_numbers = #tpu.dot_dimension_numbers<[1], [0], [0], [1], [0, 0, 1, 1], [], []>} : vector<16x32xf32>, vector<32x128xf32>, vector<16x128xf32> -> vector<16x128xf32>
    %c1_139 = arith.constant 1 : index
    %c0_140 = arith.constant 0 : index
    %c0_141 = arith.constant 0 : index
    %325 = vector.load %arg11[%c1_139, %c0_140, %c0_141] : memref<2x1x128xf32, #tpu.memory_space<vmem>>, vector<1x1x128xf32>
    %326 = vector.shape_cast %325 : vector<1x1x128xf32> to vector<1x128xf32>
    %327 = vector.broadcast %326 : vector<1x128xf32> to vector<16x128xf32>
    %328 = arith.addf %324, %327 : vector<16x128xf32>
    %cst_142 = arith.constant 0.000000e+00 : f32
    %329 = vector.broadcast %cst_142 : f32 to vector<16x128xf32>
    %330 = arith.maximumf %328, %329 : vector<16x128xf32>
    %c1_143 = arith.constant 1 : index
    %c0_144 = arith.constant 0 : index
    %c0_145 = arith.constant 0 : index
    %331 = vector.load %arg12[%c1_143, %c0_144, %c0_145] : memref<2x128x32xf32, #tpu.memory_space<vmem>>, vector<1x128x32xf32>
    %332 = vector.shape_cast %331 : vector<1x128x32xf32> to vector<128x32xf32>
    %cst_146 = arith.constant dense<0.000000e+00> : vector<16x32xf32>
    %333 = tpu.matmul %330, %332, %cst_146 {dimension_numbers = #tpu.dot_dimension_numbers<[1], [0], [0], [1], [0, 0, 1, 1], [], []>} : vector<16x128xf32>, vector<128x32xf32>, vector<16x32xf32> -> vector<16x32xf32>
    %334 = arith.addf %295, %333 : vector<16x32xf32>
    %c1_147 = arith.constant 1 : index
    %c0_148 = arith.constant 0 : index
    %c0_149 = arith.constant 0 : index
    %335 = vector.load %arg13[%c1_147, %c0_148, %c0_149] : memref<2x1x32xf32, #tpu.memory_space<vmem>>, vector<1x1x32xf32>
    %336 = vector.shape_cast %335 : vector<1x1x32xf32> to vector<1x32xf32>
    %337 = vector.broadcast %336 : vector<1x32xf32> to vector<16x32xf32>
    %338 = arith.addf %334, %337 : vector<16x32xf32>
    %c0_150 = arith.constant 0 : index
    %c0_151 = arith.constant 0 : index
    %339 = vector.load %arg14[%c0_150, %c0_151] : memref<1x32xf32, #tpu.memory_space<vmem>>, vector<1x32xf32>
    %c0_152 = arith.constant 0 : index
    %c0_153 = arith.constant 0 : index
    %340 = vector.load %arg15[%c0_152, %c0_153] : memref<1x32xf32, #tpu.memory_space<vmem>>, vector<1x32xf32>
    %cst_154 = arith.constant dense<0.000000e+00> : vector<16xf32>
    %341 = vector.multi_reduction <add>, %338, %cst_154 [1] : vector<16x32xf32> to vector<16xf32>
    %342 = vector.shape_cast %341 : vector<16xf32> to vector<16x1xf32>
    %cst_155 = arith.constant 3.200000e+01 : f32
    %343 = vector.broadcast %cst_155 : f32 to vector<16x1xf32>
    %344 = arith.divf %342, %343 : vector<16x1xf32>
    %345 = vector.broadcast %344 : vector<16x1xf32> to vector<16x32xf32>
    %346 = arith.subf %338, %345 : vector<16x32xf32>
    %347 = arith.mulf %346, %346 : vector<16x32xf32>
    %cst_156 = arith.constant dense<0.000000e+00> : vector<16xf32>
    %348 = vector.multi_reduction <add>, %347, %cst_156 [1] : vector<16x32xf32> to vector<16xf32>
    %349 = vector.shape_cast %348 : vector<16xf32> to vector<16x1xf32>
    %cst_157 = arith.constant 3.200000e+01 : f32
    %350 = vector.broadcast %cst_157 : f32 to vector<16x1xf32>
    %351 = arith.divf %349, %350 : vector<16x1xf32>
    %352 = vector.broadcast %344 : vector<16x1xf32> to vector<16x32xf32>
    %353 = arith.subf %338, %352 : vector<16x32xf32>
    %cst_158 = arith.constant 9.99999974E-6 : f32
    %354 = vector.broadcast %cst_158 : f32 to vector<16x1xf32>
    %355 = arith.addf %351, %354 : vector<16x1xf32>
    %356 = math.rsqrt %355 : vector<16x1xf32>
    %357 = vector.broadcast %356 : vector<16x1xf32> to vector<16x32xf32>
    %358 = arith.mulf %353, %357 : vector<16x32xf32>
    %359 = vector.broadcast %339 : vector<1x32xf32> to vector<16x32xf32>
    %360 = arith.mulf %358, %359 : vector<16x32xf32>
    %361 = vector.broadcast %340 : vector<1x32xf32> to vector<16x32xf32>
    %362 = arith.addf %360, %361 : vector<16x32xf32>
    %c0_159 = arith.constant 0 : index
    %c0_160 = arith.constant 0 : index
    %363 = vector.load %arg16[%c0_159, %c0_160] : memref<32x128xf32, #tpu.memory_space<vmem>>, vector<32x128xf32>
    %cst_161 = arith.constant dense<0.000000e+00> : vector<16x128xf32>
    %364 = tpu.matmul %362, %363, %cst_161 {dimension_numbers = #tpu.dot_dimension_numbers<[1], [0], [0], [1], [0, 0, 1, 1], [], []>} : vector<16x32xf32>, vector<32x128xf32>, vector<16x128xf32> -> vector<16x128xf32>
    %c0_162 = arith.constant 0 : index
    %c0_163 = arith.constant 0 : index
    %365 = vector.load %arg17[%c0_162, %c0_163] : memref<1x128xf32, #tpu.memory_space<vmem>>, vector<1x128xf32>
    %366 = vector.broadcast %365 : vector<1x128xf32> to vector<16x128xf32>
    %367 = arith.addf %364, %366 : vector<16x128xf32>
    %c0_164 = arith.constant 0 : index
    %c0_165 = arith.constant 0 : index
    %368 = vector.load %arg18[%c0_164, %c0_165] : memref<16x128xf32, #tpu.memory_space<vmem>>, vector<16x128xf32>
    tpu.vector_store %arg18[%c0_164, %c0_165], %367 {strides = array<i32>} : memref<16x128xf32, #tpu.memory_space<vmem>>, vector<16x128xf32>,
    return
  }
}

</mosaic_0001>

<llo_original>
// kernel: llm_forward.1
$region0: #{llm_forward.1}
  #allocation0 [shape = 'u32[]', space=smem, size = 0x4, offset = 0x4, fixed_abs, tag = 'smem constant byte address 0x4 - core index']
  #allocation1 [shape = 'u32[144,128]{1,0:T(1,128)}', space=vmem, size = 0x12000, scoped, tag = 'internal scratch']
  %s0 = inlined_call_operand.vmem [shape: s32[16,1], index: 0, kind: input, shape index: {}]
  %s1 = inlined_call_operand.vmem [shape: f32[64,32], index: 1, kind: input, shape index: {}]
  %s2 = inlined_call_operand.vmem [shape: f32[16,32], index: 2, kind: input, shape index: {}]
  %s3 = inlined_call_operand.vmem [shape: f32[2,1,32], index: 3, kind: input, shape index: {}]
  %s4 = inlined_call_operand.vmem [shape: f32[2,1,32], index: 4, kind: input, shape index: {}]
  %s5 = inlined_call_operand.vmem [shape: f32[2,32,32], index: 5, kind: input, shape index: {}]
  %s6 = inlined_call_operand.vmem [shape: f32[2,32,32], index: 6, kind: input, shape index: {}]
  %s7 = inlined_call_operand.vmem [shape: f32[2,1,32], index: 7, kind: input, shape index: {}]
  %s8 = inlined_call_operand.vmem [shape: f32[2,1,32], index: 8, kind: input, shape index: {}]
  %s9 = inlined_call_operand.vmem [shape: f32[2,1,32], index: 9, kind: input, shape index: {}]
  %s10 = inlined_call_operand.vmem [shape: f32[2,32,128], index: 10, kind: input, shape index: {}]
  %s11 = inlined_call_operand.vmem [shape: f32[2,1,128], index: 11, kind: input, shape index: {}]
  %s12 = inlined_call_operand.vmem [shape: f32[2,128,32], index: 12, kind: input, shape index: {}]
  %s13 = inlined_call_operand.vmem [shape: f32[2,1,32], index: 13, kind: input, shape index: {}]
  %s14 = inlined_call_operand.vmem [shape: f32[1,32], index: 14, kind: input, shape index: {}]
  %s15 = inlined_call_operand.vmem [shape: f32[1,32], index: 15, kind: input, shape index: {}]
  %s16 = inlined_call_operand.vmem [shape: f32[32,128], index: 16, kind: input, shape index: {}]
  %s17 = inlined_call_operand.vmem [shape: f32[1,128], index: 17, kind: input, shape index: {}]
  %s18 = inlined_call_operand.vmem [shape: f32[16,128], index: 18, kind: output, shape index: {}]
  %s19 = sld [smem:[#allocation0]]
  $region82: #{llm_forward.1} parent=0
    _
  %s21 = ssub.s32 1, %s19
  %s22 = scalar_select 0, %s21, %s19
  // Predicated region
  $region2: #{llm_forward.1} parent=0 // pred_check
    _
  $region3: #{llm_forward.1} parent=0 // pred_check_branch
    %24 = sbr.rel (0) target = $region5
  $region4: #{llm_forward.1} parent=0 // pred_region
    _
  $region5: #{llm_forward.1} parent=0 // pred_fallthru
    _
  // Predicated region
  $region6: #{llm_forward.1} parent=0 // pred_check
    _
  $region7: #{llm_forward.1} parent=0 // pred_check_branch
    %26 = sbr.rel (0) target = $region9
  $region8: #{llm_forward.1} parent=0 // pred_region
    _
  $region9: #{llm_forward.1} parent=0 // pred_fallthru
    _
  // Predicated region
  $region10: #{llm_forward.1} parent=0 // pred_check
    _
  $region11: #{llm_forward.1} parent=0 // pred_check_branch
    %28 = sbr.rel (0) target = $region13
  $region12: #{llm_forward.1} parent=0 // pred_region
    _
  $region13: #{llm_forward.1} parent=0 // pred_fallthru
    _
  // Predicated region
  $region14: #{llm_forward.1} parent=0 // pred_check
    _
  $region15: #{llm_forward.1} parent=0 // pred_check_branch
    %30 = sbr.rel (0) target = $region17
  $region16: #{llm_forward.1} parent=0 // pred_region
    _
  $region17: #{llm_forward.1} parent=0 // pred_fallthru
    _
  // Predicated region
  $region18: #{llm_forward.1} parent=0 // pred_check
    _
  $region19: #{llm_forward.1} parent=0 // pred_check_branch
    %32 = sbr.rel (0) target = $region21
  $region20: #{llm_forward.1} parent=0 // pred_region
    _
  $region21: #{llm_forward.1} parent=0 // pred_fallthru
    _
  // Predicated region
  $region22: #{llm_forward.1} parent=0 // pred_check
    _
  $region23: #{llm_forward.1} parent=0 // pred_check_branch
    %34 = sbr.rel (0) target = $region25
  $region24: #{llm_forward.1} parent=0 // pred_region
    _
  $region25: #{llm_forward.1} parent=0 // pred_fallthru
    _
  // Predicated region
  $region26: #{llm_forward.1} parent=0 // pred_check
    _
  $region27: #{llm_forward.1} parent=0 // pred_check_branch
    %36 = sbr.rel (0) target = $region29
  $region28: #{llm_forward.1} parent=0 // pred_region
    _
  $region29: #{llm_forward.1} parent=0 // pred_fallthru
    _
  // Predicated region
  $region30: #{llm_forward.1} parent=0 // pred_check
    _
  $region31: #{llm_forward.1} parent=0 // pred_check_branch
    %38 = sbr.rel (0) target = $region33
  $region32: #{llm_forward.1} parent=0 // pred_region
    _
  $region33: #{llm_forward.1} parent=0 // pred_fallthru
    _
  // Predicated region
  $region34: #{llm_forward.1} parent=0 // pred_check
    _
  $region35: #{llm_forward.1} parent=0 // pred_check_branch
    %40 = sbr.rel (0) target = $region37
  $region36: #{llm_forward.1} parent=0 // pred_region
    _
  $region37: #{llm_forward.1} parent=0 // pred_fallthru
    _
  // Predicated region
  $region38: #{llm_forward.1} parent=0 // pred_check
    _
  $region39: #{llm_forward.1} parent=0 // pred_check_branch
    %42 = sbr.rel (0) target = $region41
  $region40: #{llm_forward.1} parent=0 // pred_region
    _
  $region41: #{llm_forward.1} parent=0 // pred_fallthru
    _
  // Predicated region
  $region42: #{llm_forward.1} parent=0 // pred_check
    _
  $region43: #{llm_forward.1} parent=0 // pred_check_branch
    %44 = sbr.rel (0) target = $region45
  $region44: #{llm_forward.1} parent=0 // pred_region
    _
  $region45: #{llm_forward.1} parent=0 // pred_fallthru
    _
  // Predicated region
  $region46: #{llm_forward.1} parent=0 // pred_check
    _
  $region47: #{llm_forward.1} parent=0 // pred_check_branch
    %46 = sbr.rel (0) target = $region49
  $region48: #{llm_forward.1} parent=0 // pred_region
    _
  $region49: #{llm_forward.1} parent=0 // pred_fallthru
    _
  // Predicated region
  $region50: #{llm_forward.1} parent=0 // pred_check
    _
  $region51: #{llm_forward.1} parent=0 // pred_check_branch
    %48 = sbr.rel (0) target = $region53
  $region52: #{llm_forward.1} parent=0 // pred_region
    _
  $region53: #{llm_forward.1} parent=0 // pred_fallthru
    _
  // Predicated region
  $region54: #{llm_forward.1} parent=0 // pred_check
    _
  $region55: #{llm_forward.1} parent=0 // pred_check_branch
    %50 = sbr.rel (0) target = $region57
  $region56: #{llm_forward.1} parent=0 // pred_region
    _
  $region57: #{llm_forward.1} parent=0 // pred_fallthru
    _
  // Predicated region
  $region58: #{llm_forward.1} parent=0 // pred_check
    _
  $region59: #{llm_forward.1} parent=0 // pred_check_branch
    %52 = sbr.rel (0) target = $region61
  $region60: #{llm_forward.1} parent=0 // pred_region
    _
  $region61: #{llm_forward.1} parent=0 // pred_fallthru
    _
  // Predicated region
  $region62: #{llm_forward.1} parent=0 // pred_check
    _
  $region63: #{llm_forward.1} parent=0 // pred_check_branch
    %54 = sbr.rel (0) target = $region65
  $region64: #{llm_forward.1} parent=0 // pred_region
    _
  $region65: #{llm_forward.1} parent=0 // pred_fallthru
    _
  // Predicated region
  $region66: #{llm_forward.1} parent=0 // pred_check
    _
  $region67: #{llm_forward.1} parent=0 // pred_check_branch
    %56 = sbr.rel (0) target = $region69
  $region68: #{llm_forward.1} parent=0 // pred_region
    _
  $region69: #{llm_forward.1} parent=0 // pred_fallthru
    _
  // Predicated region
  $region70: #{llm_forward.1} parent=0 // pred_check
    _
  $region71: #{llm_forward.1} parent=0 // pred_check_branch
    %58 = sbr.rel (0) target = $region73
  $region72: #{llm_forward.1} parent=0 // pred_region
    _
  $region73: #{llm_forward.1} parent=0 // pred_fallthru
    _
  %v59 = vld [vmem:[%s0] sm:$0xff]
  %v60 = vld [vmem:[%s0 + $0x8] sm:$0xff]
  %v61 = vlaneseq
  %v62 = vand.u32 %v61, 127
  %63 = vset.pattern.permute.xlu0 0
  %64 = vperm.xlu0 %63, %v59
  %v65 = vpop.permute.xlu0 %64
  %66 = vset.pattern.permute.xlu0 0
  %67 = vperm.xlu0 %66, %v60
  %v68 = vpop.permute.xlu0 %67
  %vm69 = vcmp.eq.s32.totalorder %v65, %v62
  %vm70 = vcmp.eq.s32.totalorder %v68, %v62
  %v71 = vsel %vm69, 1, 0
  %v72 = vsel %vm70, 1, 0
  %v73 = vcvt.s32.f32 %v71
  %v74 = vcvt.s32.f32 %v72
  %v75 = vld [vmem:[%s1] sm:$0xff]
  %v76 = vld [vmem:[%s1 + $0x8] sm:$0xff]
  %v77 = vld [vmem:[%s1 + $0x10] sm:$0xff]
  %v78 = vld [vmem:[%s1 + $0x18] sm:$0xff]
  %v79 = vld [vmem:[%s1 + $0x20] sm:$0xff]
  %v80 = vld [vmem:[%s1 + $0x28] sm:$0xff]
  %v81 = vld [vmem:[%s1 + $0x30] sm:$0xff]
  %v82 = vld [vmem:[%s1 + $0x38] sm:$0xff]
  %v83 = vld [vmem:[%s2] sm:$0xff]
  %v84 = vld [vmem:[%s2 + $0x8] sm:$0xff]
  %vm85 = vcmask 523264
  %v87 = vsel %vm85, %v73, 0
  %v90 = vsel %vm85, %v74, 0
  %92 = vmatprep.subr.mxu0 0.0
  %93 = vmatpush1.msra.mxu0 %v75
  %94 = vmatprep.subr.mxu0 0.0
  %95 = vmatpush1.msra.mxu0 %v76
  %96 = vmatprep.subr.mxu0 0.0
  %97 = vmatpush1.msra.mxu0 %v77
  %98 = vmatprep.subr.mxu0 0.0
  %99 = vmatpush1.msra.mxu0 %v78
  %100 = vmatprep.subr.mxu0 0.0
  %101 = vmatpush1.msra.mxu0 %v79
  %102 = vmatprep.subr.mxu0 0.0
  %103 = vmatpush1.msra.mxu0 %v80
  %104 = vmatprep.subr.mxu0 0.0
  %105 = vmatpush1.msra.mxu0 %v81
  %106 = vmatprep.subr.mxu0 0.0
  %107 = vmatpush1.msra.mxu0 %v82
  %108 = vmatprep.subr.mxu0 0.0
  %109 = vmatpush1.msra.mxu0 0.0
  %110 = vmatprep.subr.mxu0 0.0
  %111 = vmatpush1.msra.mxu0 0.0
  %112 = vmatprep.subr.mxu0 0.0
  %113 = vmatpush1.msra.mxu0 0.0
  %114 = vmatprep.subr.mxu0 0.0
  %115 = vmatpush1.msra.mxu0 0.0
  %116 = vmatprep.subr.mxu0 0.0
  %117 = vmatpush1.msra.mxu0 0.0
  %118 = vmatprep.subr.mxu0 0.0
  %119 = vmatpush1.msra.mxu0 0.0
  %120 = vmatprep.subr.mxu0 0.0
  %121 = vmatpush1.msra.mxu0 0.0
  %122 = vmatprep.subr.mxu0 0.0
  %123 = vmatpush1.msra.mxu0 0.0
  %124 = vmatprep.subr.mxu0 0.0
  %125 = vmatpush1.msra.mxu0 0.0
  %126 = vmatprep.subr.mxu0 0.0
  %127 = vmatpush1.msra.mxu0 0.0
  %128 = vmatprep.subr.mxu0 0.0
  %129 = vmatpush1.msra.mxu0 0.0
  %130 = vmatprep.subr.mxu0 0.0
  %131 = vmatpush1.msra.mxu0 0.0
  %132 = vmatprep.subr.mxu0 0.0
  %133 = vmatpush1.msra.mxu0 0.0
  %134 = vmatprep.subr.mxu0 0.0
  %135 = vmatpush1.msra.mxu0 0.0
  %136 = vmatprep.subr.mxu0 0.0
  %137 = vmatpush1.msra.mxu0 0.0
  %138 = vmatprep.subr.mxu0 0.0
  %139 = vmatpush1.msra.mxu0 0.0
  %140 = vmatprep.subr.mxu0 0.0
  %141 = vmatpush1.msra.mxu0 0.0
  %142 = vmatprep.subr.mxu0 0.0
  %143 = vmatpush1.msra.mxu0 0.0
  %144 = vmatprep.subr.mxu0 0.0
  %145 = vmatpush1.msra.mxu0 0.0
  %146 = vmatprep.subr.mxu0 0.0
  %147 = vmatpush1.msra.mxu0 0.0
  %148 = vmatprep.subr.mxu0 0.0
  %149 = vmatpush1.msra.mxu0 0.0
  %150 = vmatprep.subr.mxu0 0.0
  %151 = vmatpush1.msra.mxu0 0.0
  %152 = vmatprep.subr.mxu0 0.0
  %153 = vmatpush1.msra.mxu0 0.0
  %154 = vmatprep.subr.mxu0 0.0
  %155 = vmatpush1.msra.mxu0 0.0
  %156 = vmatprep.mubr.f32.mxu0 0.0
  %157 = vmatmul.mubr.f32.gmra.mrb[0].mxu0 %v87
  %v158 = vpop.f32.mrb[0].mxu0
  %v159 = vadd.f32 %v83, %v158
  %v160 = vpop.f32.mrb[0].mxu0
  %161 = vmatprep.mubr.f32.mxu0 0.0
  %162 = vmatmul.mubr.f32.gmra.mrb[0].mxu0 %v90
  %v163 = vpop.f32.mrb[0].mxu0
  %v164 = vadd.f32 %v84, %v163
  %v165 = vpop.f32.mrb[0].mxu0
  %166 = vdwg.mxu0
  %v167 = vlaneseq
  %v168 = vshrl.u32 %v167, 7
  %vm169 = vcmp.ge.s32.totalorder %v168, %v62
  %v170 = vld [vmem:[%s3] sm:$0x1]
  %v171 = vld [vmem:[%s4] sm:$0x1]
  %vm172 = vcmask 261120
  %v173 = vsel %vm172, %v159, 0.0
  %174 = vadd.xlane.f32.xlu0 %v173
  %v175 = vpop.xlane.xlu0 %174
  %v176 = vsel %vm172, %v164, 0.0
  %177 = vadd.xlane.f32.xlu0 %v176
  %v178 = vpop.xlane.xlu0 %177
  %v179 = vrcp.pop 32.0
  %v180 = vmul.f32 %v175, %v179
  %v181 = vmul.f32 %v178, %v179
  %v182 = vsub.f32 %v159, %v180
  %v183 = vsub.f32 %v164, %v181
  %v184 = vmul.f32 %v182, %v182
  %v185 = vmul.f32 %v183, %v183
  %v186 = vsel %vm172, %v184, 0.0
  %187 = vadd.xlane.f32.xlu0 %v186
  %v188 = vpop.xlane.xlu0 %187
  %v189 = vsel %vm172, %v185, 0.0
  %190 = vadd.xlane.f32.xlu0 %v189
  %v191 = vpop.xlane.xlu0 %190
  %v192 = vmul.f32 %v188, %v179
  %v193 = vmul.f32 %v191, %v179
  %v194 = vadd.f32 %v192, 1e-05
  %v195 = vadd.f32 %v193, 1e-05
  %v196 = vrsqrt.pop %v194
  %v197 = vrsqrt.pop %v195
  %v198 = vmul.f32 %v182, %v196
  %v199 = vmul.f32 %v183, %v197
  %v201 = vlaneseq
  %v202 = vshrl.u32 %v201, 7
  %v203 = vsub.s32 0, %v202
  %v204 = vrot.slane %v170, %v203
  %v206 = vmul.f32 %v198, %v204
  %v207 = vmul.f32 %v199, %v204
  %v209 = vlaneseq
  %v210 = vshrl.u32 %v209, 7
  %v211 = vsub.s32 0, %v210
  %v212 = vrot.slane %v171, %v211
  %v214 = vadd.f32 %v206, %v212
  %v215 = vadd.f32 %v207, %v212
  %v216 = vld [vmem:[%s5] sm:$0xff]
  %v217 = vld [vmem:[%s5 + $0x8] sm:$0xff]
  %v218 = vld [vmem:[%s5 + $0x10] sm:$0xff]
  %v219 = vld [vmem:[%s5 + $0x18] sm:$0xff]
  %v221 = vsel %vm172, %v214, 0
  %v224 = vsel %vm172, %v215, 0
  %226 = vmatprep.subr.mxu0 0.0
  %227 = vmatpush1.msra.mxu0 %v216
  %228 = vmatprep.subr.mxu0 0.0
  %229 = vmatpush1.msra.mxu0 %v217
  %230 = vmatprep.subr.mxu0 0.0
  %231 = vmatpush1.msra.mxu0 %v218
  %232 = vmatprep.subr.mxu0 0.0
  %233 = vmatpush1.msra.mxu0 %v219
  %234 = vmatprep.subr.mxu0 0.0
  %235 = vmatpush1.msra.mxu0 0.0
  %236 = vmatprep.subr.mxu0 0.0
  %237 = vmatpush1.msra.mxu0 0.0
  %238 = vmatprep.subr.mxu0 0.0
  %239 = vmatpush1.msra.mxu0 0.0
  %240 = vmatprep.subr.mxu0 0.0
  %241 = vmatpush1.msra.mxu0 0.0
  %242 = vmatprep.subr.mxu0 0.0
  %243 = vmatpush1.msra.mxu0 0.0
  %244 = vmatprep.subr.mxu0 0.0
  %245 = vmatpush1.msra.mxu0 0.0
  %246 = vmatprep.subr.mxu0 0.0
  %247 = vmatpush1.msra.mxu0 0.0
  %248 = vmatprep.subr.mxu0 0.0
  %249 = vmatpush1.msra.mxu0 0.0
  %250 = vmatprep.subr.mxu0 0.0
  %251 = vmatpush1.msra.mxu0 0.0
  %252 = vmatprep.subr.mxu0 0.0
  %253 = vmatpush1.msra.mxu0 0.0
  %254 = vmatprep.subr.mxu0 0.0
  %255 = vmatpush1.msra.mxu0 0.0
  %256 = vmatprep.subr.mxu0 0.0
  %257 = vmatpush1.msra.mxu0 0.0
  %258 = vmatprep.subr.mxu0 0.0
  %259 = vmatpush1.msra.mxu0 0.0
  %260 = vmatprep.subr.mxu0 0.0
  %261 = vmatpush1.msra.mxu0 0.0
  %262 = vmatprep.subr.mxu0 0.0
  %263 = vmatpush1.msra.mxu0 0.0
  %264 = vmatprep.subr.mxu0 0.0
  %265 = vmatpush1.msra.mxu0 0.0
  %266 = vmatprep.subr.mxu0 0.0
  %267 = vmatpush1.msra.mxu0 0.0
  %268 = vmatprep.subr.mxu0 0.0
  %269 = vmatpush1.msra.mxu0 0.0
  %270 = vmatprep.subr.mxu0 0.0
  %271 = vmatpush1.msra.mxu0 0.0
  %272 = vmatprep.subr.mxu0 0.0
  %273 = vmatpush1.msra.mxu0 0.0
  %274 = vmatprep.subr.mxu0 0.0
  %275 = vmatpush1.msra.mxu0 0.0
  %276 = vmatprep.subr.mxu0 0.0
  %277 = vmatpush1.msra.mxu0 0.0
  %278 = vmatprep.subr.mxu0 0.0
  %279 = vmatpush1.msra.mxu0 0.0
  %280 = vmatprep.subr.mxu0 0.0
  %281 = vmatpush1.msra.mxu0 0.0
  %282 = vmatprep.subr.mxu0 0.0
  %283 = vmatpush1.msra.mxu0 0.0
  %284 = vmatprep.subr.mxu0 0.0
  %285 = vmatpush1.msra.mxu0 0.0
  %286 = vmatprep.subr.mxu0 0.0
  %287 = vmatpush1.msra.mxu0 0.0
  %288 = vmatprep.subr.mxu0 0.0
  %289 = vmatpush1.msra.mxu0 0.0
  %290 = vmatprep.mubr.f32.mxu0 0.0
  %291 = vmatmul.mubr.f32.gmra.mrb[0].mxu0 %v221
  %v292 = vpop.f32.mrb[0].mxu0
  %v293 = vadd.f32 0.0, %v292
  %v294 = vpop.f32.mrb[0].mxu0
  %295 = vmatprep.mubr.f32.mxu0 0.0
  %296 = vmatmul.mubr.f32.gmra.mrb[0].mxu0 %v224
  %v297 = vpop.f32.mrb[0].mxu0
  %v298 = vadd.f32 0.0, %v297
  %v299 = vpop.f32.mrb[0].mxu0
  %300 = vdwg.mxu0
  %v301 = vmul.f32 %v293, 0.4204482
  %v302 = vmul.f32 %v298, 0.4204482
  %v303 = vld [vmem:[%s6] sm:$0xff]
  %v304 = vld [vmem:[%s6 + $0x8] sm:$0xff]
  %v305 = vld [vmem:[%s6 + $0x10] sm:$0xff]
  %v306 = vld [vmem:[%s6 + $0x18] sm:$0xff]
  %vm307 = vcmask 64512
  %v309 = vsel %vm307, %v301, 0
  %311 = vmatprep.subr.mxu0 0.0
  %312 = vmatpush1.xpose.msra.mxu0 %v309
  %313 = vmatprep.subr.mxu0 0.0
  %314 = vmatpush1.xpose.msra.mxu0 0.0
  %315 = vmatprep.subr.mxu0 0.0
  %316 = vmatpush1.xpose.msra.mxu0 0.0
  %317 = vmatprep.subr.mxu0 0.0
  %318 = vmatpush1.xpose.msra.mxu0 0.0
  %319 = vmatprep.subr.mxu0 0.0
  %320 = vmatpush1.xpose.msra.mxu0 0.0
  %321 = vmatprep.subr.mxu0 0.0
  %322 = vmatpush1.xpose.msra.mxu0 0.0
  %323 = vmatprep.subr.mxu0 0.0
  %324 = vmatpush1.xpose.msra.mxu0 0.0
  %325 = vmatprep.subr.mxu0 0.0
  %326 = vmatpush1.xpose.msra.mxu0 0.0
  %327 = vmatprep.subr.mxu0 0.0
  %328 = vmatpush1.xpose.msra.mxu0 0.0
  %329 = vmatprep.subr.mxu0 0.0
  %330 = vmatpush1.xpose.msra.mxu0 0.0
  %331 = vmatprep.subr.mxu0 0.0
  %332 = vmatpush1.xpose.msra.mxu0 0.0
  %333 = vmatprep.subr.mxu0 0.0
  %334 = vmatpush1.xpose.msra.mxu0 0.0
  %335 = vmatprep.subr.mxu0 0.0
  %336 = vmatpush1.xpose.msra.mxu0 0.0
  %337 = vmatprep.subr.mxu0 0.0
  %338 = vmatpush1.xpose.msra.mxu0 0.0
  %339 = vmatprep.subr.mxu0 0.0
  %340 = vmatpush1.xpose.msra.mxu0 0.0
  %341 = vmatprep.subr.mxu0 0.0
  %342 = vmatpush1.xpose.msra.mxu0 0.0
  %343 = vmatprep.subr.mxu0 0.0
  %344 = vmatpush1.xpose.msra.mxu0 0.0
  %345 = vmatprep.subr.mxu0 0.0
  %346 = vmatpush1.xpose.msra.mxu0 0.0
  %347 = vmatprep.subr.mxu0 0.0
  %348 = vmatpush1.xpose.msra.mxu0 0.0
  %349 = vmatprep.subr.mxu0 0.0
  %350 = vmatpush1.xpose.msra.mxu0 0.0
  %351 = vmatprep.subr.mxu0 0.0
  %352 = vmatpush1.xpose.msra.mxu0 0.0
  %353 = vmatprep.subr.mxu0 0.0
  %354 = vmatpush1.xpose.msra.mxu0 0.0
  %355 = vmatprep.subr.mxu0 0.0
  %356 = vmatpush1.xpose.msra.mxu0 0.0
  %357 = vmatprep.subr.mxu0 0.0
  %358 = vmatpush1.xpose.msra.mxu0 0.0
  %359 = vmatprep.subr.mxu0 0.0
  %360 = vmatpush1.xpose.msra.mxu0 0.0
  %361 = vmatprep.subr.mxu0 0.0
  %362 = vmatpush1.xpose.msra.mxu0 0.0
  %363 = vmatprep.subr.mxu0 0.0
  %364 = vmatpush1.xpose.msra.mxu0 0.0
  %365 = vmatprep.subr.mxu0 0.0
  %366 = vmatpush1.xpose.msra.mxu0 0.0
  %367 = vmatprep.subr.mxu0 0.0
  %368 = vmatpush1.xpose.msra.mxu0 0.0
  %369 = vmatprep.subr.mxu0 0.0
  %370 = vmatpush1.xpose.msra.mxu0 0.0
  %371 = vmatprep.subr.mxu0 0.0
  %372 = vmatpush1.xpose.msra.mxu0 0.0
  %373 = vmatprep.subr.mxu0 0.0
  %374 = vmatpush1.xpose.msra.mxu0 0.0
  %375 = vmatprep.mubr.f32.mxu0 0.0
  %376 = vmatmul.mubr.f32.gmra.mrb[0].mxu0 %v309
  %v377 = vpop.f32.mrb[0].mxu0
  %v378 = vadd.f32 0.0, %v377
  %v379 = vpop.f32.mrb[0].mxu0
  %380 = vdwg.mxu0
  %v382 = vsel %vm307, %v302, 0
  %384 = vmatprep.subr.mxu0 0.0
  %385 = vmatpush1.xpose.msra.mxu0 %v382
  %386 = vmatprep.subr.mxu0 0.0
  %387 = vmatpush1.xpose.msra.mxu0 0.0
  %388 = vmatprep.subr.mxu0 0.0
  %389 = vmatpush1.xpose.msra.mxu0 0.0
  %390 = vmatprep.subr.mxu0 0.0
  %391 = vmatpush1.xpose.msra.mxu0 0.0
  %392 = vmatprep.subr.mxu0 0.0
  %393 = vmatpush1.xpose.msra.mxu0 0.0
  %394 = vmatprep.subr.mxu0 0.0
  %395 = vmatpush1.xpose.msra.mxu0 0.0
  %396 = vmatprep.subr.mxu0 0.0
  %397 = vmatpush1.xpose.msra.mxu0 0.0
  %398 = vmatprep.subr.mxu0 0.0
  %399 = vmatpush1.xpose.msra.mxu0 0.0
  %400 = vmatprep.subr.mxu0 0.0
  %401 = vmatpush1.xpose.msra.mxu0 0.0
  %402 = vmatprep.subr.mxu0 0.0
  %403 = vmatpush1.xpose.msra.mxu0 0.0
  %404 = vmatprep.subr.mxu0 0.0
  %405 = vmatpush1.xpose.msra.mxu0 0.0
  %406 = vmatprep.subr.mxu0 0.0
  %407 = vmatpush1.xpose.msra.mxu0 0.0
  %408 = vmatprep.subr.mxu0 0.0
  %409 = vmatpush1.xpose.msra.mxu0 0.0
  %410 = vmatprep.subr.mxu0 0.0
  %411 = vmatpush1.xpose.msra.mxu0 0.0
  %412 = vmatprep.subr.mxu0 0.0
  %413 = vmatpush1.xpose.msra.mxu0 0.0
  %414 = vmatprep.subr.mxu0 0.0
  %415 = vmatpush1.xpose.msra.mxu0 0.0
  %416 = vmatprep.subr.mxu0 0.0
  %417 = vmatpush1.xpose.msra.mxu0 0.0
  %418 = vmatprep.subr.mxu0 0.0
  %419 = vmatpush1.xpose.msra.mxu0 0.0
  %420 = vmatprep.subr.mxu0 0.0
  %421 = vmatpush1.xpose.msra.mxu0 0.0
  %422 = vmatprep.subr.mxu0 0.0
  %423 = vmatpush1.xpose.msra.mxu0 0.0
  %424 = vmatprep.subr.mxu0 0.0
  %425 = vmatpush1.xpose.msra.mxu0 0.0
  %426 = vmatprep.subr.mxu0 0.0
  %427 = vmatpush1.xpose.msra.mxu0 0.0
  %428 = vmatprep.subr.mxu0 0.0
  %429 = vmatpush1.xpose.msra.mxu0 0.0
  %430 = vmatprep.subr.mxu0 0.0
  %431 = vmatpush1.xpose.msra.mxu0 0.0
  %432 = vmatprep.subr.mxu0 0.0
  %433 = vmatpush1.xpose.msra.mxu0 0.0
  %434 = vmatprep.subr.mxu0 0.0
  %435 = vmatpush1.xpose.msra.mxu0 0.0
  %436 = vmatprep.subr.mxu0 0.0
  %437 = vmatpush1.xpose.msra.mxu0 0.0
  %438 = vmatprep.subr.mxu0 0.0
  %439 = vmatpush1.xpose.msra.mxu0 0.0
  %440 = vmatprep.subr.mxu0 0.0
  %441 = vmatpush1.xpose.msra.mxu0 0.0
  %442 = vmatprep.subr.mxu0 0.0
  %443 = vmatpush1.xpose.msra.mxu0 0.0
  %444 = vmatprep.subr.mxu0 0.0
  %445 = vmatpush1.xpose.msra.mxu0 0.0
  %446 = vmatprep.subr.mxu0 0.0
  %447 = vmatpush1.xpose.msra.mxu0 0.0
  %448 = vmatprep.mubr.f32.mxu0 0.0
  %449 = vmatmul.mubr.f32.gmra.mrb[0].mxu0 %v382
  %v450 = vpop.f32.mrb[0].mxu0
  %v451 = vadd.f32 0.0, %v450
  %v452 = vpop.f32.mrb[0].mxu0
  %453 = vdwg.mxu0
  %v454 = vsel %vm169, %v378, -1e+30
  %v455 = vsel %vm169, %v451, -1e+30
  %v456 = vsel %vm307, %v454, -inf
  %457 = vmax.xlane.f32.xlu0 %v456
  %v458 = vpop.xlane.xlu0 %457
  %v459 = vsel %vm307, %v455, -inf
  %460 = vmax.xlane.f32.xlu0 %v459
  %v461 = vpop.xlane.xlu0 %460
  %v462 = vsub.f32 %v454, %v458
  %v463 = vsub.f32 %v455, %v461
  %v464 = vmul.f32 %v462, 1.442695
  %v465 = vpow.pop %v464
  %v466 = vmul.f32 %v463, 1.442695
  %v467 = vpow.pop %v466
  %v468 = vsel %vm307, %v465, 0.0
  %469 = vadd.xlane.f32.xlu0 %v468
  %v470 = vpop.xlane.xlu0 %469
  %v471 = vsel %vm307, %v467, 0.0
  %472 = vadd.xlane.f32.xlu0 %v471
  %v473 = vpop.xlane.xlu0 %472
  %v474 = vrcp.pop %v470
  %v475 = vrcp.pop %v473
  %v476 = vmul.f32 %v465, %v474
  %v477 = vmul.f32 %v467, %v475
  %v479 = vsel %vm307, %v476, 0
  %481 = vmatprep.subr.mxu0 0.0
  %482 = vmatpush1.msra.mxu0 %v293
  %483 = vmatprep.subr.mxu0 0.0
  %484 = vmatpush1.msra.mxu0 0.0
  %485 = vmatprep.subr.mxu0 0.0
  %486 = vmatpush1.msra.mxu0 0.0
  %487 = vmatprep.subr.mxu0 0.0
  %488 = vmatpush1.msra.mxu0 0.0
  %489 = vmatprep.subr.mxu0 0.0
  %490 = vmatpush1.msra.mxu0 0.0
  %491 = vmatprep.subr.mxu0 0.0
  %492 = vmatpush1.msra.mxu0 0.0
  %493 = vmatprep.subr.mxu0 0.0
  %494 = vmatpush1.msra.mxu0 0.0
  %495 = vmatprep.subr.mxu0 0.0
  %496 = vmatpush1.msra.mxu0 0.0
  %497 = vmatprep.subr.mxu0 0.0
  %498 = vmatpush1.msra.mxu0 0.0
  %499 = vmatprep.subr.mxu0 0.0
  %500 = vmatpush1.msra.mxu0 0.0
  %501 = vmatprep.subr.mxu0 0.0
  %502 = vmatpush1.msra.mxu0 0.0
  %503 = vmatprep.subr.mxu0 0.0
  %504 = vmatpush1.msra.mxu0 0.0
  %505 = vmatprep.subr.mxu0 0.0
  %506 = vmatpush1.msra.mxu0 0.0
  %507 = vmatprep.subr.mxu0 0.0
  %508 = vmatpush1.msra.mxu0 0.0
  %509 = vmatprep.subr.mxu0 0.0
  %510 = vmatpush1.msra.mxu0 0.0
  %511 = vmatprep.subr.mxu0 0.0
  %512 = vmatpush1.msra.mxu0 0.0
  %513 = vmatprep.subr.mxu0 0.0
  %514 = vmatpush1.msra.mxu0 0.0
  %515 = vmatprep.subr.mxu0 0.0
  %516 = vmatpush1.msra.mxu0 0.0
  %517 = vmatprep.subr.mxu0 0.0
  %518 = vmatpush1.msra.mxu0 0.0
  %519 = vmatprep.subr.mxu0 0.0
  %520 = vmatpush1.msra.mxu0 0.0
  %521 = vmatprep.subr.mxu0 0.0
  %522 = vmatpush1.msra.mxu0 0.0
  %523 = vmatprep.subr.mxu0 0.0
  %524 = vmatpush1.msra.mxu0 0.0
  %525 = vmatprep.subr.mxu0 0.0
  %526 = vmatpush1.msra.mxu0 0.0
  %527 = vmatprep.subr.mxu0 0.0
  %528 = vmatpush1.msra.mxu0 0.0
  %529 = vmatprep.subr.mxu0 0.0
  %530 = vmatpush1.msra.mxu0 0.0
  %531 = vmatprep.subr.mxu0 0.0
  %532 = vmatpush1.msra.mxu0 0.0
  %533 = vmatprep.subr.mxu0 0.0
  %534 = vmatpush1.msra.mxu0 0.0
  %535 = vmatprep.subr.mxu0 0.0
  %536 = vmatpush1.msra.mxu0 0.0
  %537 = vmatprep.subr.mxu0 0.0
  %538 = vmatpush1.msra.mxu0 0.0
  %539 = vmatprep.subr.mxu0 0.0
  %540 = vmatpush1.msra.mxu0 0.0
  %541 = vmatprep.subr.mxu0 0.0
  %542 = vmatpush1.msra.mxu0 0.0
  %543 = vmatprep.subr.mxu0 0.0
  %544 = vmatpush1.msra.mxu0 0.0
  %545 = vmatprep.mubr.f32.mxu0 0.0
  %546 = vmatmul.mubr.f32.gmra.mrb[0].mxu0 %v479
  %v547 = vpop.f32.mrb[0].mxu0
  %v548 = vadd.f32 0.0, %v547
  %v549 = vpop.f32.mrb[0].mxu0
  %550 = vdwg.mxu0
  %v552 = vsel %vm307, %v477, 0
  %554 = vmatprep.subr.mxu0 0.0
  %555 = vmatpush1.msra.mxu0 %v298
  %556 = vmatprep.subr.mxu0 0.0
  %557 = vmatpush1.msra.mxu0 0.0
  %558 = vmatprep.subr.mxu0 0.0
  %559 = vmatpush1.msra.mxu0 0.0
  %560 = vmatprep.subr.mxu0 0.0
  %561 = vmatpush1.msra.mxu0 0.0
  %562 = vmatprep.subr.mxu0 0.0
  %563 = vmatpush1.msra.mxu0 0.0
  %564 = vmatprep.subr.mxu0 0.0
  %565 = vmatpush1.msra.mxu0 0.0
  %566 = vmatprep.subr.mxu0 0.0
  %567 = vmatpush1.msra.mxu0 0.0
  %568 = vmatprep.subr.mxu0 0.0
  %569 = vmatpush1.msra.mxu0 0.0
  %570 = vmatprep.subr.mxu0 0.0
  %571 = vmatpush1.msra.mxu0 0.0
  %572 = vmatprep.subr.mxu0 0.0
  %573 = vmatpush1.msra.mxu0 0.0
  %574 = vmatprep.subr.mxu0 0.0
  %575 = vmatpush1.msra.mxu0 0.0
  %576 = vmatprep.subr.mxu0 0.0
  %577 = vmatpush1.msra.mxu0 0.0
  %578 = vmatprep.subr.mxu0 0.0
  %579 = vmatpush1.msra.mxu0 0.0
  %580 = vmatprep.subr.mxu0 0.0
  %581 = vmatpush1.msra.mxu0 0.0
  %582 = vmatprep.subr.mxu0 0.0
  %583 = vmatpush1.msra.mxu0 0.0
  %584 = vmatprep.subr.mxu0 0.0
  %585 = vmatpush1.msra.mxu0 0.0
  %586 = vmatprep.subr.mxu0 0.0
  %587 = vmatpush1.msra.mxu0 0.0
  %588 = vmatprep.subr.mxu0 0.0
  %589 = vmatpush1.msra.mxu0 0.0
  %590 = vmatprep.subr.mxu0 0.0
  %591 = vmatpush1.msra.mxu0 0.0
  %592 = vmatprep.subr.mxu0 0.0
  %593 = vmatpush1.msra.mxu0 0.0
  %594 = vmatprep.subr.mxu0 0.0
  %595 = vmatpush1.msra.mxu0 0.0
  %596 = vmatprep.subr.mxu0 0.0
  %597 = vmatpush1.msra.mxu0 0.0
  %598 = vmatprep.subr.mxu0 0.0
  %599 = vmatpush1.msra.mxu0 0.0
  %600 = vmatprep.subr.mxu0 0.0
  %601 = vmatpush1.msra.mxu0 0.0
  %602 = vmatprep.subr.mxu0 0.0
  %603 = vmatpush1.msra.mxu0 0.0
  %604 = vmatprep.subr.mxu0 0.0
  %605 = vmatpush1.msra.mxu0 0.0
  %606 = vmatprep.subr.mxu0 0.0
  %607 = vmatpush1.msra.mxu0 0.0
  %608 = vmatprep.subr.mxu0 0.0
  %609 = vmatpush1.msra.mxu0 0.0
  %610 = vmatprep.subr.mxu0 0.0
  %611 = vmatpush1.msra.mxu0 0.0
  %612 = vmatprep.subr.mxu0 0.0
  %613 = vmatpush1.msra.mxu0 0.0
  %614 = vmatprep.subr.mxu0 0.0
  %615 = vmatpush1.msra.mxu0 0.0
  %616 = vmatprep.subr.mxu0 0.0
  %617 = vmatpush1.msra.mxu0 0.0
  %618 = vmatprep.mubr.f32.mxu0 0.0
  %619 = vmatmul.mubr.f32.gmra.mrb[0].mxu0 %v552
  %v620 = vpop.f32.mrb[0].mxu0
  %v621 = vadd.f32 0.0, %v620
  %v622 = vpop.f32.mrb[0].mxu0
  %623 = vdwg.mxu0
  %624 = vrot.lane.b32.xlu0 %v301, 120
  %v625 = vpop.permute.xlu0 %624
  %v626 = vsel %vm307, %v625, 0
  %628 = vmatprep.subr.mxu0 0.0
  %629 = vmatpush1.xpose.msra.mxu0 %v626
  %630 = vmatprep.subr.mxu0 0.0
  %631 = vmatpush1.xpose.msra.mxu0 0.0
  %632 = vmatprep.subr.mxu0 0.0
  %633 = vmatpush1.xpose.msra.mxu0 0.0
  %634 = vmatprep.subr.mxu0 0.0
  %635 = vmatpush1.xpose.msra.mxu0 0.0
  %636 = vmatprep.subr.mxu0 0.0
  %637 = vmatpush1.xpose.msra.mxu0 0.0
  %638 = vmatprep.subr.mxu0 0.0
  %639 = vmatpush1.xpose.msra.mxu0 0.0
  %640 = vmatprep.subr.mxu0 0.0
  %641 = vmatpush1.xpose.msra.mxu0 0.0
  %642 = vmatprep.subr.mxu0 0.0
  %643 = vmatpush1.xpose.msra.mxu0 0.0
  %644 = vmatprep.subr.mxu0 0.0
  %645 = vmatpush1.xpose.msra.mxu0 0.0
  %646 = vmatprep.subr.mxu0 0.0
  %647 = vmatpush1.xpose.msra.mxu0 0.0
  %648 = vmatprep.subr.mxu0 0.0
  %649 = vmatpush1.xpose.msra.mxu0 0.0
  %650 = vmatprep.subr.mxu0 0.0
  %651 = vmatpush1.xpose.msra.mxu0 0.0
  %652 = vmatprep.subr.mxu0 0.0
  %653 = vmatpush1.xpose.msra.mxu0 0.0
  %654 = vmatprep.subr.mxu0 0.0
  %655 = vmatpush1.xpose.msra.mxu0 0.0
  %656 = vmatprep.subr.mxu0 0.0
  %657 = vmatpush1.xpose.msra.mxu0 0.0
  %658 = vmatprep.subr.mxu0 0.0
  %659 = vmatpush1.xpose.msra.mxu0 0.0
  %660 = vmatprep.subr.mxu0 0.0
  %661 = vmatpush1.xpose.msra.mxu0 0.0
  %662 = vmatprep.subr.mxu0 0.0
  %663 = vmatpush1.xpose.msra.mxu0 0.0
  %664 = vmatprep.subr.mxu0 0.0
  %665 = vmatpush1.xpose.msra.mxu0 0.0
  %666 = vmatprep.subr.mxu0 0.0
  %667 = vmatpush1.xpose.msra.mxu0 0.0
  %668 = vmatprep.subr.mxu0 0.0
  %669 = vmatpush1.xpose.msra.mxu0 0.0
  %670 = vmatprep.subr.mxu0 0.0
  %671 = vmatpush1.xpose.msra.mxu0 0.0
  %672 = vmatprep.subr.mxu0 0.0
  %673 = vmatpush1.xpose.msra.mxu0 0.0
  %674 = vmatprep.subr.mxu0 0.0
  %675 = vmatpush1.xpose.msra.mxu0 0.0
  %676 = vmatprep.subr.mxu0 0.0
  %677 = vmatpush1.xpose.msra.mxu0 0.0
  %678 = vmatprep.subr.mxu0 0.0
  %679 = vmatpush1.xpose.msra.mxu0 0.0
  %680 = vmatprep.subr.mxu0 0.0
  %681 = vmatpush1.xpose.msra.mxu0 0.0
  %682 = vmatprep.subr.mxu0 0.0
  %683 = vmatpush1.xpose.msra.mxu0 0.0
  %684 = vmatprep.subr.mxu0 0.0
  %685 = vmatpush1.xpose.msra.mxu0 0.0
  %686 = vmatprep.subr.mxu0 0.0
  %687 = vmatpush1.xpose.msra.mxu0 0.0
  %688 = vmatprep.subr.mxu0 0.0
  %689 = vmatpush1.xpose.msra.mxu0 0.0
  %690 = vmatprep.subr.mxu0 0.0
  %691 = vmatpush1.xpose.msra.mxu0 0.0
  %692 = vmatprep.mubr.f32.mxu0 0.0
  %693 = vmatmul.mubr.f32.gmra.mrb[0].mxu0 %v626
  %v694 = vpop.f32.mrb[0].mxu0
  %v695 = vadd.f32 0.0, %v694
  %v696 = vpop.f32.mrb[0].mxu0
  %697 = vdwg.mxu0
  %698 = vrot.lane.b32.xlu0 %v302, 120
  %v699 = vpop.permute.xlu0 %698
  %v700 = vsel %vm307, %v699, 0
  %702 = vmatprep.subr.mxu0 0.0
  %703 = vmatpush1.xpose.msra.mxu0 %v700
  %704 = vmatprep.subr.mxu0 0.0
  %705 = vmatpush1.xpose.msra.mxu0 0.0
  %706 = vmatprep.subr.mxu0 0.0
  %707 = vmatpush1.xpose.msra.mxu0 0.0
  %708 = vmatprep.subr.mxu0 0.0
  %709 = vmatpush1.xpose.msra.mxu0 0.0
  %710 = vmatprep.subr.mxu0 0.0
  %711 = vmatpush1.xpose.msra.mxu0 0.0
  %712 = vmatprep.subr.mxu0 0.0
  %713 = vmatpush1.xpose.msra.mxu0 0.0
  %714 = vmatprep.subr.mxu0 0.0
  %715 = vmatpush1.xpose.msra.mxu0 0.0
  %716 = vmatprep.subr.mxu0 0.0
  %717 = vmatpush1.xpose.msra.mxu0 0.0
  %718 = vmatprep.subr.mxu0 0.0
  %719 = vmatpush1.xpose.msra.mxu0 0.0
  %720 = vmatprep.subr.mxu0 0.0
  %721 = vmatpush1.xpose.msra.mxu0 0.0
  %722 = vmatprep.subr.mxu0 0.0
  %723 = vmatpush1.xpose.msra.mxu0 0.0
  %724 = vmatprep.subr.mxu0 0.0
  %725 = vmatpush1.xpose.msra.mxu0 0.0
  %726 = vmatprep.subr.mxu0 0.0
  %727 = vmatpush1.xpose.msra.mxu0 0.0
  %728 = vmatprep.subr.mxu0 0.0
  %729 = vmatpush1.xpose.msra.mxu0 0.0
  %730 = vmatprep.subr.mxu0 0.0
  %731 = vmatpush1.xpose.msra.mxu0 0.0
  %732 = vmatprep.subr.mxu0 0.0
  %733 = vmatpush1.xpose.msra.mxu0 0.0
  %734 = vmatprep.subr.mxu0 0.0
  %735 = vmatpush1.xpose.msra.mxu0 0.0
  %736 = vmatprep.subr.mxu0 0.0
  %737 = vmatpush1.xpose.msra.mxu0 0.0
  %738 = vmatprep.subr.mxu0 0.0
  %739 = vmatpush1.xpose.msra.mxu0 0.0
  %740 = vmatprep.subr.mxu0 0.0
  %741 = vmatpush1.xpose.msra.mxu0 0.0
  %742 = vmatprep.subr.mxu0 0.0
  %743 = vmatpush1.xpose.msra.mxu0 0.0
  %744 = vmatprep.subr.mxu0 0.0
  %745 = vmatpush1.xpose.msra.mxu0 0.0
  %746 = vmatprep.subr.mxu0 0.0
  %747 = vmatpush1.xpose.msra.mxu0 0.0
  %748 = vmatprep.subr.mxu0 0.0
  %749 = vmatpush1.xpose.msra.mxu0 0.0
  %750 = vmatprep.subr.mxu0 0.0
  %751 = vmatpush1.xpose.msra.mxu0 0.0
  %752 = vmatprep.subr.mxu0 0.0
  %753 = vmatpush1.xpose.msra.mxu0 0.0
  %754 = vmatprep.subr.mxu0 0.0
  %755 = vmatpush1.xpose.msra.mxu0 0.0
  %756 = vmatprep.subr.mxu0 0.0
  %757 = vmatpush1.xpose.msra.mxu0 0.0
  %758 = vmatprep.subr.mxu0 0.0
  %759 = vmatpush1.xpose.msra.mxu0 0.0
  %760 = vmatprep.subr.mxu0 0.0
  %761 = vmatpush1.xpose.msra.mxu0 0.0
  %762 = vmatprep.subr.mxu0 0.0
  %763 = vmatpush1.xpose.msra.mxu0 0.0
  %764 = vmatprep.subr.mxu0 0.0
  %765 = vmatpush1.xpose.msra.mxu0 0.0
  %766 = vmatprep.mubr.f32.mxu0 0.0
  %767 = vmatmul.mubr.f32.gmra.mrb[0].mxu0 %v700
  %v768 = vpop.f32.mrb[0].mxu0
  %v769 = vadd.f32 0.0, %v768
  %v770 = vpop.f32.mrb[0].mxu0
  %771 = vdwg.mxu0
  %v772 = vsel %vm169, %v695, -1e+30
  %v773 = vsel %vm169, %v769, -1e+30
  %v774 = vsel %vm307, %v772, -inf
  %775 = vmax.xlane.f32.xlu0 %v774
  %v776 = vpop.xlane.xlu0 %775
  %v777 = vsel %vm307, %v773, -inf
  %778 = vmax.xlane.f32.xlu0 %v777
  %v779 = vpop.xlane.xlu0 %778
  %v780 = vsub.f32 %v772, %v776
  %v781 = vsub.f32 %v773, %v779
  %v782 = vmul.f32 %v780, 1.442695
  %v783 = vpow.pop %v782
  %v784 = vmul.f32 %v781, 1.442695
  %v785 = vpow.pop %v784
  %v786 = vsel %vm307, %v783, 0.0
  %787 = vadd.xlane.f32.xlu0 %v786
  %v788 = vpop.xlane.xlu0 %787
  %v789 = vsel %vm307, %v785, 0.0
  %790 = vadd.xlane.f32.xlu0 %v789
  %v791 = vpop.xlane.xlu0 %790
  %v792 = vrcp.pop %v788
  %v793 = vrcp.pop %v791
  %v794 = vmul.f32 %v783, %v792
  %v795 = vmul.f32 %v785, %v793
  %797 = vrot.lane.b32.xlu0 %v293, 120
  %v798 = vpop.permute.xlu0 %797
  %v801 = vsel %vm307, %v794, 0
  %803 = vmatprep.subr.mxu0 0.0
  %804 = vmatpush1.msra.mxu0 %v798
  %805 = vmatprep.subr.mxu0 0.0
  %806 = vmatpush1.msra.mxu0 0.0
  %807 = vmatprep.subr.mxu0 0.0
  %808 = vmatpush1.msra.mxu0 0.0
  %809 = vmatprep.subr.mxu0 0.0
  %810 = vmatpush1.msra.mxu0 0.0
  %811 = vmatprep.subr.mxu0 0.0
  %812 = vmatpush1.msra.mxu0 0.0
  %813 = vmatprep.subr.mxu0 0.0
  %814 = vmatpush1.msra.mxu0 0.0
  %815 = vmatprep.subr.mxu0 0.0
  %816 = vmatpush1.msra.mxu0 0.0
  %817 = vmatprep.subr.mxu0 0.0
  %818 = vmatpush1.msra.mxu0 0.0
  %819 = vmatprep.subr.mxu0 0.0
  %820 = vmatpush1.msra.mxu0 0.0
  %821 = vmatprep.subr.mxu0 0.0
  %822 = vmatpush1.msra.mxu0 0.0
  %823 = vmatprep.subr.mxu0 0.0
  %824 = vmatpush1.msra.mxu0 0.0
  %825 = vmatprep.subr.mxu0 0.0
  %826 = vmatpush1.msra.mxu0 0.0
  %827 = vmatprep.subr.mxu0 0.0
  %828 = vmatpush1.msra.mxu0 0.0
  %829 = vmatprep.subr.mxu0 0.0
  %830 = vmatpush1.msra.mxu0 0.0
  %831 = vmatprep.subr.mxu0 0.0
  %832 = vmatpush1.msra.mxu0 0.0
  %833 = vmatprep.subr.mxu0 0.0
  %834 = vmatpush1.msra.mxu0 0.0
  %835 = vmatprep.subr.mxu0 0.0
  %836 = vmatpush1.msra.mxu0 0.0
  %837 = vmatprep.subr.mxu0 0.0
  %838 = vmatpush1.msra.mxu0 0.0
  %839 = vmatprep.subr.mxu0 0.0
  %840 = vmatpush1.msra.mxu0 0.0
  %841 = vmatprep.subr.mxu0 0.0
  %842 = vmatpush1.msra.mxu0 0.0
  %843 = vmatprep.subr.mxu0 0.0
  %844 = vmatpush1.msra.mxu0 0.0
  %845 = vmatprep.subr.mxu0 0.0
  %846 = vmatpush1.msra.mxu0 0.0
  %847 = vmatprep.subr.mxu0 0.0
  %848 = vmatpush1.msra.mxu0 0.0
  %849 = vmatprep.subr.mxu0 0.0
  %850 = vmatpush1.msra.mxu0 0.0
  %851 = vmatprep.subr.mxu0 0.0
  %852 = vmatpush1.msra.mxu0 0.0
  %853 = vmatprep.subr.mxu0 0.0
  %854 = vmatpush1.msra.mxu0 0.0
  %855 = vmatprep.subr.mxu0 0.0
  %856 = vmatpush1.msra.mxu0 0.0
  %857 = vmatprep.subr.mxu0 0.0
  %858 = vmatpush1.msra.mxu0 0.0
  %859 = vmatprep.subr.mxu0 0.0
  %860 = vmatpush1.msra.mxu0 0.0
  %861 = vmatprep.subr.mxu0 0.0
  %862 = vmatpush1.msra.mxu0 0.0
  %863 = vmatprep.subr.mxu0 0.0
  %864 = vmatpush1.msra.mxu0 0.0
  %865 = vmatprep.subr.mxu0 0.0
  %866 = vmatpush1.msra.mxu0 0.0
  %867 = vmatprep.mubr.f32.mxu0 0.0
  %868 = vmatmul.mubr.f32.gmra.mrb[0].mxu0 %v801
  %v869 = vpop.f32.mrb[0].mxu0
  %v870 = vadd.f32 0.0, %v869
  %v871 = vpop.f32.mrb[0].mxu0
  %872 = vdwg.mxu0
  %874 = vrot.lane.b32.xlu0 %v298, 120
  %v875 = vpop.permute.xlu0 %874
  %v878 = vsel %vm307, %v795, 0
  %880 = vmatprep.subr.mxu0 0.0
  %881 = vmatpush1.msra.mxu0 %v875
  %882 = vmatprep.subr.mxu0 0.0
  %883 = vmatpush1.msra.mxu0 0.0
  %884 = vmatprep.subr.mxu0 0.0
  %885 = vmatpush1.msra.mxu0 0.0
  %886 = vmatprep.subr.mxu0 0.0
  %887 = vmatpush1.msra.mxu0 0.0
  %888 = vmatprep.subr.mxu0 0.0
  %889 = vmatpush1.msra.mxu0 0.0
  %890 = vmatprep.subr.mxu0 0.0
  %891 = vmatpush1.msra.mxu0 0.0
  %892 = vmatprep.subr.mxu0 0.0
  %893 = vmatpush1.msra.mxu0 0.0
  %894 = vmatprep.subr.mxu0 0.0
  %895 = vmatpush1.msra.mxu0 0.0
  %896 = vmatprep.subr.mxu0 0.0
  %897 = vmatpush1.msra.mxu0 0.0
  %898 = vmatprep.subr.mxu0 0.0
  %899 = vmatpush1.msra.mxu0 0.0
  %900 = vmatprep.subr.mxu0 0.0
  %901 = vmatpush1.msra.mxu0 0.0
  %902 = vmatprep.subr.mxu0 0.0
  %903 = vmatpush1.msra.mxu0 0.0
  %904 = vmatprep.subr.mxu0 0.0
  %905 = vmatpush1.msra.mxu0 0.0
  %906 = vmatprep.subr.mxu0 0.0
  %907 = vmatpush1.msra.mxu0 0.0
  %908 = vmatprep.subr.mxu0 0.0
  %909 = vmatpush1.msra.mxu0 0.0
  %910 = vmatprep.subr.mxu0 0.0
  %911 = vmatpush1.msra.mxu0 0.0
  %912 = vmatprep.subr.mxu0 0.0
  %913 = vmatpush1.msra.mxu0 0.0
  %914 = vmatprep.subr.mxu0 0.0
  %915 = vmatpush1.msra.mxu0 0.0
  %916 = vmatprep.subr.mxu0 0.0
  %917 = vmatpush1.msra.mxu0 0.0
  %918 = vmatprep.subr.mxu0 0.0
  %919 = vmatpush1.msra.mxu0 0.0
  %920 = vmatprep.subr.mxu0 0.0
  %921 = vmatpush1.msra.mxu0 0.0
  %922 = vmatprep.subr.mxu0 0.0
  %923 = vmatpush1.msra.mxu0 0.0
  %924 = vmatprep.subr.mxu0 0.0
  %925 = vmatpush1.msra.mxu0 0.0
  %926 = vmatprep.subr.mxu0 0.0
  %927 = vmatpush1.msra.mxu0 0.0
  %928 = vmatprep.subr.mxu0 0.0
  %929 = vmatpush1.msra.mxu0 0.0
  %930 = vmatprep.subr.mxu0 0.0
  %931 = vmatpush1.msra.mxu0 0.0
  %932 = vmatprep.subr.mxu0 0.0
  %933 = vmatpush1.msra.mxu0 0.0
  %934 = vmatprep.subr.mxu0 0.0
  %935 = vmatpush1.msra.mxu0 0.0
  %936 = vmatprep.subr.mxu0 0.0
  %937 = vmatpush1.msra.mxu0 0.0
  %938 = vmatprep.subr.mxu0 0.0
  %939 = vmatpush1.msra.mxu0 0.0
  %940 = vmatprep.subr.mxu0 0.0
  %941 = vmatpush1.msra.mxu0 0.0
  %942 = vmatprep.subr.mxu0 0.0
  %943 = vmatpush1.msra.mxu0 0.0
  %944 = vmatprep.mubr.f32.mxu0 0.0
  %945 = vmatmul.mubr.f32.gmra.mrb[0].mxu0 %v878
  %v946 = vpop.f32.mrb[0].mxu0
  %v947 = vadd.f32 0.0, %v946
  %v948 = vpop.f32.mrb[0].mxu0
  %949 = vdwg.mxu0
  %v951 = vsel %vm307, %v870, 0
  %v954 = vsel %vm307, %v947, 0
  %956 = vmatprep.subr.mxu0 0.0
  %957 = vmatpush1.msra.mxu0 %v304
  %958 = vmatprep.subr.mxu0 0.0
  %959 = vmatpush1.msra.mxu0 0.0
  %960 = vmatprep.subr.mxu0 0.0
  %961 = vmatpush1.msra.mxu0 0.0
  %962 = vmatprep.subr.mxu0 0.0
  %963 = vmatpush1.msra.mxu0 0.0
  %964 = vmatprep.subr.mxu0 0.0
  %965 = vmatpush1.msra.mxu0 0.0
  %966 = vmatprep.subr.mxu0 0.0
  %967 = vmatpush1.msra.mxu0 0.0
  %968 = vmatprep.subr.mxu0 0.0
  %969 = vmatpush1.msra.mxu0 0.0
  %970 = vmatprep.subr.mxu0 0.0
  %971 = vmatpush1.msra.mxu0 0.0
  %972 = vmatprep.subr.mxu0 0.0
  %973 = vmatpush1.msra.mxu0 0.0
  %974 = vmatprep.subr.mxu0 0.0
  %975 = vmatpush1.msra.mxu0 0.0
  %976 = vmatprep.subr.mxu0 0.0
  %977 = vmatpush1.msra.mxu0 0.0
  %978 = vmatprep.subr.mxu0 0.0
  %979 = vmatpush1.msra.mxu0 0.0
  %980 = vmatprep.subr.mxu0 0.0
  %981 = vmatpush1.msra.mxu0 0.0
  %982 = vmatprep.subr.mxu0 0.0
  %983 = vmatpush1.msra.mxu0 0.0
  %984 = vmatprep.subr.mxu0 0.0
  %985 = vmatpush1.msra.mxu0 0.0
  %986 = vmatprep.subr.mxu0 0.0
  %987 = vmatpush1.msra.mxu0 0.0
  %988 = vmatprep.subr.mxu0 0.0
  %989 = vmatpush1.msra.mxu0 0.0
  %990 = vmatprep.subr.mxu0 0.0
  %991 = vmatpush1.msra.mxu0 0.0
  %992 = vmatprep.subr.mxu0 0.0
  %993 = vmatpush1.msra.mxu0 0.0
  %994 = vmatprep.subr.mxu0 0.0
  %995 = vmatpush1.msra.mxu0 0.0
  %996 = vmatprep.subr.mxu0 0.0
  %997 = vmatpush1.msra.mxu0 0.0
  %998 = vmatprep.subr.mxu0 0.0
  %999 = vmatpush1.msra.mxu0 0.0
  %1000 = vmatprep.subr.mxu0 0.0
  %1001 = vmatpush1.msra.mxu0 0.0
  %1002 = vmatprep.subr.mxu0 0.0
  %1003 = vmatpush1.msra.mxu0 0.0
  %1004 = vmatprep.subr.mxu0 0.0
  %1005 = vmatpush1.msra.mxu0 0.0
  %1006 = vmatprep.subr.mxu0 0.0
  %1007 = vmatpush1.msra.mxu0 0.0
  %1008 = vmatprep.subr.mxu0 0.0
  %1009 = vmatpush1.msra.mxu0 0.0
  %1010 = vmatprep.subr.mxu0 0.0
  %1011 = vmatpush1.msra.mxu0 0.0
  %1012 = vmatprep.subr.mxu0 0.0
  %1013 = vmatpush1.msra.mxu0 0.0
  %1014 = vmatprep.subr.mxu0 0.0
  %1015 = vmatpush1.msra.mxu0 0.0
  %1016 = vmatprep.subr.mxu0 0.0
  %1017 = vmatpush1.msra.mxu0 0.0
  %1018 = vmatprep.subr.mxu0 0.0
  %1019 = vmatpush1.msra.mxu0 0.0
  %1020 = vmatprep.mubr.f32.mxu0 0.0
  %1021 = vmatmul.mubr.f32.gmra.mrb[0].mxu0 %v951
  %v1022 = vpop.f32.mrb[0].mxu0
  %v1023 = vadd.f32 0.0, %v1022
  %v1024 = vpop.f32.mrb[0].mxu0
  %1025 = vmatprep.mubr.f32.mxu0 0.0
  %1026 = vmatmul.mubr.f32.gmra.mrb[0].mxu0 %v954
  %v1027 = vpop.f32.mrb[0].mxu0
  %v1028 = vadd.f32 0.0, %v1027
  %v1029 = vpop.f32.mrb[0].mxu0
  %1030 = vdwg.mxu0
  %v1032 = vsel %vm307, %v548, 0
  %v1035 = vsel %vm307, %v621, 0
  %1037 = vmatprep.subr.mxu0 0.0
  %1038 = vmatpush1.msra.mxu0 %v303
  %1039 = vmatprep.subr.mxu0 0.0
  %1040 = vmatpush1.msra.mxu0 0.0
  %1041 = vmatprep.subr.mxu0 0.0
  %1042 = vmatpush1.msra.mxu0 0.0
  %1043 = vmatprep.subr.mxu0 0.0
  %1044 = vmatpush1.msra.mxu0 0.0
  %1045 = vmatprep.subr.mxu0 0.0
  %1046 = vmatpush1.msra.mxu0 0.0
  %1047 = vmatprep.subr.mxu0 0.0
  %1048 = vmatpush1.msra.mxu0 0.0
  %1049 = vmatprep.subr.mxu0 0.0
  %1050 = vmatpush1.msra.mxu0 0.0
  %1051 = vmatprep.subr.mxu0 0.0
  %1052 = vmatpush1.msra.mxu0 0.0
  %1053 = vmatprep.subr.mxu0 0.0
  %1054 = vmatpush1.msra.mxu0 0.0
  %1055 = vmatprep.subr.mxu0 0.0
  %1056 = vmatpush1.msra.mxu0 0.0
  %1057 = vmatprep.subr.mxu0 0.0
  %1058 = vmatpush1.msra.mxu0 0.0
  %1059 = vmatprep.subr.mxu0 0.0
  %1060 = vmatpush1.msra.mxu0 0.0
  %1061 = vmatprep.subr.mxu0 0.0
  %1062 = vmatpush1.msra.mxu0 0.0
  %1063 = vmatprep.subr.mxu0 0.0
  %1064 = vmatpush1.msra.mxu0 0.0
  %1065 = vmatprep.subr.mxu0 0.0
  %1066 = vmatpush1.msra.mxu0 0.0
  %1067 = vmatprep.subr.mxu0 0.0
  %1068 = vmatpush1.msra.mxu0 0.0
  %1069 = vmatprep.subr.mxu0 0.0
  %1070 = vmatpush1.msra.mxu0 0.0
  %1071 = vmatprep.subr.mxu0 0.0
  %1072 = vmatpush1.msra.mxu0 0.0
  %1073 = vmatprep.subr.mxu0 0.0
  %1074 = vmatpush1.msra.mxu0 0.0
  %1075 = vmatprep.subr.mxu0 0.0
  %1076 = vmatpush1.msra.mxu0 0.0
  %1077 = vmatprep.subr.mxu0 0.0
  %1078 = vmatpush1.msra.mxu0 0.0
  %1079 = vmatprep.subr.mxu0 0.0
  %1080 = vmatpush1.msra.mxu0 0.0
  %1081 = vmatprep.subr.mxu0 0.0
  %1082 = vmatpush1.msra.mxu0 0.0
  %1083 = vmatprep.subr.mxu0 0.0
  %1084 = vmatpush1.msra.mxu0 0.0
  %1085 = vmatprep.subr.mxu0 0.0
  %1086 = vmatpush1.msra.mxu0 0.0
  %1087 = vmatprep.subr.mxu0 0.0
  %1088 = vmatpush1.msra.mxu0 0.0
  %1089 = vmatprep.subr.mxu0 0.0
  %1090 = vmatpush1.msra.mxu0 0.0
  %1091 = vmatprep.subr.mxu0 0.0
  %1092 = vmatpush1.msra.mxu0 0.0
  %1093 = vmatprep.subr.mxu0 0.0
  %1094 = vmatpush1.msra.mxu0 0.0
  %1095 = vmatprep.subr.mxu0 0.0
  %1096 = vmatpush1.msra.mxu0 0.0
  %1097 = vmatprep.subr.mxu0 0.0
  %1098 = vmatpush1.msra.mxu0 0.0
  %1099 = vmatprep.subr.mxu0 0.0
  %1100 = vmatpush1.msra.mxu0 0.0
  %1101 = vmatprep.mubr.f32.mxu0 0.0
  %1102 = vmatmul.mubr.f32.gmra.mrb[0].mxu0 %v1032
  %v1103 = vpop.f32.mrb[0].mxu0
  %v1104 = vadd.f32 %v1023, %v1103
  %v1105 = vpop.f32.mrb[0].mxu0
  %1106 = vmatprep.mubr.f32.mxu0 0.0
  %1107 = vmatmul.mubr.f32.gmra.mrb[0].mxu0 %v1035
  %v1108 = vpop.f32.mrb[0].mxu0
  %v1109 = vadd.f32 %v1028, %v1108
  %v1110 = vpop.f32.mrb[0].mxu0
  %1111 = vdwg.mxu0
  %1112 = vrot.lane.b32.xlu0 %v301, 112
  %v1113 = vpop.permute.xlu0 %1112
  %v1114 = vsel %vm307, %v1113, 0
  %1116 = vmatprep.subr.mxu0 0.0
  %1117 = vmatpush1.xpose.msra.mxu0 %v1114
  %1118 = vmatprep.subr.mxu0 0.0
  %1119 = vmatpush1.xpose.msra.mxu0 0.0
  %1120 = vmatprep.subr.mxu0 0.0
  %1121 = vmatpush1.xpose.msra.mxu0 0.0
  %1122 = vmatprep.subr.mxu0 0.0
  %1123 = vmatpush1.xpose.msra.mxu0 0.0
  %1124 = vmatprep.subr.mxu0 0.0
  %1125 = vmatpush1.xpose.msra.mxu0 0.0
  %1126 = vmatprep.subr.mxu0 0.0
  %1127 = vmatpush1.xpose.msra.mxu0 0.0
  %1128 = vmatprep.subr.mxu0 0.0
  %1129 = vmatpush1.xpose.msra.mxu0 0.0
  %1130 = vmatprep.subr.mxu0 0.0
  %1131 = vmatpush1.xpose.msra.mxu0 0.0
  %1132 = vmatprep.subr.mxu0 0.0
  %1133 = vmatpush1.xpose.msra.mxu0 0.0
  %1134 = vmatprep.subr.mxu0 0.0
  %1135 = vmatpush1.xpose.msra.mxu0 0.0
  %1136 = vmatprep.subr.mxu0 0.0
  %1137 = vmatpush1.xpose.msra.mxu0 0.0
  %1138 = vmatprep.subr.mxu0 0.0
  %1139 = vmatpush1.xpose.msra.mxu0 0.0
  %1140 = vmatprep.subr.mxu0 0.0
  %1141 = vmatpush1.xpose.msra.mxu0 0.0
  %1142 = vmatprep.subr.mxu0 0.0
  %1143 = vmatpush1.xpose.msra.mxu0 0.0
  %1144 = vmatprep.subr.mxu0 0.0
  %1145 = vmatpush1.xpose.msra.mxu0 0.0
  %1146 = vmatprep.subr.mxu0 0.0
  %1147 = vmatpush1.xpose.msra.mxu0 0.0
  %1148 = vmatprep.subr.mxu0 0.0
  %1149 = vmatpush1.xpose.msra.mxu0 0.0
  %1150 = vmatprep.subr.mxu0 0.0
  %1151 = vmatpush1.xpose.msra.mxu0 0.0
  %1152 = vmatprep.subr.mxu0 0.0
  %1153 = vmatpush1.xpose.msra.mxu0 0.0
  %1154 = vmatprep.subr.mxu0 0.0
  %1155 = vmatpush1.xpose.msra.mxu0 0.0
  %1156 = vmatprep.subr.mxu0 0.0
  %1157 = vmatpush1.xpose.msra.mxu0 0.0
  %1158 = vmatprep.subr.mxu0 0.0
  %1159 = vmatpush1.xpose.msra.mxu0 0.0
  %1160 = vmatprep.subr.mxu0 0.0
  %1161 = vmatpush1.xpose.msra.mxu0 0.0
  %1162 = vmatprep.subr.mxu0 0.0
  %1163 = vmatpush1.xpose.msra.mxu0 0.0
  %1164 = vmatprep.subr.mxu0 0.0
  %1165 = vmatpush1.xpose.msra.mxu0 0.0
  %1166 = vmatprep.subr.mxu0 0.0
  %1167 = vmatpush1.xpose.msra.mxu0 0.0
  %1168 = vmatprep.subr.mxu0 0.0
  %1169 = vmatpush1.xpose.msra.mxu0 0.0
  %1170 = vmatprep.subr.mxu0 0.0
  %1171 = vmatpush1.xpose.msra.mxu0 0.0
  %1172 = vmatprep.subr.mxu0 0.0
  %1173 = vmatpush1.xpose.msra.mxu0 0.0
  %1174 = vmatprep.subr.mxu0 0.0
  %1175 = vmatpush1.xpose.msra.mxu0 0.0
  %1176 = vmatprep.subr.mxu0 0.0
  %1177 = vmatpush1.xpose.msra.mxu0 0.0
  %1178 = vmatprep.subr.mxu0 0.0
  %1179 = vmatpush1.xpose.msra.mxu0 0.0
  %1180 = vmatprep.mubr.f32.mxu0 0.0
  %1181 = vmatmul.mubr.f32.gmra.mrb[0].mxu0 %v1114
  %v1182 = vpop.f32.mrb[0].mxu0
  %v1183 = vadd.f32 0.0, %v1182
  %v1184 = vpop.f32.mrb[0].mxu0
  %1185 = vdwg.mxu0
  %1186 = vrot.lane.b32.xlu0 %v302, 112
  %v1187 = vpop.permute.xlu0 %1186
  %v1188 = vsel %vm307, %v1187, 0
  %1190 = vmatprep.subr.mxu0 0.0
  %1191 = vmatpush1.xpose.msra.mxu0 %v1188
  %1192 = vmatprep.subr.mxu0 0.0
  %1193 = vmatpush1.xpose.msra.mxu0 0.0
  %1194 = vmatprep.subr.mxu0 0.0
  %1195 = vmatpush1.xpose.msra.mxu0 0.0
  %1196 = vmatprep.subr.mxu0 0.0
  %1197 = vmatpush1.xpose.msra.mxu0 0.0
  %1198 = vmatprep.subr.mxu0 0.0
  %1199 = vmatpush1.xpose.msra.mxu0 0.0
  %1200 = vmatprep.subr.mxu0 0.0
  %1201 = vmatpush1.xpose.msra.mxu0 0.0
  %1202 = vmatprep.subr.mxu0 0.0
  %1203 = vmatpush1.xpose.msra.mxu0 0.0
  %1204 = vmatprep.subr.mxu0 0.0
  %1205 = vmatpush1.xpose.msra.mxu0 0.0
  %1206 = vmatprep.subr.mxu0 0.0
  %1207 = vmatpush1.xpose.msra.mxu0 0.0
  %1208 = vmatprep.subr.mxu0 0.0
  %1209 = vmatpush1.xpose.msra.mxu0 0.0
  %1210 = vmatprep.subr.mxu0 0.0
  %1211 = vmatpush1.xpose.msra.mxu0 0.0
  %1212 = vmatprep.subr.mxu0 0.0
  %1213 = vmatpush1.xpose.msra.mxu0 0.0
  %1214 = vmatprep.subr.mxu0 0.0
  %1215 = vmatpush1.xpose.msra.mxu0 0.0
  %1216 = vmatprep.subr.mxu0 0.0
  %1217 = vmatpush1.xpose.msra.mxu0 0.0
  %1218 = vmatprep.subr.mxu0 0.0
  %1219 = vmatpush1.xpose.msra.mxu0 0.0
  %1220 = vmatprep.subr.mxu0 0.0
  %1221 = vmatpush1.xpose.msra.mxu0 0.0
  %1222 = vmatprep.subr.mxu0 0.0
  %1223 = vmatpush1.xpose.msra.mxu0 0.0
  %1224 = vmatprep.subr.mxu0 0.0
  %1225 = vmatpush1.xpose.msra.mxu0 0.0
  %1226 = vmatprep.subr.mxu0 0.0
  %1227 = vmatpush1.xpose.msra.mxu0 0.0
  %1228 = vmatprep.subr.mxu0 0.0
  %1229 = vmatpush1.xpose.msra.mxu0 0.0
  %1230 = vmatprep.subr.mxu0 0.0
  %1231 = vmatpush1.xpose.msra.mxu0 0.0
  %1232 = vmatprep.subr.mxu0 0.0
  %1233 = vmatpush1.xpose.msra.mxu0 0.0
  %1234 = vmatprep.subr.mxu0 0.0
  %1235 = vmatpush1.xpose.msra.mxu0 0.0
  %1236 = vmatprep.subr.mxu0 0.0
  %1237 = vmatpush1.xpose.msra.mxu0 0.0
  %1238 = vmatprep.subr.mxu0 0.0
  %1239 = vmatpush1.xpose.msra.mxu0 0.0
  %1240 = vmatprep.subr.mxu0 0.0
  %1241 = vmatpush1.xpose.msra.mxu0 0.0
  %1242 = vmatprep.subr.mxu0 0.0
  %1243 = vmatpush1.xpose.msra.mxu0 0.0
  %1244 = vmatprep.subr.mxu0 0.0
  %1245 = vmatpush1.xpose.msra.mxu0 0.0
  %1246 = vmatprep.subr.mxu0 0.0
  %1247 = vmatpush1.xpose.msra.mxu0 0.0
  %1248 = vmatprep.subr.mxu0 0.0
  %1249 = vmatpush1.xpose.msra.mxu0 0.0
  %1250 = vmatprep.subr.mxu0 0.0
  %1251 = vmatpush1.xpose.msra.mxu0 0.0
  %1252 = vmatprep.subr.mxu0 0.0
  %1253 = vmatpush1.xpose.msra.mxu0 0.0
  %1254 = vmatprep.mubr.f32.mxu0 0.0
  %1255 = vmatmul.mubr.f32.gmra.mrb[0].mxu0 %v1188
  %v1256 = vpop.f32.mrb[0].mxu0
  %v1257 = vadd.f32 0.0, %v1256
  %v1258 = vpop.f32.mrb[0].mxu0
  %1259 = vdwg.mxu0
  %v1260 = vsel %vm169, %v1183, -1e+30
  %v1261 = vsel %vm169, %v1257, -1e+30
  %v1262 = vsel %vm307, %v1260, -inf
  %1263 = vmax.xlane.f32.xlu0 %v1262
  %v1264 = vpop.xlane.xlu0 %1263
  %v1265 = vsel %vm307, %v1261, -inf
  %1266 = vmax.xlane.f32.xlu0 %v1265
  %v1267 = vpop.xlane.xlu0 %1266
  %v1268 = vsub.f32 %v1260, %v1264
  %v1269 = vsub.f32 %v1261, %v1267
  %v1270 = vmul.f32 %v1268, 1.442695
  %v1271 = vpow.pop %v1270
  %v1272 = vmul.f32 %v1269, 1.442695
  %v1273 = vpow.pop %v1272
  %v1274 = vsel %vm307, %v1271, 0.0
  %1275 = vadd.xlane.f32.xlu0 %v1274
  %v1276 = vpop.xlane.xlu0 %1275
  %v1277 = vsel %vm307, %v1273, 0.0
  %1278 = vadd.xlane.f32.xlu0 %v1277
  %v1279 = vpop.xlane.xlu0 %1278
  %v1280 = vrcp.pop %v1276
  %v1281 = vrcp.pop %v1279
  %v1282 = vmul.f32 %v1271, %v1280
  %v1283 = vmul.f32 %v1273, %v1281
  %1284 = vrot.lane.b32.xlu0 %v293, 112
  %v1285 = vpop.permute.xlu0 %1284
  %v1288 = vsel %vm307, %v1282, 0
  %1290 = vmatprep.subr.mxu0 0.0
  %1291 = vmatpush1.msra.mxu0 %v1285
  %1292 = vmatprep.subr.mxu0 0.0
  %1293 = vmatpush1.msra.mxu0 0.0
  %1294 = vmatprep.subr.mxu0 0.0
  %1295 = vmatpush1.msra.mxu0 0.0
  %1296 = vmatprep.subr.mxu0 0.0
  %1297 = vmatpush1.msra.mxu0 0.0
  %1298 = vmatprep.subr.mxu0 0.0
  %1299 = vmatpush1.msra.mxu0 0.0
  %1300 = vmatprep.subr.mxu0 0.0
  %1301 = vmatpush1.msra.mxu0 0.0
  %1302 = vmatprep.subr.mxu0 0.0
  %1303 = vmatpush1.msra.mxu0 0.0
  %1304 = vmatprep.subr.mxu0 0.0
  %1305 = vmatpush1.msra.mxu0 0.0
  %1306 = vmatprep.subr.mxu0 0.0
  %1307 = vmatpush1.msra.mxu0 0.0
  %1308 = vmatprep.subr.mxu0 0.0
  %1309 = vmatpush1.msra.mxu0 0.0
  %1310 = vmatprep.subr.mxu0 0.0
  %1311 = vmatpush1.msra.mxu0 0.0
  %1312 = vmatprep.subr.mxu0 0.0
  %1313 = vmatpush1.msra.mxu0 0.0
  %1314 = vmatprep.subr.mxu0 0.0
  %1315 = vmatpush1.msra.mxu0 0.0
  %1316 = vmatprep.subr.mxu0 0.0
  %1317 = vmatpush1.msra.mxu0 0.0
  %1318 = vmatprep.subr.mxu0 0.0
  %1319 = vmatpush1.msra.mxu0 0.0
  %1320 = vmatprep.subr.mxu0 0.0
  %1321 = vmatpush1.msra.mxu0 0.0
  %1322 = vmatprep.subr.mxu0 0.0
  %1323 = vmatpush1.msra.mxu0 0.0
  %1324 = vmatprep.subr.mxu0 0.0
  %1325 = vmatpush1.msra.mxu0 0.0
  %1326 = vmatprep.subr.mxu0 0.0
  %1327 = vmatpush1.msra.mxu0 0.0
  %1328 = vmatprep.subr.mxu0 0.0
  %1329 = vmatpush1.msra.mxu0 0.0
  %1330 = vmatprep.subr.mxu0 0.0
  %1331 = vmatpush1.msra.mxu0 0.0
  %1332 = vmatprep.subr.mxu0 0.0
  %1333 = vmatpush1.msra.mxu0 0.0
  %1334 = vmatprep.subr.mxu0 0.0
  %1335 = vmatpush1.msra.mxu0 0.0
  %1336 = vmatprep.subr.mxu0 0.0
  %1337 = vmatpush1.msra.mxu0 0.0
  %1338 = vmatprep.subr.mxu0 0.0
  %1339 = vmatpush1.msra.mxu0 0.0
  %1340 = vmatprep.subr.mxu0 0.0
  %1341 = vmatpush1.msra.mxu0 0.0
  %1342 = vmatprep.subr.mxu0 0.0
  %1343 = vmatpush1.msra.mxu0 0.0
  %1344 = vmatprep.subr.mxu0 0.0
  %1345 = vmatpush1.msra.mxu0 0.0
  %1346 = vmatprep.subr.mxu0 0.0
  %1347 = vmatpush1.msra.mxu0 0.0
  %1348 = vmatprep.subr.mxu0 0.0
  %1349 = vmatpush1.msra.mxu0 0.0
  %1350 = vmatprep.subr.mxu0 0.0
  %1351 = vmatpush1.msra.mxu0 0.0
  %1352 = vmatprep.subr.mxu0 0.0
  %1353 = vmatpush1.msra.mxu0 0.0
  %1354 = vmatprep.mubr.f32.mxu0 0.0
  %1355 = vmatmul.mubr.f32.gmra.mrb[0].mxu0 %v1288
  %v1356 = vpop.f32.mrb[0].mxu0
  %v1357 = vadd.f32 0.0, %v1356
  %v1358 = vpop.f32.mrb[0].mxu0
  %1359 = vdwg.mxu0
  %1360 = vrot.lane.b32.xlu0 %v298, 112
  %v1361 = vpop.permute.xlu0 %1360
  %v1364 = vsel %vm307, %v1283, 0
  %1366 = vmatprep.subr.mxu0 0.0
  %1367 = vmatpush1.msra.mxu0 %v1361
  %1368 = vmatprep.subr.mxu0 0.0
  %1369 = vmatpush1.msra.mxu0 0.0
  %1370 = vmatprep.subr.mxu0 0.0
  %1371 = vmatpush1.msra.mxu0 0.0
  %1372 = vmatprep.subr.mxu0 0.0
  %1373 = vmatpush1.msra.mxu0 0.0
  %1374 = vmatprep.subr.mxu0 0.0
  %1375 = vmatpush1.msra.mxu0 0.0
  %1376 = vmatprep.subr.mxu0 0.0
  %1377 = vmatpush1.msra.mxu0 0.0
  %1378 = vmatprep.subr.mxu0 0.0
  %1379 = vmatpush1.msra.mxu0 0.0
  %1380 = vmatprep.subr.mxu0 0.0
  %1381 = vmatpush1.msra.mxu0 0.0
  %1382 = vmatprep.subr.mxu0 0.0
  %1383 = vmatpush1.msra.mxu0 0.0
  %1384 = vmatprep.subr.mxu0 0.0
  %1385 = vmatpush1.msra.mxu0 0.0
  %1386 = vmatprep.subr.mxu0 0.0
  %1387 = vmatpush1.msra.mxu0 0.0
  %1388 = vmatprep.subr.mxu0 0.0
  %1389 = vmatpush1.msra.mxu0 0.0
  %1390 = vmatprep.subr.mxu0 0.0
  %1391 = vmatpush1.msra.mxu0 0.0
  %1392 = vmatprep.subr.mxu0 0.0
  %1393 = vmatpush1.msra.mxu0 0.0
  %1394 = vmatprep.subr.mxu0 0.0
  %1395 = vmatpush1.msra.mxu0 0.0
  %1396 = vmatprep.subr.mxu0 0.0
  %1397 = vmatpush1.msra.mxu0 0.0
  %1398 = vmatprep.subr.mxu0 0.0
  %1399 = vmatpush1.msra.mxu0 0.0
  %1400 = vmatprep.subr.mxu0 0.0
  %1401 = vmatpush1.msra.mxu0 0.0
  %1402 = vmatprep.subr.mxu0 0.0
  %1403 = vmatpush1.msra.mxu0 0.0
  %1404 = vmatprep.subr.mxu0 0.0
  %1405 = vmatpush1.msra.mxu0 0.0
  %1406 = vmatprep.subr.mxu0 0.0
  %1407 = vmatpush1.msra.mxu0 0.0
  %1408 = vmatprep.subr.mxu0 0.0
  %1409 = vmatpush1.msra.mxu0 0.0
  %1410 = vmatprep.subr.mxu0 0.0
  %1411 = vmatpush1.msra.mxu0 0.0
  %1412 = vmatprep.subr.mxu0 0.0
  %1413 = vmatpush1.msra.mxu0 0.0
  %1414 = vmatprep.subr.mxu0 0.0
  %1415 = vmatpush1.msra.mxu0 0.0
  %1416 = vmatprep.subr.mxu0 0.0
  %1417 = vmatpush1.msra.mxu0 0.0
  %1418 = vmatprep.subr.mxu0 0.0
  %1419 = vmatpush1.msra.mxu0 0.0
  %1420 = vmatprep.subr.mxu0 0.0
  %1421 = vmatpush1.msra.mxu0 0.0
  %1422 = vmatprep.subr.mxu0 0.0
  %1423 = vmatpush1.msra.mxu0 0.0
  %1424 = vmatprep.subr.mxu0 0.0
  %1425 = vmatpush1.msra.mxu0 0.0
  %1426 = vmatprep.subr.mxu0 0.0
  %1427 = vmatpush1.msra.mxu0 0.0
  %1428 = vmatprep.subr.mxu0 0.0
  %1429 = vmatpush1.msra.mxu0 0.0
  %1430 = vmatprep.mubr.f32.mxu0 0.0
  %1431 = vmatmul.mubr.f32.gmra.mrb[0].mxu0 %v1364
  %v1432 = vpop.f32.mrb[0].mxu0
  %v1433 = vadd.f32 0.0, %v1432
  %v1434 = vpop.f32.mrb[0].mxu0
  %1435 = vdwg.mxu0
  %v1437 = vsel %vm307, %v1357, 0
  %v1440 = vsel %vm307, %v1433, 0
  %1442 = vmatprep.subr.mxu0 0.0
  %1443 = vmatpush1.msra.mxu0 %v305
  %1444 = vmatprep.subr.mxu0 0.0
  %1445 = vmatpush1.msra.mxu0 0.0
  %1446 = vmatprep.subr.mxu0 0.0
  %1447 = vmatpush1.msra.mxu0 0.0
  %1448 = vmatprep.subr.mxu0 0.0
  %1449 = vmatpush1.msra.mxu0 0.0
  %1450 = vmatprep.subr.mxu0 0.0
  %1451 = vmatpush1.msra.mxu0 0.0
  %1452 = vmatprep.subr.mxu0 0.0
  %1453 = vmatpush1.msra.mxu0 0.0
  %1454 = vmatprep.subr.mxu0 0.0
  %1455 = vmatpush1.msra.mxu0 0.0
  %1456 = vmatprep.subr.mxu0 0.0
  %1457 = vmatpush1.msra.mxu0 0.0
  %1458 = vmatprep.subr.mxu0 0.0
  %1459 = vmatpush1.msra.mxu0 0.0
  %1460 = vmatprep.subr.mxu0 0.0
  %1461 = vmatpush1.msra.mxu0 0.0
  %1462 = vmatprep.subr.mxu0 0.0
  %1463 = vmatpush1.msra.mxu0 0.0
  %1464 = vmatprep.subr.mxu0 0.0
  %1465 = vmatpush1.msra.mxu0 0.0
  %1466 = vmatprep.subr.mxu0 0.0
  %1467 = vmatpush1.msra.mxu0 0.0
  %1468 = vmatprep.subr.mxu0 0.0
  %1469 = vmatpush1.msra.mxu0 0.0
  %1470 = vmatprep.subr.mxu0 0.0
  %1471 = vmatpush1.msra.mxu0 0.0
  %1472 = vmatprep.subr.mxu0 0.0
  %1473 = vmatpush1.msra.mxu0 0.0
  %1474 = vmatprep.subr.mxu0 0.0
  %1475 = vmatpush1.msra.mxu0 0.0
  %1476 = vmatprep.subr.mxu0 0.0
  %1477 = vmatpush1.msra.mxu0 0.0
  %1478 = vmatprep.subr.mxu0 0.0
  %1479 = vmatpush1.msra.mxu0 0.0
  %1480 = vmatprep.subr.mxu0 0.0
  %1481 = vmatpush1.msra.mxu0 0.0
  %1482 = vmatprep.subr.mxu0 0.0
  %1483 = vmatpush1.msra.mxu0 0.0
  %1484 = vmatprep.subr.mxu0 0.0
  %1485 = vmatpush1.msra.mxu0 0.0
  %1486 = vmatprep.subr.mxu0 0.0
  %1487 = vmatpush1.msra.mxu0 0.0
  %1488 = vmatprep.subr.mxu0 0.0
  %1489 = vmatpush1.msra.mxu0 0.0
  %1490 = vmatprep.subr.mxu0 0.0
  %1491 = vmatpush1.msra.mxu0 0.0
  %1492 = vmatprep.subr.mxu0 0.0
  %1493 = vmatpush1.msra.mxu0 0.0
  %1494 = vmatprep.subr.mxu0 0.0
  %1495 = vmatpush1.msra.mxu0 0.0
  %1496 = vmatprep.subr.mxu0 0.0
  %1497 = vmatpush1.msra.mxu0 0.0
  %1498 = vmatprep.subr.mxu0 0.0
  %1499 = vmatpush1.msra.mxu0 0.0
  %1500 = vmatprep.subr.mxu0 0.0
  %1501 = vmatpush1.msra.mxu0 0.0
  %1502 = vmatprep.subr.mxu0 0.0
  %1503 = vmatpush1.msra.mxu0 0.0
  %1504 = vmatprep.subr.mxu0 0.0
  %1505 = vmatpush1.msra.mxu0 0.0
  %1506 = vmatprep.mubr.f32.mxu0 0.0
  %1507 = vmatmul.mubr.f32.gmra.mrb[0].mxu0 %v1437
  %v1508 = vpop.f32.mrb[0].mxu0
  %v1509 = vadd.f32 0.0, %v1508
  %v1510 = vpop.f32.mrb[0].mxu0
  %1511 = vmatprep.mubr.f32.mxu0 0.0
  %1512 = vmatmul.mubr.f32.gmra.mrb[0].mxu0 %v1440
  %v1513 = vpop.f32.mrb[0].mxu0
  %v1514 = vadd.f32 0.0, %v1513
  %v1515 = vpop.f32.mrb[0].mxu0
  %1516 = vdwg.mxu0
  %v1517 = vadd.f32 %v1104, %v1509
  %v1518 = vadd.f32 %v1109, %v1514
  %1519 = vrot.lane.b32.xlu0 %v301, 104
  %v1520 = vpop.permute.xlu0 %1519
  %v1521 = vsel %vm307, %v1520, 0
  %1523 = vmatprep.subr.mxu0 0.0
  %1524 = vmatpush1.xpose.msra.mxu0 %v1521
  %1525 = vmatprep.subr.mxu0 0.0
  %1526 = vmatpush1.xpose.msra.mxu0 0.0
  %1527 = vmatprep.subr.mxu0 0.0
  %1528 = vmatpush1.xpose.msra.mxu0 0.0
  %1529 = vmatprep.subr.mxu0 0.0
  %1530 = vmatpush1.xpose.msra.mxu0 0.0
  %1531 = vmatprep.subr.mxu0 0.0
  %1532 = vmatpush1.xpose.msra.mxu0 0.0
  %1533 = vmatprep.subr.mxu0 0.0
  %1534 = vmatpush1.xpose.msra.mxu0 0.0
  %1535 = vmatprep.subr.mxu0 0.0
  %1536 = vmatpush1.xpose.msra.mxu0 0.0
  %1537 = vmatprep.subr.mxu0 0.0
  %1538 = vmatpush1.xpose.msra.mxu0 0.0
  %1539 = vmatprep.subr.mxu0 0.0
  %1540 = vmatpush1.xpose.msra.mxu0 0.0
  %1541 = vmatprep.subr.mxu0 0.0
  %1542 = vmatpush1.xpose.msra.mxu0 0.0
  %1543 = vmatprep.subr.mxu0 0.0
  %1544 = vmatpush1.xpose.msra.mxu0 0.0
  %1545 = vmatprep.subr.mxu0 0.0
  %1546 = vmatpush1.xpose.msra.mxu0 0.0
  %1547 = vmatprep.subr.mxu0 0.0
  %1548 = vmatpush1.xpose.msra.mxu0 0.0
  %1549 = vmatprep.subr.mxu0 0.0
  %1550 = vmatpush1.xpose.msra.mxu0 0.0
  %1551 = vmatprep.subr.mxu0 0.0
  %1552 = vmatpush1.xpose.msra.mxu0 0.0
  %1553 = vmatprep.subr.mxu0 0.0
  %1554 = vmatpush1.xpose.msra.mxu0 0.0
  %1555 = vmatprep.subr.mxu0 0.0
  %1556 = vmatpush1.xpose.msra.mxu0 0.0
  %1557 = vmatprep.subr.mxu0 0.0
  %1558 = vmatpush1.xpose.msra.mxu0 0.0
  %1559 = vmatprep.subr.mxu0 0.0
  %1560 = vmatpush1.xpose.msra.mxu0 0.0
  %1561 = vmatprep.subr.mxu0 0.0
  %1562 = vmatpush1.xpose.msra.mxu0 0.0
  %1563 = vmatprep.subr.mxu0 0.0
  %1564 = vmatpush1.xpose.msra.mxu0 0.0
  %1565 = vmatprep.subr.mxu0 0.0
  %1566 = vmatpush1.xpose.msra.mxu0 0.0
  %1567 = vmatprep.subr.mxu0 0.0
  %1568 = vmatpush1.xpose.msra.mxu0 0.0
  %1569 = vmatprep.subr.mxu0 0.0
  %1570 = vmatpush1.xpose.msra.mxu0 0.0
  %1571 = vmatprep.subr.mxu0 0.0
  %1572 = vmatpush1.xpose.msra.mxu0 0.0
  %1573 = vmatprep.subr.mxu0 0.0
  %1574 = vmatpush1.xpose.msra.mxu0 0.0
  %1575 = vmatprep.subr.mxu0 0.0
  %1576 = vmatpush1.xpose.msra.mxu0 0.0
  %1577 = vmatprep.subr.mxu0 0.0
  %1578 = vmatpush1.xpose.msra.mxu0 0.0
  %1579 = vmatprep.subr.mxu0 0.0
  %1580 = vmatpush1.xpose.msra.mxu0 0.0
  %1581 = vmatprep.subr.mxu0 0.0
  %1582 = vmatpush1.xpose.msra.mxu0 0.0
  %1583 = vmatprep.subr.mxu0 0.0
  %1584 = vmatpush1.xpose.msra.mxu0 0.0
  %1585 = vmatprep.subr.mxu0 0.0
  %1586 = vmatpush1.xpose.msra.mxu0 0.0
  %1587 = vmatprep.mubr.f32.mxu0 0.0
  %1588 = vmatmul.mubr.f32.gmra.mrb[0].mxu0 %v1521
  %v1589 = vpop.f32.mrb[0].mxu0
  %v1590 = vadd.f32 0.0, %v1589
  %v1591 = vpop.f32.mrb[0].mxu0
  %1592 = vdwg.mxu0
  %1593 = vrot.lane.b32.xlu0 %v302, 104
  %v1594 = vpop.permute.xlu0 %1593
  %v1595 = vsel %vm307, %v1594, 0
  %1597 = vmatprep.subr.mxu0 0.0
  %1598 = vmatpush1.xpose.msra.mxu0 %v1595
  %1599 = vmatprep.subr.mxu0 0.0
  %1600 = vmatpush1.xpose.msra.mxu0 0.0
  %1601 = vmatprep.subr.mxu0 0.0
  %1602 = vmatpush1.xpose.msra.mxu0 0.0
  %1603 = vmatprep.subr.mxu0 0.0
  %1604 = vmatpush1.xpose.msra.mxu0 0.0
  %1605 = vmatprep.subr.mxu0 0.0
  %1606 = vmatpush1.xpose.msra.mxu0 0.0
  %1607 = vmatprep.subr.mxu0 0.0
  %1608 = vmatpush1.xpose.msra.mxu0 0.0
  %1609 = vmatprep.subr.mxu0 0.0
  %1610 = vmatpush1.xpose.msra.mxu0 0.0
  %1611 = vmatprep.subr.mxu0 0.0
  %1612 = vmatpush1.xpose.msra.mxu0 0.0
  %1613 = vmatprep.subr.mxu0 0.0
  %1614 = vmatpush1.xpose.msra.mxu0 0.0
  %1615 = vmatprep.subr.mxu0 0.0
  %1616 = vmatpush1.xpose.msra.mxu0 0.0
  %1617 = vmatprep.subr.mxu0 0.0
  %1618 = vmatpush1.xpose.msra.mxu0 0.0
  %1619 = vmatprep.subr.mxu0 0.0
  %1620 = vmatpush1.xpose.msra.mxu0 0.0
  %1621 = vmatprep.subr.mxu0 0.0
  %1622 = vmatpush1.xpose.msra.mxu0 0.0
  %1623 = vmatprep.subr.mxu0 0.0
  %1624 = vmatpush1.xpose.msra.mxu0 0.0
  %1625 = vmatprep.subr.mxu0 0.0
  %1626 = vmatpush1.xpose.msra.mxu0 0.0
  %1627 = vmatprep.subr.mxu0 0.0
  %1628 = vmatpush1.xpose.msra.mxu0 0.0
  %1629 = vmatprep.subr.mxu0 0.0
  %1630 = vmatpush1.xpose.msra.mxu0 0.0
  %1631 = vmatprep.subr.mxu0 0.0
  %1632 = vmatpush1.xpose.msra.mxu0 0.0
  %1633 = vmatprep.subr.mxu0 0.0
  %1634 = vmatpush1.xpose.msra.mxu0 0.0
  %1635 = vmatprep.subr.mxu0 0.0
  %1636 = vmatpush1.xpose.msra.mxu0 0.0
  %1637 = vmatprep.subr.mxu0 0.0
  %1638 = vmatpush1.xpose.msra.mxu0 0.0
  %1639 = vmatprep.subr.mxu0 0.0
  %1640 = vmatpush1.xpose.msra.mxu0 0.0
  %1641 = vmatprep.subr.mxu0 0.0
  %1642 = vmatpush1.xpose.msra.mxu0 0.0
  %1643 = vmatprep.subr.mxu0 0.0
  %1644 = vmatpush1.xpose.msra.mxu0 0.0
  %1645 = vmatprep.subr.mxu0 0.0
  %1646 = vmatpush1.xpose.msra.mxu0 0.0
  %1647 = vmatprep.subr.mxu0 0.0
  %1648 = vmatpush1.xpose.msra.mxu0 0.0
  %1649 = vmatprep.subr.mxu0 0.0
  %1650 = vmatpush1.xpose.msra.mxu0 0.0
  %1651 = vmatprep.subr.mxu0 0.0
  %1652 = vmatpush1.xpose.msra.mxu0 0.0
  %1653 = vmatprep.subr.mxu0 0.0
  %1654 = vmatpush1.xpose.msra.mxu0 0.0
  %1655 = vmatprep.subr.mxu0 0.0
  %1656 = vmatpush1.xpose.msra.mxu0 0.0
  %1657 = vmatprep.subr.mxu0 0.0
  %1658 = vmatpush1.xpose.msra.mxu0 0.0
  %1659 = vmatprep.subr.mxu0 0.0
  %1660 = vmatpush1.xpose.msra.mxu0 0.0
  %1661 = vmatprep.mubr.f32.mxu0 0.0
  %1662 = vmatmul.mubr.f32.gmra.mrb[0].mxu0 %v1595
  %v1663 = vpop.f32.mrb[0].mxu0
  %v1664 = vadd.f32 0.0, %v1663
  %v1665 = vpop.f32.mrb[0].mxu0
  %1666 = vdwg.mxu0
  %v1667 = vsel %vm169, %v1590, -1e+30
  %v1668 = vsel %vm169, %v1664, -1e+30
  %v1669 = vsel %vm307, %v1667, -inf
  %1670 = vmax.xlane.f32.xlu0 %v1669
  %v1671 = vpop.xlane.xlu0 %1670
  %v1672 = vsel %vm307, %v1668, -inf
  %1673 = vmax.xlane.f32.xlu0 %v1672
  %v1674 = vpop.xlane.xlu0 %1673
  %v1675 = vsub.f32 %v1667, %v1671
  %v1676 = vsub.f32 %v1668, %v1674
  %v1677 = vmul.f32 %v1675, 1.442695
  %v1678 = vpow.pop %v1677
  %v1679 = vmul.f32 %v1676, 1.442695
  %v1680 = vpow.pop %v1679
  %v1681 = vsel %vm307, %v1678, 0.0
  %1682 = vadd.xlane.f32.xlu0 %v1681
  %v1683 = vpop.xlane.xlu0 %1682
  %v1684 = vsel %vm307, %v1680, 0.0
  %1685 = vadd.xlane.f32.xlu0 %v1684
  %v1686 = vpop.xlane.xlu0 %1685
  %v1687 = vrcp.pop %v1683
  %v1688 = vrcp.pop %v1686
  %v1689 = vmul.f32 %v1678, %v1687
  %v1690 = vmul.f32 %v1680, %v1688
  %1691 = vrot.lane.b32.xlu0 %v293, 104
  %v1692 = vpop.permute.xlu0 %1691
  %v1695 = vsel %vm307, %v1689, 0
  %1697 = vmatprep.subr.mxu0 0.0
  %1698 = vmatpush1.msra.mxu0 %v1692
  %1699 = vmatprep.subr.mxu0 0.0
  %1700 = vmatpush1.msra.mxu0 0.0
  %1701 = vmatprep.subr.mxu0 0.0
  %1702 = vmatpush1.msra.mxu0 0.0
  %1703 = vmatprep.subr.mxu0 0.0
  %1704 = vmatpush1.msra.mxu0 0.0
  %1705 = vmatprep.subr.mxu0 0.0
  %1706 = vmatpush1.msra.mxu0 0.0
  %1707 = vmatprep.subr.mxu0 0.0
  %1708 = vmatpush1.msra.mxu0 0.0
  %1709 = vmatprep.subr.mxu0 0.0
  %1710 = vmatpush1.msra.mxu0 0.0
  %1711 = vmatprep.subr.mxu0 0.0
  %1712 = vmatpush1.msra.mxu0 0.0
  %1713 = vmatprep.subr.mxu0 0.0
  %1714 = vmatpush1.msra.mxu0 0.0
  %1715 = vmatprep.subr.mxu0 0.0
  %1716 = vmatpush1.msra.mxu0 0.0
  %1717 = vmatprep.subr.mxu0 0.0
  %1718 = vmatpush1.msra.mxu0 0.0
  %1719 = vmatprep.subr.mxu0 0.0
  %1720 = vmatpush1.msra.mxu0 0.0
  %1721 = vmatprep.subr.mxu0 0.0
  %1722 = vmatpush1.msra.mxu0 0.0
  %1723 = vmatprep.subr.mxu0 0.0
  %1724 = vmatpush1.msra.mxu0 0.0
  %1725 = vmatprep.subr.mxu0 0.0
  %1726 = vmatpush1.msra.mxu0 0.0
  %1727 = vmatprep.subr.mxu0 0.0
  %1728 = vmatpush1.msra.mxu0 0.0
  %1729 = vmatprep.subr.mxu0 0.0
  %1730 = vmatpush1.msra.mxu0 0.0
  %1731 = vmatprep.subr.mxu0 0.0
  %1732 = vmatpush1.msra.mxu0 0.0
  %1733 = vmatprep.subr.mxu0 0.0
  %1734 = vmatpush1.msra.mxu0 0.0
  %1735 = vmatprep.subr.mxu0 0.0
  %1736 = vmatpush1.msra.mxu0 0.0
  %1737 = vmatprep.subr.mxu0 0.0
  %1738 = vmatpush1.msra.mxu0 0.0
  %1739 = vmatprep.subr.mxu0 0.0
  %1740 = vmatpush1.msra.mxu0 0.0
  %1741 = vmatprep.subr.mxu0 0.0
  %1742 = vmatpush1.msra.mxu0 0.0
  %1743 = vmatprep.subr.mxu0 0.0
  %1744 = vmatpush1.msra.mxu0 0.0
  %1745 = vmatprep.subr.mxu0 0.0
  %1746 = vmatpush1.msra.mxu0 0.0
  %1747 = vmatprep.subr.mxu0 0.0
  %1748 = vmatpush1.msra.mxu0 0.0
  %1749 = vmatprep.subr.mxu0 0.0
  %1750 = vmatpush1.msra.mxu0 0.0
  %1751 = vmatprep.subr.mxu0 0.0
  %1752 = vmatpush1.msra.mxu0 0.0
  %1753 = vmatprep.subr.mxu0 0.0
  %1754 = vmatpush1.msra.mxu0 0.0
  %1755 = vmatprep.subr.mxu0 0.0
  %1756 = vmatpush1.msra.mxu0 0.0
  %1757 = vmatprep.subr.mxu0 0.0
  %1758 = vmatpush1.msra.mxu0 0.0
  %1759 = vmatprep.subr.mxu0 0.0
  %1760 = vmatpush1.msra.mxu0 0.0
  %1761 = vmatprep.mubr.f32.mxu0 0.0
  %1762 = vmatmul.mubr.f32.gmra.mrb[0].mxu0 %v1695
  %v1763 = vpop.f32.mrb[0].mxu0
  %v1764 = vadd.f32 0.0, %v1763
  %v1765 = vpop.f32.mrb[0].mxu0
  %1766 = vdwg.mxu0
  %1767 = vrot.lane.b32.xlu0 %v298, 104
  %v1768 = vpop.permute.xlu0 %1767
  %v1771 = vsel %vm307, %v1690, 0
  %1773 = vmatprep.subr.mxu0 0.0
  %1774 = vmatpush1.msra.mxu0 %v1768
  %1775 = vmatprep.subr.mxu0 0.0
  %1776 = vmatpush1.msra.mxu0 0.0
  %1777 = vmatprep.subr.mxu0 0.0
  %1778 = vmatpush1.msra.mxu0 0.0
  %1779 = vmatprep.subr.mxu0 0.0
  %1780 = vmatpush1.msra.mxu0 0.0
  %1781 = vmatprep.subr.mxu0 0.0
  %1782 = vmatpush1.msra.mxu0 0.0
  %1783 = vmatprep.subr.mxu0 0.0
  %1784 = vmatpush1.msra.mxu0 0.0
  %1785 = vmatprep.subr.mxu0 0.0
  %1786 = vmatpush1.msra.mxu0 0.0
  %1787 = vmatprep.subr.mxu0 0.0
  %1788 = vmatpush1.msra.mxu0 0.0
  %1789 = vmatprep.subr.mxu0 0.0
  %1790 = vmatpush1.msra.mxu0 0.0
  %1791 = vmatprep.subr.mxu0 0.0
  %1792 = vmatpush1.msra.mxu0 0.0
  %1793 = vmatprep.subr.mxu0 0.0
  %1794 = vmatpush1.msra.mxu0 0.0
  %1795 = vmatprep.subr.mxu0 0.0
  %1796 = vmatpush1.msra.mxu0 0.0
  %1797 = vmatprep.subr.mxu0 0.0
  %1798 = vmatpush1.msra.mxu0 0.0
  %1799 = vmatprep.subr.mxu0 0.0
  %1800 = vmatpush1.msra.mxu0 0.0
  %1801 = vmatprep.subr.mxu0 0.0
  %1802 = vmatpush1.msra.mxu0 0.0
  %1803 = vmatprep.subr.mxu0 0.0
  %1804 = vmatpush1.msra.mxu0 0.0
  %1805 = vmatprep.subr.mxu0 0.0
  %1806 = vmatpush1.msra.mxu0 0.0
  %1807 = vmatprep.subr.mxu0 0.0
  %1808 = vmatpush1.msra.mxu0 0.0
  %1809 = vmatprep.subr.mxu0 0.0
  %1810 = vmatpush1.msra.mxu0 0.0
  %1811 = vmatprep.subr.mxu0 0.0
  %1812 = vmatpush1.msra.mxu0 0.0
  %1813 = vmatprep.subr.mxu0 0.0
  %1814 = vmatpush1.msra.mxu0 0.0
  %1815 = vmatprep.subr.mxu0 0.0
  %1816 = vmatpush1.msra.mxu0 0.0
  %1817 = vmatprep.subr.mxu0 0.0
  %1818 = vmatpush1.msra.mxu0 0.0
  %1819 = vmatprep.subr.mxu0 0.0
  %1820 = vmatpush1.msra.mxu0 0.0
  %1821 = vmatprep.subr.mxu0 0.0
  %1822 = vmatpush1.msra.mxu0 0.0
  %1823 = vmatprep.subr.mxu0 0.0
  %1824 = vmatpush1.msra.mxu0 0.0
  %1825 = vmatprep.subr.mxu0 0.0
  %1826 = vmatpush1.msra.mxu0 0.0
  %1827 = vmatprep.subr.mxu0 0.0
  %1828 = vmatpush1.msra.mxu0 0.0
  %1829 = vmatprep.subr.mxu0 0.0
  %1830 = vmatpush1.msra.mxu0 0.0
  %1831 = vmatprep.subr.mxu0 0.0
  %1832 = vmatpush1.msra.mxu0 0.0
  %1833 = vmatprep.subr.mxu0 0.0
  %1834 = vmatpush1.msra.mxu0 0.0
  %1835 = vmatprep.subr.mxu0 0.0
  %1836 = vmatpush1.msra.mxu0 0.0
  %1837 = vmatprep.mubr.f32.mxu0 0.0
  %1838 = vmatmul.mubr.f32.gmra.mrb[0].mxu0 %v1771
  %v1839 = vpop.f32.mrb[0].mxu0
  %v1840 = vadd.f32 0.0, %v1839
  %v1841 = vpop.f32.mrb[0].mxu0
  %1842 = vdwg.mxu0
  %v1844 = vsel %vm307, %v1764, 0
  %v1847 = vsel %vm307, %v1840, 0
  %1849 = vmatprep.subr.mxu0 0.0
  %1850 = vmatpush1.msra.mxu0 %v306
  %1851 = vmatprep.subr.mxu0 0.0
  %1852 = vmatpush1.msra.mxu0 0.0
  %1853 = vmatprep.subr.mxu0 0.0
  %1854 = vmatpush1.msra.mxu0 0.0
  %1855 = vmatprep.subr.mxu0 0.0
  %1856 = vmatpush1.msra.mxu0 0.0
  %1857 = vmatprep.subr.mxu0 0.0
  %1858 = vmatpush1.msra.mxu0 0.0
  %1859 = vmatprep.subr.mxu0 0.0
  %1860 = vmatpush1.msra.mxu0 0.0
  %1861 = vmatprep.subr.mxu0 0.0
  %1862 = vmatpush1.msra.mxu0 0.0
  %1863 = vmatprep.subr.mxu0 0.0
  %1864 = vmatpush1.msra.mxu0 0.0
  %1865 = vmatprep.subr.mxu0 0.0
  %1866 = vmatpush1.msra.mxu0 0.0
  %1867 = vmatprep.subr.mxu0 0.0
  %1868 = vmatpush1.msra.mxu0 0.0
  %1869 = vmatprep.subr.mxu0 0.0
  %1870 = vmatpush1.msra.mxu0 0.0
  %1871 = vmatprep.subr.mxu0 0.0
  %1872 = vmatpush1.msra.mxu0 0.0
  %1873 = vmatprep.subr.mxu0 0.0
  %1874 = vmatpush1.msra.mxu0 0.0
  %1875 = vmatprep.subr.mxu0 0.0
  %1876 = vmatpush1.msra.mxu0 0.0
  %1877 = vmatprep.subr.mxu0 0.0
  %1878 = vmatpush1.msra.mxu0 0.0
  %1879 = vmatprep.subr.mxu0 0.0
  %1880 = vmatpush1.msra.mxu0 0.0
  %1881 = vmatprep.subr.mxu0 0.0
  %1882 = vmatpush1.msra.mxu0 0.0
  %1883 = vmatprep.subr.mxu0 0.0
  %1884 = vmatpush1.msra.mxu0 0.0
  %1885 = vmatprep.subr.mxu0 0.0
  %1886 = vmatpush1.msra.mxu0 0.0
  %1887 = vmatprep.subr.mxu0 0.0
  %1888 = vmatpush1.msra.mxu0 0.0
  %1889 = vmatprep.subr.mxu0 0.0
  %1890 = vmatpush1.msra.mxu0 0.0
  %1891 = vmatprep.subr.mxu0 0.0
  %1892 = vmatpush1.msra.mxu0 0.0
  %1893 = vmatprep.subr.mxu0 0.0
  %1894 = vmatpush1.msra.mxu0 0.0
  %1895 = vmatprep.subr.mxu0 0.0
  %1896 = vmatpush1.msra.mxu0 0.0
  %1897 = vmatprep.subr.mxu0 0.0
  %1898 = vmatpush1.msra.mxu0 0.0
  %1899 = vmatprep.subr.mxu0 0.0
  %1900 = vmatpush1.msra.mxu0 0.0
  %1901 = vmatprep.subr.mxu0 0.0
  %1902 = vmatpush1.msra.mxu0 0.0
  %1903 = vmatprep.subr.mxu0 0.0
  %1904 = vmatpush1.msra.mxu0 0.0
  %1905 = vmatprep.subr.mxu0 0.0
  %1906 = vmatpush1.msra.mxu0 0.0
  %1907 = vmatprep.subr.mxu0 0.0
  %1908 = vmatpush1.msra.mxu0 0.0
  %1909 = vmatprep.subr.mxu0 0.0
  %1910 = vmatpush1.msra.mxu0 0.0
  %1911 = vmatprep.subr.mxu0 0.0
  %1912 = vmatpush1.msra.mxu0 0.0
  %1913 = vmatprep.mubr.f32.mxu0 0.0
  %1914 = vmatmul.mubr.f32.gmra.mrb[0].mxu0 %v1844
  %v1915 = vpop.f32.mrb[0].mxu0
  %v1916 = vadd.f32 0.0, %v1915
  %v1917 = vpop.f32.mrb[0].mxu0
  %1918 = vmatprep.mubr.f32.mxu0 0.0
  %1919 = vmatmul.mubr.f32.gmra.mrb[0].mxu0 %v1847
  %v1920 = vpop.f32.mrb[0].mxu0
  %v1921 = vadd.f32 0.0, %v1920
  %v1922 = vpop.f32.mrb[0].mxu0
  %1923 = vdwg.mxu0
  %v1924 = vadd.f32 %v1517, %v1916
  %v1925 = vadd.f32 %v1518, %v1921
  %v1926 = vadd.f32 %v159, %v1924
  %v1927 = vadd.f32 %v164, %v1925
  %v1928 = vld [vmem:[%s7] sm:$0x1]
  %v1930 = vlaneseq
  %v1931 = vshrl.u32 %v1930, 7
  %v1932 = vsub.s32 0, %v1931
  %v1933 = vrot.slane %v1928, %v1932
  %v1935 = vadd.f32 %v1926, %v1933
  %v1936 = vadd.f32 %v1927, %v1933
  %v1937 = vld [vmem:[%s8] sm:$0x1]
  %v1938 = vld [vmem:[%s9] sm:$0x1]
  %v1939 = vsel %vm172, %v1935, 0.0
  %1940 = vadd.xlane.f32.xlu0 %v1939
  %v1941 = vpop.xlane.xlu0 %1940
  %v1942 = vsel %vm172, %v1936, 0.0
  %1943 = vadd.xlane.f32.xlu0 %v1942
  %v1944 = vpop.xlane.xlu0 %1943
  %v1945 = vmul.f32 %v1941, %v179
  %v1946 = vmul.f32 %v1944, %v179
  %v1947 = vsub.f32 %v1935, %v1945
  %v1948 = vsub.f32 %v1936, %v1946
  %v1949 = vmul.f32 %v1947, %v1947
  %v1950 = vmul.f32 %v1948, %v1948
  %v1951 = vsel %vm172, %v1949, 0.0
  %1952 = vadd.xlane.f32.xlu0 %v1951
  %v1953 = vpop.xlane.xlu0 %1952
  %v1954 = vsel %vm172, %v1950, 0.0
  %1955 = vadd.xlane.f32.xlu0 %v1954
  %v1956 = vpop.xlane.xlu0 %1955
  %v1957 = vmul.f32 %v1953, %v179
  %v1958 = vmul.f32 %v1956, %v179
  %v1959 = vadd.f32 %v1957, 1e-05
  %v1960 = vadd.f32 %v1958, 1e-05
  %v1961 = vrsqrt.pop %v1959
  %v1962 = vrsqrt.pop %v1960
  %v1963 = vmul.f32 %v1947, %v1961
  %v1964 = vmul.f32 %v1948, %v1962
  %v1966 = vlaneseq
  %v1967 = vshrl.u32 %v1966, 7
  %v1968 = vsub.s32 0, %v1967
  %v1969 = vrot.slane %v1937, %v1968
  %v1971 = vmul.f32 %v1963, %v1969
  %v1972 = vmul.f32 %v1964, %v1969
  %v1974 = vlaneseq
  %v1975 = vshrl.u32 %v1974, 7
  %v1976 = vsub.s32 0, %v1975
  %v1977 = vrot.slane %v1938, %v1976
  %v1979 = vadd.f32 %v1971, %v1977
  %v1980 = vadd.f32 %v1972, %v1977
  %v1981 = vld [vmem:[%s10] sm:$0xff]
  %v1982 = vld [vmem:[%s10 + $0x8] sm:$0xff]
  %v1983 = vld [vmem:[%s10 + $0x10] sm:$0xff]
  %v1984 = vld [vmem:[%s10 + $0x18] sm:$0xff]
  %v1985 = vld [vmem:[%s11] sm:$0x1]
  %v1987 = vlaneseq
  %v1988 = vshrl.u32 %v1987, 7
  %v1989 = vsub.s32 0, %v1988
  %v1990 = vrot.slane %v1985, %v1989
  %v1993 = vsel %vm172, %v1979, 0
  %v1996 = vsel %vm172, %v1980, 0
  %1998 = vmatprep.subr.mxu0 0.0
  %1999 = vmatpush1.msra.mxu0 %v1981
  %2000 = vmatprep.subr.mxu0 0.0
  %2001 = vmatpush1.msra.mxu0 %v1982
  %2002 = vmatprep.subr.mxu0 0.0
  %2003 = vmatpush1.msra.mxu0 %v1983
  %2004 = vmatprep.subr.mxu0 0.0
  %2005 = vmatpush1.msra.mxu0 %v1984
  %2006 = vmatprep.subr.mxu0 0.0
  %2007 = vmatpush1.msra.mxu0 0.0
  %2008 = vmatprep.subr.mxu0 0.0
  %2009 = vmatpush1.msra.mxu0 0.0
  %2010 = vmatprep.subr.mxu0 0.0
  %2011 = vmatpush1.msra.mxu0 0.0
  %2012 = vmatprep.subr.mxu0 0.0
  %2013 = vmatpush1.msra.mxu0 0.0
  %2014 = vmatprep.subr.mxu0 0.0
  %2015 = vmatpush1.msra.mxu0 0.0
  %2016 = vmatprep.subr.mxu0 0.0
  %2017 = vmatpush1.msra.mxu0 0.0
  %2018 = vmatprep.subr.mxu0 0.0
  %2019 = vmatpush1.msra.mxu0 0.0
  %2020 = vmatprep.subr.mxu0 0.0
  %2021 = vmatpush1.msra.mxu0 0.0
  %2022 = vmatprep.subr.mxu0 0.0
  %2023 = vmatpush1.msra.mxu0 0.0
  %2024 = vmatprep.subr.mxu0 0.0
  %2025 = vmatpush1.msra.mxu0 0.0
  %2026 = vmatprep.subr.mxu0 0.0
  %2027 = vmatpush1.msra.mxu0 0.0
  %2028 = vmatprep.subr.mxu0 0.0
  %2029 = vmatpush1.msra.mxu0 0.0
  %2030 = vmatprep.subr.mxu0 0.0
  %2031 = vmatpush1.msra.mxu0 0.0
  %2032 = vmatprep.subr.mxu0 0.0
  %2033 = vmatpush1.msra.mxu0 0.0
  %2034 = vmatprep.subr.mxu0 0.0
  %2035 = vmatpush1.msra.mxu0 0.0
  %2036 = vmatprep.subr.mxu0 0.0
  %2037 = vmatpush1.msra.mxu0 0.0
  %2038 = vmatprep.subr.mxu0 0.0
  %2039 = vmatpush1.msra.mxu0 0.0
  %2040 = vmatprep.subr.mxu0 0.0
  %2041 = vmatpush1.msra.mxu0 0.0
  %2042 = vmatprep.subr.mxu0 0.0
  %2043 = vmatpush1.msra.mxu0 0.0
  %2044 = vmatprep.subr.mxu0 0.0
  %2045 = vmatpush1.msra.mxu0 0.0
  %2046 = vmatprep.subr.mxu0 0.0
  %2047 = vmatpush1.msra.mxu0 0.0
  %2048 = vmatprep.subr.mxu0 0.0
  %2049 = vmatpush1.msra.mxu0 0.0
  %2050 = vmatprep.subr.mxu0 0.0
  %2051 = vmatpush1.msra.mxu0 0.0
  %2052 = vmatprep.subr.mxu0 0.0
  %2053 = vmatpush1.msra.mxu0 0.0
  %2054 = vmatprep.subr.mxu0 0.0
  %2055 = vmatpush1.msra.mxu0 0.0
  %2056 = vmatprep.subr.mxu0 0.0
  %2057 = vmatpush1.msra.mxu0 0.0
  %2058 = vmatprep.subr.mxu0 0.0
  %2059 = vmatpush1.msra.mxu0 0.0
  %2060 = vmatprep.subr.mxu0 0.0
  %2061 = vmatpush1.msra.mxu0 0.0
  %2062 = vmatprep.mubr.f32.mxu0 0.0
  %2063 = vmatmul.mubr.f32.gmra.mrb[0].mxu0 %v1993
  %v2064 = vpop.f32.mrb[0].mxu0
  %v2065 = vadd.f32 %v1990, %v2064
  %v2066 = vpop.f32.mrb[0].mxu0
  %2067 = vmatprep.mubr.f32.mxu0 0.0
  %2068 = vmatmul.mubr.f32.gmra.mrb[0].mxu0 %v1996
  %v2069 = vpop.f32.mrb[0].mxu0
  %v2070 = vadd.f32 %v1990, %v2069
  %v2071 = vpop.f32.mrb[0].mxu0
  %2072 = vdwg.mxu0
  %v2073 = vmax.f32 %v2065, 0.0
  %v2074 = vmax.f32 %v2070, 0.0
  %v2075 = vld [vmem:[%s12] sm:$0xff]
  %v2076 = vld [vmem:[%s12 + $0x8] sm:$0xff]
  %v2077 = vld [vmem:[%s12 + $0x10] sm:$0xff]
  %v2078 = vld [vmem:[%s12 + $0x18] sm:$0xff]
  %v2079 = vld [vmem:[%s12 + $0x20] sm:$0xff]
  %v2080 = vld [vmem:[%s12 + $0x28] sm:$0xff]
  %v2081 = vld [vmem:[%s12 + $0x30] sm:$0xff]
  %v2082 = vld [vmem:[%s12 + $0x38] sm:$0xff]
  %v2083 = vld [vmem:[%s12 + $0x40] sm:$0xff]
  %v2084 = vld [vmem:[%s12 + $0x48] sm:$0xff]
  %v2085 = vld [vmem:[%s12 + $0x50] sm:$0xff]
  %v2086 = vld [vmem:[%s12 + $0x58] sm:$0xff]
  %v2087 = vld [vmem:[%s12 + $0x60] sm:$0xff]
  %v2088 = vld [vmem:[%s12 + $0x68] sm:$0xff]
  %v2089 = vld [vmem:[%s12 + $0x70] sm:$0xff]
  %v2090 = vld [vmem:[%s12 + $0x78] sm:$0xff]
  %2091 = vmatprep.subr.mxu0 0.0
  %2092 = vmatpush1.msra.mxu0 %v2075
  %2093 = vmatprep.subr.mxu0 0.0
  %2094 = vmatpush1.msra.mxu0 %v2076
  %2095 = vmatprep.subr.mxu0 0.0
  %2096 = vmatpush1.msra.mxu0 %v2077
  %2097 = vmatprep.subr.mxu0 0.0
  %2098 = vmatpush1.msra.mxu0 %v2078
  %2099 = vmatprep.subr.mxu0 0.0
  %2100 = vmatpush1.msra.mxu0 %v2079
  %2101 = vmatprep.subr.mxu0 0.0
  %2102 = vmatpush1.msra.mxu0 %v2080
  %2103 = vmatprep.subr.mxu0 0.0
  %2104 = vmatpush1.msra.mxu0 %v2081
  %2105 = vmatprep.subr.mxu0 0.0
  %2106 = vmatpush1.msra.mxu0 %v2082
  %2107 = vmatprep.subr.mxu0 0.0
  %2108 = vmatpush1.msra.mxu0 %v2083
  %2109 = vmatprep.subr.mxu0 0.0
  %2110 = vmatpush1.msra.mxu0 %v2084
  %2111 = vmatprep.subr.mxu0 0.0
  %2112 = vmatpush1.msra.mxu0 %v2085
  %2113 = vmatprep.subr.mxu0 0.0
  %2114 = vmatpush1.msra.mxu0 %v2086
  %2115 = vmatprep.subr.mxu0 0.0
  %2116 = vmatpush1.msra.mxu0 %v2087
  %2117 = vmatprep.subr.mxu0 0.0
  %2118 = vmatpush1.msra.mxu0 %v2088
  %2119 = vmatprep.subr.mxu0 0.0
  %2120 = vmatpush1.msra.mxu0 %v2089
  %2121 = vmatprep.subr.mxu0 0.0
  %2122 = vmatpush1.msra.mxu0 %v2090
  %2123 = vmatprep.subr.mxu0 0.0
  %2124 = vmatpush1.msra.mxu0 0.0
  %2125 = vmatprep.subr.mxu0 0.0
  %2126 = vmatpush1.msra.mxu0 0.0
  %2127 = vmatprep.subr.mxu0 0.0
  %2128 = vmatpush1.msra.mxu0 0.0
  %2129 = vmatprep.subr.mxu0 0.0
  %2130 = vmatpush1.msra.mxu0 0.0
  %2131 = vmatprep.subr.mxu0 0.0
  %2132 = vmatpush1.msra.mxu0 0.0
  %2133 = vmatprep.subr.mxu0 0.0
  %2134 = vmatpush1.msra.mxu0 0.0
  %2135 = vmatprep.subr.mxu0 0.0
  %2136 = vmatpush1.msra.mxu0 0.0
  %2137 = vmatprep.subr.mxu0 0.0
  %2138 = vmatpush1.msra.mxu0 0.0
  %2139 = vmatprep.subr.mxu0 0.0
  %2140 = vmatpush1.msra.mxu0 0.0
  %2141 = vmatprep.subr.mxu0 0.0
  %2142 = vmatpush1.msra.mxu0 0.0
  %2143 = vmatprep.subr.mxu0 0.0
  %2144 = vmatpush1.msra.mxu0 0.0
  %2145 = vmatprep.subr.mxu0 0.0
  %2146 = vmatpush1.msra.mxu0 0.0
  %2147 = vmatprep.subr.mxu0 0.0
  %2148 = vmatpush1.msra.mxu0 0.0
  %2149 = vmatprep.subr.mxu0 0.0
  %2150 = vmatpush1.msra.mxu0 0.0
  %2151 = vmatprep.subr.mxu0 0.0
  %2152 = vmatpush1.msra.mxu0 0.0
  %2153 = vmatprep.subr.mxu0 0.0
  %2154 = vmatpush1.msra.mxu0 0.0
  %2155 = vmatprep.mubr.f32.mxu0 0.0
  %2156 = vmatmul.mubr.f32.gmra.mrb[0].mxu0 %v2073
  %v2157 = vpop.f32.mrb[0].mxu0
  %v2158 = vadd.f32 0.0, %v2157
  %v2159 = vpop.f32.mrb[0].mxu0
  %2160 = vmatprep.mubr.f32.mxu0 0.0
  %2161 = vmatmul.mubr.f32.gmra.mrb[0].mxu0 %v2074
  %v2162 = vpop.f32.mrb[0].mxu0
  %v2163 = vadd.f32 0.0, %v2162
  %v2164 = vpop.f32.mrb[0].mxu0
  %2165 = vdwg.mxu0
  %v2166 = vadd.f32 %v1935, %v2158
  %v2167 = vadd.f32 %v1936, %v2163
  %v2168 = vld [vmem:[%s13] sm:$0x1]
  %v2170 = vlaneseq
  %v2171 = vshrl.u32 %v2170, 7
  %v2172 = vsub.s32 0, %v2171
  %v2173 = vrot.slane %v2168, %v2172
  %v2175 = vadd.f32 %v2166, %v2173
  %v2176 = vadd.f32 %v2167, %v2173
  %s2177 = scalar_lea.vmem %s3, 1
  %v2178 = vld [vmem:[%s2177] sm:$0x1]
  %s2179 = scalar_lea.vmem %s4, 1
  %v2180 = vld [vmem:[%s2179] sm:$0x1]
  %v2181 = vsel %vm172, %v2175, 0.0
  %2182 = vadd.xlane.f32.xlu0 %v2181
  %v2183 = vpop.xlane.xlu0 %2182
  %v2184 = vsel %vm172, %v2176, 0.0
  %2185 = vadd.xlane.f32.xlu0 %v2184
  %v2186 = vpop.xlane.xlu0 %2185
  %v2187 = vmul.f32 %v2183, %v179
  %v2188 = vmul.f32 %v2186, %v179
  %v2189 = vsub.f32 %v2175, %v2187
  %v2190 = vsub.f32 %v2176, %v2188
  %v2191 = vmul.f32 %v2189, %v2189
  %v2192 = vmul.f32 %v2190, %v2190
  %v2193 = vsel %vm172, %v2191, 0.0
  %2194 = vadd.xlane.f32.xlu0 %v2193
  %v2195 = vpop.xlane.xlu0 %2194
  %v2196 = vsel %vm172, %v2192, 0.0
  %2197 = vadd.xlane.f32.xlu0 %v2196
  %v2198 = vpop.xlane.xlu0 %2197
  %v2199 = vmul.f32 %v2195, %v179
  %v2200 = vmul.f32 %v2198, %v179
  %v2201 = vadd.f32 %v2199, 1e-05
  %v2202 = vadd.f32 %v2200, 1e-05
  %v2203 = vrsqrt.pop %v2201
  %v2204 = vrsqrt.pop %v2202
  %v2205 = vmul.f32 %v2189, %v2203
  %v2206 = vmul.f32 %v2190, %v2204
  %v2208 = vlaneseq
  %v2209 = vshrl.u32 %v2208, 7
  %v2210 = vsub.s32 0, %v2209
  %v2211 = vrot.slane %v2178, %v2210
  %v2213 = vmul.f32 %v2205, %v2211
  %v2214 = vmul.f32 %v2206, %v2211
  %v2216 = vlaneseq
  %v2217 = vshrl.u32 %v2216, 7
  %v2218 = vsub.s32 0, %v2217
  %v2219 = vrot.slane %v2180, %v2218
  %v2221 = vadd.f32 %v2213, %v2219
  %v2222 = vadd.f32 %v2214, %v2219
  %s2223 = scalar_lea.vmem %s5, 32
  %v2224 = vld [vmem:[%s2223] sm:$0xff]
  %v2225 = vld [vmem:[%s2223 + $0x8] sm:$0xff]
  %v2226 = vld [vmem:[%s2223 + $0x10] sm:$0xff]
  %v2227 = vld [vmem:[%s2223 + $0x18] sm:$0xff]
  %v2229 = vsel %vm172, %v2221, 0
  %v2232 = vsel %vm172, %v2222, 0
  %2234 = vmatprep.subr.mxu0 0.0
  %2235 = vmatpush1.msra.mxu0 %v2224
  %2236 = vmatprep.subr.mxu0 0.0
  %2237 = vmatpush1.msra.mxu0 %v2225
  %2238 = vmatprep.subr.mxu0 0.0
  %2239 = vmatpush1.msra.mxu0 %v2226
  %2240 = vmatprep.subr.mxu0 0.0
  %2241 = vmatpush1.msra.mxu0 %v2227
  %2242 = vmatprep.subr.mxu0 0.0
  %2243 = vmatpush1.msra.mxu0 0.0
  %2244 = vmatprep.subr.mxu0 0.0
  %2245 = vmatpush1.msra.mxu0 0.0
  %2246 = vmatprep.subr.mxu0 0.0
  %2247 = vmatpush1.msra.mxu0 0.0
  %2248 = vmatprep.subr.mxu0 0.0
  %2249 = vmatpush1.msra.mxu0 0.0
  %2250 = vmatprep.subr.mxu0 0.0
  %2251 = vmatpush1.msra.mxu0 0.0
  %2252 = vmatprep.subr.mxu0 0.0
  %2253 = vmatpush1.msra.mxu0 0.0
  %2254 = vmatprep.subr.mxu0 0.0
  %2255 = vmatpush1.msra.mxu0 0.0
  %2256 = vmatprep.subr.mxu0 0.0
  %2257 = vmatpush1.msra.mxu0 0.0
  %2258 = vmatprep.subr.mxu0 0.0
  %2259 = vmatpush1.msra.mxu0 0.0
  %2260 = vmatprep.subr.mxu0 0.0
  %2261 = vmatpush1.msra.mxu0 0.0
  %2262 = vmatprep.subr.mxu0 0.0
  %2263 = vmatpush1.msra.mxu0 0.0
  %2264 = vmatprep.subr.mxu0 0.0
  %2265 = vmatpush1.msra.mxu0 0.0
  %2266 = vmatprep.subr.mxu0 0.0
  %2267 = vmatpush1.msra.mxu0 0.0
  %2268 = vmatprep.subr.mxu0 0.0
  %2269 = vmatpush1.msra.mxu0 0.0
  %2270 = vmatprep.subr.mxu0 0.0
  %2271 = vmatpush1.msra.mxu0 0.0
  %2272 = vmatprep.subr.mxu0 0.0
  %2273 = vmatpush1.msra.mxu0 0.0
  %2274 = vmatprep.subr.mxu0 0.0
  %2275 = vmatpush1.msra.mxu0 0.0
  %2276 = vmatprep.subr.mxu0 0.0
  %2277 = vmatpush1.msra.mxu0 0.0
  %2278 = vmatprep.subr.mxu0 0.0
  %2279 = vmatpush1.msra.mxu0 0.0
  %2280 = vmatprep.subr.mxu0 0.0
  %2281 = vmatpush1.msra.mxu0 0.0
  %2282 = vmatprep.subr.mxu0 0.0
  %2283 = vmatpush1.msra.mxu0 0.0
  %2284 = vmatprep.subr.mxu0 0.0
  %2285 = vmatpush1.msra.mxu0 0.0
  %2286 = vmatprep.subr.mxu0 0.0
  %2287 = vmatpush1.msra.mxu0 0.0
  %2288 = vmatprep.subr.mxu0 0.0
  %2289 = vmatpush1.msra.mxu0 0.0
  %2290 = vmatprep.subr.mxu0 0.0
  %2291 = vmatpush1.msra.mxu0 0.0
  %2292 = vmatprep.subr.mxu0 0.0
  %2293 = vmatpush1.msra.mxu0 0.0
  %2294 = vmatprep.subr.mxu0 0.0
  %2295 = vmatpush1.msra.mxu0 0.0
  %2296 = vmatprep.subr.mxu0 0.0
  %2297 = vmatpush1.msra.mxu0 0.0
  %2298 = vmatprep.mubr.f32.mxu0 0.0
  %2299 = vmatmul.mubr.f32.gmra.mrb[0].mxu0 %v2229
  %v2300 = vpop.f32.mrb[0].mxu0
  %v2301 = vadd.f32 0.0, %v2300
  %v2302 = vpop.f32.mrb[0].mxu0
  %2303 = vmatprep.mubr.f32.mxu0 0.0
  %2304 = vmatmul.mubr.f32.gmra.mrb[0].mxu0 %v2232
  %v2305 = vpop.f32.mrb[0].mxu0
  %v2306 = vadd.f32 0.0, %v2305
  %v2307 = vpop.f32.mrb[0].mxu0
  %2308 = vdwg.mxu0
  %v2309 = vmul.f32 %v2301, 0.4204482
  %v2310 = vmul.f32 %v2306, 0.4204482
  %s2311 = scalar_lea.vmem %s6, 32
  %v2312 = vld [vmem:[%s2311] sm:$0xff]
  %v2313 = vld [vmem:[%s2311 + $0x8] sm:$0xff]
  %v2314 = vld [vmem:[%s2311 + $0x10] sm:$0xff]
  %v2315 = vld [vmem:[%s2311 + $0x18] sm:$0xff]
  %v2317 = vsel %vm307, %v2309, 0
  %2319 = vmatprep.subr.mxu0 0.0
  %2320 = vmatpush1.xpose.msra.mxu0 %v2317
  %2321 = vmatprep.subr.mxu0 0.0
  %2322 = vmatpush1.xpose.msra.mxu0 0.0
  %2323 = vmatprep.subr.mxu0 0.0
  %2324 = vmatpush1.xpose.msra.mxu0 0.0
  %2325 = vmatprep.subr.mxu0 0.0
  %2326 = vmatpush1.xpose.msra.mxu0 0.0
  %2327 = vmatprep.subr.mxu0 0.0
  %2328 = vmatpush1.xpose.msra.mxu0 0.0
  %2329 = vmatprep.subr.mxu0 0.0
  %2330 = vmatpush1.xpose.msra.mxu0 0.0
  %2331 = vmatprep.subr.mxu0 0.0
  %2332 = vmatpush1.xpose.msra.mxu0 0.0
  %2333 = vmatprep.subr.mxu0 0.0
  %2334 = vmatpush1.xpose.msra.mxu0 0.0
  %2335 = vmatprep.subr.mxu0 0.0
  %2336 = vmatpush1.xpose.msra.mxu0 0.0
  %2337 = vmatprep.subr.mxu0 0.0
  %2338 = vmatpush1.xpose.msra.mxu0 0.0
  %2339 = vmatprep.subr.mxu0 0.0
  %2340 = vmatpush1.xpose.msra.mxu0 0.0
  %2341 = vmatprep.subr.mxu0 0.0
  %2342 = vmatpush1.xpose.msra.mxu0 0.0
  %2343 = vmatprep.subr.mxu0 0.0
  %2344 = vmatpush1.xpose.msra.mxu0 0.0
  %2345 = vmatprep.subr.mxu0 0.0
  %2346 = vmatpush1.xpose.msra.mxu0 0.0
  %2347 = vmatprep.subr.mxu0 0.0
  %2348 = vmatpush1.xpose.msra.mxu0 0.0
  %2349 = vmatprep.subr.mxu0 0.0
  %2350 = vmatpush1.xpose.msra.mxu0 0.0
  %2351 = vmatprep.subr.mxu0 0.0
  %2352 = vmatpush1.xpose.msra.mxu0 0.0
  %2353 = vmatprep.subr.mxu0 0.0
  %2354 = vmatpush1.xpose.msra.mxu0 0.0
  %2355 = vmatprep.subr.mxu0 0.0
  %2356 = vmatpush1.xpose.msra.mxu0 0.0
  %2357 = vmatprep.subr.mxu0 0.0
  %2358 = vmatpush1.xpose.msra.mxu0 0.0
  %2359 = vmatprep.subr.mxu0 0.0
  %2360 = vmatpush1.xpose.msra.mxu0 0.0
  %2361 = vmatprep.subr.mxu0 0.0
  %2362 = vmatpush1.xpose.msra.mxu0 0.0
  %2363 = vmatprep.subr.mxu0 0.0
  %2364 = vmatpush1.xpose.msra.mxu0 0.0
  %2365 = vmatprep.subr.mxu0 0.0
  %2366 = vmatpush1.xpose.msra.mxu0 0.0
  %2367 = vmatprep.subr.mxu0 0.0
  %2368 = vmatpush1.xpose.msra.mxu0 0.0
  %2369 = vmatprep.subr.mxu0 0.0
  %2370 = vmatpush1.xpose.msra.mxu0 0.0
  %2371 = vmatprep.subr.mxu0 0.0
  %2372 = vmatpush1.xpose.msra.mxu0 0.0
  %2373 = vmatprep.subr.mxu0 0.0
  %2374 = vmatpush1.xpose.msra.mxu0 0.0
  %2375 = vmatprep.subr.mxu0 0.0
  %2376 = vmatpush1.xpose.msra.mxu0 0.0
  %2377 = vmatprep.subr.mxu0 0.0
  %2378 = vmatpush1.xpose.msra.mxu0 0.0
  %2379 = vmatprep.subr.mxu0 0.0
  %2380 = vmatpush1.xpose.msra.mxu0 0.0
  %2381 = vmatprep.subr.mxu0 0.0
  %2382 = vmatpush1.xpose.msra.mxu0 0.0
  %2383 = vmatprep.mubr.f32.mxu0 0.0
  %2384 = vmatmul.mubr.f32.gmra.mrb[0].mxu0 %v2317
  %v2385 = vpop.f32.mrb[0].mxu0
  %v2386 = vadd.f32 0.0, %v2385
  %v2387 = vpop.f32.mrb[0].mxu0
  %2388 = vdwg.mxu0
  %v2390 = vsel %vm307, %v2310, 0
  %2392 = vmatprep.subr.mxu0 0.0
  %2393 = vmatpush1.xpose.msra.mxu0 %v2390
  %2394 = vmatprep.subr.mxu0 0.0
  %2395 = vmatpush1.xpose.msra.mxu0 0.0
  %2396 = vmatprep.subr.mxu0 0.0
  %2397 = vmatpush1.xpose.msra.mxu0 0.0
  %2398 = vmatprep.subr.mxu0 0.0
  %2399 = vmatpush1.xpose.msra.mxu0 0.0
  %2400 = vmatprep.subr.mxu0 0.0
  %2401 = vmatpush1.xpose.msra.mxu0 0.0
  %2402 = vmatprep.subr.mxu0 0.0
  %2403 = vmatpush1.xpose.msra.mxu0 0.0
  %2404 = vmatprep.subr.mxu0 0.0
  %2405 = vmatpush1.xpose.msra.mxu0 0.0
  %2406 = vmatprep.subr.mxu0 0.0
  %2407 = vmatpush1.xpose.msra.mxu0 0.0
  %2408 = vmatprep.subr.mxu0 0.0
  %2409 = vmatpush1.xpose.msra.mxu0 0.0
  %2410 = vmatprep.subr.mxu0 0.0
  %2411 = vmatpush1.xpose.msra.mxu0 0.0
  %2412 = vmatprep.subr.mxu0 0.0
  %2413 = vmatpush1.xpose.msra.mxu0 0.0
  %2414 = vmatprep.subr.mxu0 0.0
  %2415 = vmatpush1.xpose.msra.mxu0 0.0
  %2416 = vmatprep.subr.mxu0 0.0
  %2417 = vmatpush1.xpose.msra.mxu0 0.0
  %2418 = vmatprep.subr.mxu0 0.0
  %2419 = vmatpush1.xpose.msra.mxu0 0.0
  %2420 = vmatprep.subr.mxu0 0.0
  %2421 = vmatpush1.xpose.msra.mxu0 0.0
  %2422 = vmatprep.subr.mxu0 0.0
  %2423 = vmatpush1.xpose.msra.mxu0 0.0
  %2424 = vmatprep.subr.mxu0 0.0
  %2425 = vmatpush1.xpose.msra.mxu0 0.0
  %2426 = vmatprep.subr.mxu0 0.0
  %2427 = vmatpush1.xpose.msra.mxu0 0.0
  %2428 = vmatprep.subr.mxu0 0.0
  %2429 = vmatpush1.xpose.msra.mxu0 0.0
  %2430 = vmatprep.subr.mxu0 0.0
  %2431 = vmatpush1.xpose.msra.mxu0 0.0
  %2432 = vmatprep.subr.mxu0 0.0
  %2433 = vmatpush1.xpose.msra.mxu0 0.0
  %2434 = vmatprep.subr.mxu0 0.0
  %2435 = vmatpush1.xpose.msra.mxu0 0.0
  %2436 = vmatprep.subr.mxu0 0.0
  %2437 = vmatpush1.xpose.msra.mxu0 0.0
  %2438 = vmatprep.subr.mxu0 0.0
  %2439 = vmatpush1.xpose.msra.mxu0 0.0
  %2440 = vmatprep.subr.mxu0 0.0
  %2441 = vmatpush1.xpose.msra.mxu0 0.0
  %2442 = vmatprep.subr.mxu0 0.0
  %2443 = vmatpush1.xpose.msra.mxu0 0.0
  %2444 = vmatprep.subr.mxu0 0.0
  %2445 = vmatpush1.xpose.msra.mxu0 0.0
  %2446 = vmatprep.subr.mxu0 0.0
  %2447 = vmatpush1.xpose.msra.mxu0 0.0
  %2448 = vmatprep.subr.mxu0 0.0
  %2449 = vmatpush1.xpose.msra.mxu0 0.0
  %2450 = vmatprep.subr.mxu0 0.0
  %2451 = vmatpush1.xpose.msra.mxu0 0.0
  %2452 = vmatprep.subr.mxu0 0.0
  %2453 = vmatpush1.xpose.msra.mxu0 0.0
  %2454 = vmatprep.subr.mxu0 0.0
  %2455 = vmatpush1.xpose.msra.mxu0 0.0
  %2456 = vmatprep.mubr.f32.mxu0 0.0
  %2457 = vmatmul.mubr.f32.gmra.mrb[0].mxu0 %v2390
  %v2458 = vpop.f32.mrb[0].mxu0
  %v2459 = vadd.f32 0.0, %v2458
  %v2460 = vpop.f32.mrb[0].mxu0
  %2461 = vdwg.mxu0
  %v2462 = vsel %vm169, %v2386, -1e+30
  %v2463 = vsel %vm169, %v2459, -1e+30
  %v2464 = vsel %vm307, %v2462, -inf
  %2465 = vmax.xlane.f32.xlu0 %v2464
  %v2466 = vpop.xlane.xlu0 %2465
  %v2467 = vsel %vm307, %v2463, -inf
  %2468 = vmax.xlane.f32.xlu0 %v2467
  %v2469 = vpop.xlane.xlu0 %2468
  %v2470 = vsub.f32 %v2462, %v2466
  %v2471 = vsub.f32 %v2463, %v2469
  %v2472 = vmul.f32 %v2470, 1.442695
  %v2473 = vpow.pop %v2472
  %v2474 = vmul.f32 %v2471, 1.442695
  %v2475 = vpow.pop %v2474
  %v2476 = vsel %vm307, %v2473, 0.0
  %2477 = vadd.xlane.f32.xlu0 %v2476
  %v2478 = vpop.xlane.xlu0 %2477
  %v2479 = vsel %vm307, %v2475, 0.0
  %2480 = vadd.xlane.f32.xlu0 %v2479
  %v2481 = vpop.xlane.xlu0 %2480
  %v2482 = vrcp.pop %v2478
  %v2483 = vrcp.pop %v2481
  %v2484 = vmul.f32 %v2473, %v2482
  %v2485 = vmul.f32 %v2475, %v2483
  %v2487 = vsel %vm307, %v2484, 0
  %2489 = vmatprep.subr.mxu0 0.0
  %2490 = vmatpush1.msra.mxu0 %v2301
  %2491 = vmatprep.subr.mxu0 0.0
  %2492 = vmatpush1.msra.mxu0 0.0
  %2493 = vmatprep.subr.mxu0 0.0
  %2494 = vmatpush1.msra.mxu0 0.0
  %2495 = vmatprep.subr.mxu0 0.0
  %2496 = vmatpush1.msra.mxu0 0.0
  %2497 = vmatprep.subr.mxu0 0.0
  %2498 = vmatpush1.msra.mxu0 0.0
  %2499 = vmatprep.subr.mxu0 0.0
  %2500 = vmatpush1.msra.mxu0 0.0
  %2501 = vmatprep.subr.mxu0 0.0
  %2502 = vmatpush1.msra.mxu0 0.0
  %2503 = vmatprep.subr.mxu0 0.0
  %2504 = vmatpush1.msra.mxu0 0.0
  %2505 = vmatprep.subr.mxu0 0.0
  %2506 = vmatpush1.msra.mxu0 0.0
  %2507 = vmatprep.subr.mxu0 0.0
  %2508 = vmatpush1.msra.mxu0 0.0
  %2509 = vmatprep.subr.mxu0 0.0
  %2510 = vmatpush1.msra.mxu0 0.0
  %2511 = vmatprep.subr.mxu0 0.0
  %2512 = vmatpush1.msra.mxu0 0.0
  %2513 = vmatprep.subr.mxu0 0.0
  %2514 = vmatpush1.msra.mxu0 0.0
  %2515 = vmatprep.subr.mxu0 0.0
  %2516 = vmatpush1.msra.mxu0 0.0
  %2517 = vmatprep.subr.mxu0 0.0
  %2518 = vmatpush1.msra.mxu0 0.0
  %2519 = vmatprep.subr.mxu0 0.0
  %2520 = vmatpush1.msra.mxu0 0.0
  %2521 = vmatprep.subr.mxu0 0.0
  %2522 = vmatpush1.msra.mxu0 0.0
  %2523 = vmatprep.subr.mxu0 0.0
  %2524 = vmatpush1.msra.mxu0 0.0
  %2525 = vmatprep.subr.mxu0 0.0
  %2526 = vmatpush1.msra.mxu0 0.0
  %2527 = vmatprep.subr.mxu0 0.0
  %2528 = vmatpush1.msra.mxu0 0.0
  %2529 = vmatprep.subr.mxu0 0.0
  %2530 = vmatpush1.msra.mxu0 0.0
  %2531 = vmatprep.subr.mxu0 0.0
  %2532 = vmatpush1.msra.mxu0 0.0
  %2533 = vmatprep.subr.mxu0 0.0
  %2534 = vmatpush1.msra.mxu0 0.0
  %2535 = vmatprep.subr.mxu0 0.0
  %2536 = vmatpush1.msra.mxu0 0.0
  %2537 = vmatprep.subr.mxu0 0.0
  %2538 = vmatpush1.msra.mxu0 0.0
  %2539 = vmatprep.subr.mxu0 0.0
  %2540 = vmatpush1.msra.mxu0 0.0
  %2541 = vmatprep.subr.mxu0 0.0
  %2542 = vmatpush1.msra.mxu0 0.0
  %2543 = vmatprep.subr.mxu0 0.0
  %2544 = vmatpush1.msra.mxu0 0.0
  %2545 = vmatprep.subr.mxu0 0.0
  %2546 = vmatpush1.msra.mxu0 0.0
  %2547 = vmatprep.subr.mxu0 0.0
  %2548 = vmatpush1.msra.mxu0 0.0
  %2549 = vmatprep.subr.mxu0 0.0
  %2550 = vmatpush1.msra.mxu0 0.0
  %2551 = vmatprep.subr.mxu0 0.0
  %2552 = vmatpush1.msra.mxu0 0.0
  %2553 = vmatprep.mubr.f32.mxu0 0.0
  %2554 = vmatmul.mubr.f32.gmra.mrb[0].mxu0 %v2487
  %v2555 = vpop.f32.mrb[0].mxu0
  %v2556 = vadd.f32 0.0, %v2555
  %v2557 = vpop.f32.mrb[0].mxu0
  %2558 = vdwg.mxu0
  %v2560 = vsel %vm307, %v2485, 0
  %2562 = vmatprep.subr.mxu0 0.0
  %2563 = vmatpush1.msra.mxu0 %v2306
  %2564 = vmatprep.subr.mxu0 0.0
  %2565 = vmatpush1.msra.mxu0 0.0
  %2566 = vmatprep.subr.mxu0 0.0
  %2567 = vmatpush1.msra.mxu0 0.0
  %2568 = vmatprep.subr.mxu0 0.0
  %2569 = vmatpush1.msra.mxu0 0.0
  %2570 = vmatprep.subr.mxu0 0.0
  %2571 = vmatpush1.msra.mxu0 0.0
  %2572 = vmatprep.subr.mxu0 0.0
  %2573 = vmatpush1.msra.mxu0 0.0
  %2574 = vmatprep.subr.mxu0 0.0
  %2575 = vmatpush1.msra.mxu0 0.0
  %2576 = vmatprep.subr.mxu0 0.0
  %2577 = vmatpush1.msra.mxu0 0.0
  %2578 = vmatprep.subr.mxu0 0.0
  %2579 = vmatpush1.msra.mxu0 0.0
  %2580 = vmatprep.subr.mxu0 0.0
  %2581 = vmatpush1.msra.mxu0 0.0
  %2582 = vmatprep.subr.mxu0 0.0
  %2583 = vmatpush1.msra.mxu0 0.0
  %2584 = vmatprep.subr.mxu0 0.0
  %2585 = vmatpush1.msra.mxu0 0.0
  %2586 = vmatprep.subr.mxu0 0.0
  %2587 = vmatpush1.msra.mxu0 0.0
  %2588 = vmatprep.subr.mxu0 0.0
  %2589 = vmatpush1.msra.mxu0 0.0
  %2590 = vmatprep.subr.mxu0 0.0
  %2591 = vmatpush1.msra.mxu0 0.0
  %2592 = vmatprep.subr.mxu0 0.0
  %2593 = vmatpush1.msra.mxu0 0.0
  %2594 = vmatprep.subr.mxu0 0.0
  %2595 = vmatpush1.msra.mxu0 0.0
  %2596 = vmatprep.subr.mxu0 0.0
  %2597 = vmatpush1.msra.mxu0 0.0
  %2598 = vmatprep.subr.mxu0 0.0
  %2599 = vmatpush1.msra.mxu0 0.0
  %2600 = vmatprep.subr.mxu0 0.0
  %2601 = vmatpush1.msra.mxu0 0.0
  %2602 = vmatprep.subr.mxu0 0.0
  %2603 = vmatpush1.msra.mxu0 0.0
  %2604 = vmatprep.subr.mxu0 0.0
  %2605 = vmatpush1.msra.mxu0 0.0
  %2606 = vmatprep.subr.mxu0 0.0
  %2607 = vmatpush1.msra.mxu0 0.0
  %2608 = vmatprep.subr.mxu0 0.0
  %2609 = vmatpush1.msra.mxu0 0.0
  %2610 = vmatprep.subr.mxu0 0.0
  %2611 = vmatpush1.msra.mxu0 0.0
  %2612 = vmatprep.subr.mxu0 0.0
  %2613 = vmatpush1.msra.mxu0 0.0
  %2614 = vmatprep.subr.mxu0 0.0
  %2615 = vmatpush1.msra.mxu0 0.0
  %2616 = vmatprep.subr.mxu0 0.0
  %2617 = vmatpush1.msra.mxu0 0.0
  %2618 = vmatprep.subr.mxu0 0.0
  %2619 = vmatpush1.msra.mxu0 0.0
  %2620 = vmatprep.subr.mxu0 0.0
  %2621 = vmatpush1.msra.mxu0 0.0
  %2622 = vmatprep.subr.mxu0 0.0
  %2623 = vmatpush1.msra.mxu0 0.0
  %2624 = vmatprep.subr.mxu0 0.0
  %2625 = vmatpush1.msra.mxu0 0.0
  %2626 = vmatprep.mubr.f32.mxu0 0.0
  %2627 = vmatmul.mubr.f32.gmra.mrb[0].mxu0 %v2560
  %v2628 = vpop.f32.mrb[0].mxu0
  %v2629 = vadd.f32 0.0, %v2628
  %v2630 = vpop.f32.mrb[0].mxu0
  %2631 = vdwg.mxu0
  %2632 = vrot.lane.b32.xlu0 %v2309, 120
  %v2633 = vpop.permute.xlu0 %2632
  %v2634 = vsel %vm307, %v2633, 0
  %2636 = vmatprep.subr.mxu0 0.0
  %2637 = vmatpush1.xpose.msra.mxu0 %v2634
  %2638 = vmatprep.subr.mxu0 0.0
  %2639 = vmatpush1.xpose.msra.mxu0 0.0
  %2640 = vmatprep.subr.mxu0 0.0
  %2641 = vmatpush1.xpose.msra.mxu0 0.0
  %2642 = vmatprep.subr.mxu0 0.0
  %2643 = vmatpush1.xpose.msra.mxu0 0.0
  %2644 = vmatprep.subr.mxu0 0.0
  %2645 = vmatpush1.xpose.msra.mxu0 0.0
  %2646 = vmatprep.subr.mxu0 0.0
  %2647 = vmatpush1.xpose.msra.mxu0 0.0
  %2648 = vmatprep.subr.mxu0 0.0
  %2649 = vmatpush1.xpose.msra.mxu0 0.0
  %2650 = vmatprep.subr.mxu0 0.0
  %2651 = vmatpush1.xpose.msra.mxu0 0.0
  %2652 = vmatprep.subr.mxu0 0.0
  %2653 = vmatpush1.xpose.msra.mxu0 0.0
  %2654 = vmatprep.subr.mxu0 0.0
  %2655 = vmatpush1.xpose.msra.mxu0 0.0
  %2656 = vmatprep.subr.mxu0 0.0
  %2657 = vmatpush1.xpose.msra.mxu0 0.0
  %2658 = vmatprep.subr.mxu0 0.0
  %2659 = vmatpush1.xpose.msra.mxu0 0.0
  %2660 = vmatprep.subr.mxu0 0.0
  %2661 = vmatpush1.xpose.msra.mxu0 0.0
  %2662 = vmatprep.subr.mxu0 0.0
  %2663 = vmatpush1.xpose.msra.mxu0 0.0
  %2664 = vmatprep.subr.mxu0 0.0
  %2665 = vmatpush1.xpose.msra.mxu0 0.0
  %2666 = vmatprep.subr.mxu0 0.0
  %2667 = vmatpush1.xpose.msra.mxu0 0.0
  %2668 = vmatprep.subr.mxu0 0.0
  %2669 = vmatpush1.xpose.msra.mxu0 0.0
  %2670 = vmatprep.subr.mxu0 0.0
  %2671 = vmatpush1.xpose.msra.mxu0 0.0
  %2672 = vmatprep.subr.mxu0 0.0
  %2673 = vmatpush1.xpose.msra.mxu0 0.0
  %2674 = vmatprep.subr.mxu0 0.0
  %2675 = vmatpush1.xpose.msra.mxu0 0.0
  %2676 = vmatprep.subr.mxu0 0.0
  %2677 = vmatpush1.xpose.msra.mxu0 0.0
  %2678 = vmatprep.subr.mxu0 0.0
  %2679 = vmatpush1.xpose.msra.mxu0 0.0
  %2680 = vmatprep.subr.mxu0 0.0
  %2681 = vmatpush1.xpose.msra.mxu0 0.0
  %2682 = vmatprep.subr.mxu0 0.0
  %2683 = vmatpush1.xpose.msra.mxu0 0.0
  %2684 = vmatprep.subr.mxu0 0.0
  %2685 = vmatpush1.xpose.msra.mxu0 0.0
  %2686 = vmatprep.subr.mxu0 0.0
  %2687 = vmatpush1.xpose.msra.mxu0 0.0
  %2688 = vmatprep.subr.mxu0 0.0
  %2689 = vmatpush1.xpose.msra.mxu0 0.0
  %2690 = vmatprep.subr.mxu0 0.0
  %2691 = vmatpush1.xpose.msra.mxu0 0.0
  %2692 = vmatprep.subr.mxu0 0.0
  %2693 = vmatpush1.xpose.msra.mxu0 0.0
  %2694 = vmatprep.subr.mxu0 0.0
  %2695 = vmatpush1.xpose.msra.mxu0 0.0
  %2696 = vmatprep.subr.mxu0 0.0
  %2697 = vmatpush1.xpose.msra.mxu0 0.0
  %2698 = vmatprep.subr.mxu0 0.0
  %2699 = vmatpush1.xpose.msra.mxu0 0.0
  %2700 = vmatprep.mubr.f32.mxu0 0.0
  %2701 = vmatmul.mubr.f32.gmra.mrb[0].mxu0 %v2634
  %v2702 = vpop.f32.mrb[0].mxu0
  %v2703 = vadd.f32 0.0, %v2702
  %v2704 = vpop.f32.mrb[0].mxu0
  %2705 = vdwg.mxu0
  %2706 = vrot.lane.b32.xlu0 %v2310, 120
  %v2707 = vpop.permute.xlu0 %2706
  %v2708 = vsel %vm307, %v2707, 0
  %2710 = vmatprep.subr.mxu0 0.0
  %2711 = vmatpush1.xpose.msra.mxu0 %v2708
  %2712 = vmatprep.subr.mxu0 0.0
  %2713 = vmatpush1.xpose.msra.mxu0 0.0
  %2714 = vmatprep.subr.mxu0 0.0
  %2715 = vmatpush1.xpose.msra.mxu0 0.0
  %2716 = vmatprep.subr.mxu0 0.0
  %2717 = vmatpush1.xpose.msra.mxu0 0.0
  %2718 = vmatprep.subr.mxu0 0.0
  %2719 = vmatpush1.xpose.msra.mxu0 0.0
  %2720 = vmatprep.subr.mxu0 0.0
  %2721 = vmatpush1.xpose.msra.mxu0 0.0
  %2722 = vmatprep.subr.mxu0 0.0
  %2723 = vmatpush1.xpose.msra.mxu0 0.0
  %2724 = vmatprep.subr.mxu0 0.0
  %2725 = vmatpush1.xpose.msra.mxu0 0.0
  %2726 = vmatprep.subr.mxu0 0.0
  %2727 = vmatpush1.xpose.msra.mxu0 0.0
  %2728 = vmatprep.subr.mxu0 0.0
  %2729 = vmatpush1.xpose.msra.mxu0 0.0
  %2730 = vmatprep.subr.mxu0 0.0
  %2731 = vmatpush1.xpose.msra.mxu0 0.0
  %2732 = vmatprep.subr.mxu0 0.0
  %2733 = vmatpush1.xpose.msra.mxu0 0.0
  %2734 = vmatprep.subr.mxu0 0.0
  %2735 = vmatpush1.xpose.msra.mxu0 0.0
  %2736 = vmatprep.subr.mxu0 0.0
  %2737 = vmatpush1.xpose.msra.mxu0 0.0
  %2738 = vmatprep.subr.mxu0 0.0
  %2739 = vmatpush1.xpose.msra.mxu0 0.0
  %2740 = vmatprep.subr.mxu0 0.0
  %2741 = vmatpush1.xpose.msra.mxu0 0.0
  %2742 = vmatprep.subr.mxu0 0.0
  %2743 = vmatpush1.xpose.msra.mxu0 0.0
  %2744 = vmatprep.subr.mxu0 0.0
  %2745 = vmatpush1.xpose.msra.mxu0 0.0
  %2746 = vmatprep.subr.mxu0 0.0
  %2747 = vmatpush1.xpose.msra.mxu0 0.0
  %2748 = vmatprep.subr.mxu0 0.0
  %2749 = vmatpush1.xpose.msra.mxu0 0.0
  %2750 = vmatprep.subr.mxu0 0.0
  %2751 = vmatpush1.xpose.msra.mxu0 0.0
  %2752 = vmatprep.subr.mxu0 0.0
  %2753 = vmatpush1.xpose.msra.mxu0 0.0
  %2754 = vmatprep.subr.mxu0 0.0
  %2755 = vmatpush1.xpose.msra.mxu0 0.0
  %2756 = vmatprep.subr.mxu0 0.0
  %2757 = vmatpush1.xpose.msra.mxu0 0.0
  %2758 = vmatprep.subr.mxu0 0.0
  %2759 = vmatpush1.xpose.msra.mxu0 0.0
  %2760 = vmatprep.subr.mxu0 0.0
  %2761 = vmatpush1.xpose.msra.mxu0 0.0
  %2762 = vmatprep.subr.mxu0 0.0
  %2763 = vmatpush1.xpose.msra.mxu0 0.0
  %2764 = vmatprep.subr.mxu0 0.0
  %2765 = vmatpush1.xpose.msra.mxu0 0.0
  %2766 = vmatprep.subr.mxu0 0.0
  %2767 = vmatpush1.xpose.msra.mxu0 0.0
  %2768 = vmatprep.subr.mxu0 0.0
  %2769 = vmatpush1.xpose.msra.mxu0 0.0
  %2770 = vmatprep.subr.mxu0 0.0
  %2771 = vmatpush1.xpose.msra.mxu0 0.0
  %2772 = vmatprep.subr.mxu0 0.0
  %2773 = vmatpush1.xpose.msra.mxu0 0.0
  %2774 = vmatprep.mubr.f32.mxu0 0.0
  %2775 = vmatmul.mubr.f32.gmra.mrb[0].mxu0 %v2708
  %v2776 = vpop.f32.mrb[0].mxu0
  %v2777 = vadd.f32 0.0, %v2776
  %v2778 = vpop.f32.mrb[0].mxu0
  %2779 = vdwg.mxu0
  %v2780 = vsel %vm169, %v2703, -1e+30
  %v2781 = vsel %vm169, %v2777, -1e+30
  %v2782 = vsel %vm307, %v2780, -inf
  %2783 = vmax.xlane.f32.xlu0 %v2782
  %v2784 = vpop.xlane.xlu0 %2783
  %v2785 = vsel %vm307, %v2781, -inf
  %2786 = vmax.xlane.f32.xlu0 %v2785
  %v2787 = vpop.xlane.xlu0 %2786
  %v2788 = vsub.f32 %v2780, %v2784
  %v2789 = vsub.f32 %v2781, %v2787
  %v2790 = vmul.f32 %v2788, 1.442695
  %v2791 = vpow.pop %v2790
  %v2792 = vmul.f32 %v2789, 1.442695
  %v2793 = vpow.pop %v2792
  %v2794 = vsel %vm307, %v2791, 0.0
  %2795 = vadd.xlane.f32.xlu0 %v2794
  %v2796 = vpop.xlane.xlu0 %2795
  %v2797 = vsel %vm307, %v2793, 0.0
  %2798 = vadd.xlane.f32.xlu0 %v2797
  %v2799 = vpop.xlane.xlu0 %2798
  %v2800 = vrcp.pop %v2796
  %v2801 = vrcp.pop %v2799
  %v2802 = vmul.f32 %v2791, %v2800
  %v2803 = vmul.f32 %v2793, %v2801
  %2805 = vrot.lane.b32.xlu0 %v2301, 120
  %v2806 = vpop.permute.xlu0 %2805
  %v2809 = vsel %vm307, %v2802, 0
  %2811 = vmatprep.subr.mxu0 0.0
  %2812 = vmatpush1.msra.mxu0 %v2806
  %2813 = vmatprep.subr.mxu0 0.0
  %2814 = vmatpush1.msra.mxu0 0.0
  %2815 = vmatprep.subr.mxu0 0.0
  %2816 = vmatpush1.msra.mxu0 0.0
  %2817 = vmatprep.subr.mxu0 0.0
  %2818 = vmatpush1.msra.mxu0 0.0
  %2819 = vmatprep.subr.mxu0 0.0
  %2820 = vmatpush1.msra.mxu0 0.0
  %2821 = vmatprep.subr.mxu0 0.0
  %2822 = vmatpush1.msra.mxu0 0.0
  %2823 = vmatprep.subr.mxu0 0.0
  %2824 = vmatpush1.msra.mxu0 0.0
  %2825 = vmatprep.subr.mxu0 0.0
  %2826 = vmatpush1.msra.mxu0 0.0
  %2827 = vmatprep.subr.mxu0 0.0
  %2828 = vmatpush1.msra.mxu0 0.0
  %2829 = vmatprep.subr.mxu0 0.0
  %2830 = vmatpush1.msra.mxu0 0.0
  %2831 = vmatprep.subr.mxu0 0.0
  %2832 = vmatpush1.msra.mxu0 0.0
  %2833 = vmatprep.subr.mxu0 0.0
  %2834 = vmatpush1.msra.mxu0 0.0
  %2835 = vmatprep.subr.mxu0 0.0
  %2836 = vmatpush1.msra.mxu0 0.0
  %2837 = vmatprep.subr.mxu0 0.0
  %2838 = vmatpush1.msra.mxu0 0.0
  %2839 = vmatprep.subr.mxu0 0.0
  %2840 = vmatpush1.msra.mxu0 0.0
  %2841 = vmatprep.subr.mxu0 0.0
  %2842 = vmatpush1.msra.mxu0 0.0
  %2843 = vmatprep.subr.mxu0 0.0
  %2844 = vmatpush1.msra.mxu0 0.0
  %2845 = vmatprep.subr.mxu0 0.0
  %2846 = vmatpush1.msra.mxu0 0.0
  %2847 = vmatprep.subr.mxu0 0.0
  %2848 = vmatpush1.msra.mxu0 0.0
  %2849 = vmatprep.subr.mxu0 0.0
  %2850 = vmatpush1.msra.mxu0 0.0
  %2851 = vmatprep.subr.mxu0 0.0
  %2852 = vmatpush1.msra.mxu0 0.0
  %2853 = vmatprep.subr.mxu0 0.0
  %2854 = vmatpush1.msra.mxu0 0.0
  %2855 = vmatprep.subr.mxu0 0.0
  %2856 = vmatpush1.msra.mxu0 0.0
  %2857 = vmatprep.subr.mxu0 0.0
  %2858 = vmatpush1.msra.mxu0 0.0
  %2859 = vmatprep.subr.mxu0 0.0
  %2860 = vmatpush1.msra.mxu0 0.0
  %2861 = vmatprep.subr.mxu0 0.0
  %2862 = vmatpush1.msra.mxu0 0.0
  %2863 = vmatprep.subr.mxu0 0.0
  %2864 = vmatpush1.msra.mxu0 0.0
  %2865 = vmatprep.subr.mxu0 0.0
  %2866 = vmatpush1.msra.mxu0 0.0
  %2867 = vmatprep.subr.mxu0 0.0
  %2868 = vmatpush1.msra.mxu0 0.0
  %2869 = vmatprep.subr.mxu0 0.0
  %2870 = vmatpush1.msra.mxu0 0.0
  %2871 = vmatprep.subr.mxu0 0.0
  %2872 = vmatpush1.msra.mxu0 0.0
  %2873 = vmatprep.subr.mxu0 0.0
  %2874 = vmatpush1.msra.mxu0 0.0
  %2875 = vmatprep.mubr.f32.mxu0 0.0
  %2876 = vmatmul.mubr.f32.gmra.mrb[0].mxu0 %v2809
  %v2877 = vpop.f32.mrb[0].mxu0
  %v2878 = vadd.f32 0.0, %v2877
  %v2879 = vpop.f32.mrb[0].mxu0
  %2880 = vdwg.mxu0
  %2882 = vrot.lane.b32.xlu0 %v2306, 120
  %v2883 = vpop.permute.xlu0 %2882
  %v2886 = vsel %vm307, %v2803, 0
  %2888 = vmatprep.subr.mxu0 0.0
  %2889 = vmatpush1.msra.mxu0 %v2883
  %2890 = vmatprep.subr.mxu0 0.0
  %2891 = vmatpush1.msra.mxu0 0.0
  %2892 = vmatprep.subr.mxu0 0.0
  %2893 = vmatpush1.msra.mxu0 0.0
  %2894 = vmatprep.subr.mxu0 0.0
  %2895 = vmatpush1.msra.mxu0 0.0
  %2896 = vmatprep.subr.mxu0 0.0
  %2897 = vmatpush1.msra.mxu0 0.0
  %2898 = vmatprep.subr.mxu0 0.0
  %2899 = vmatpush1.msra.mxu0 0.0
  %2900 = vmatprep.subr.mxu0 0.0
  %2901 = vmatpush1.msra.mxu0 0.0
  %2902 = vmatprep.subr.mxu0 0.0
  %2903 = vmatpush1.msra.mxu0 0.0
  %2904 = vmatprep.subr.mxu0 0.0
  %2905 = vmatpush1.msra.mxu0 0.0
  %2906 = vmatprep.subr.mxu0 0.0
  %2907 = vmatpush1.msra.mxu0 0.0
  %2908 = vmatprep.subr.mxu0 0.0
  %2909 = vmatpush1.msra.mxu0 0.0
  %2910 = vmatprep.subr.mxu0 0.0
  %2911 = vmatpush1.msra.mxu0 0.0
  %2912 = vmatprep.subr.mxu0 0.0
  %2913 = vmatpush1.msra.mxu0 0.0
  %2914 = vmatprep.subr.mxu0 0.0
  %2915 = vmatpush1.msra.mxu0 0.0
  %2916 = vmatprep.subr.mxu0 0.0
  %2917 = vmatpush1.msra.mxu0 0.0
  %2918 = vmatprep.subr.mxu0 0.0
  %2919 = vmatpush1.msra.mxu0 0.0
  %2920 = vmatprep.subr.mxu0 0.0
  %2921 = vmatpush1.msra.mxu0 0.0
  %2922 = vmatprep.subr.mxu0 0.0
  %2923 = vmatpush1.msra.mxu0 0.0
  %2924 = vmatprep.subr.mxu0 0.0
  %2925 = vmatpush1.msra.mxu0 0.0
  %2926 = vmatprep.subr.mxu0 0.0
  %2927 = vmatpush1.msra.mxu0 0.0
  %2928 = vmatprep.subr.mxu0 0.0
  %2929 = vmatpush1.msra.mxu0 0.0
  %2930 = vmatprep.subr.mxu0 0.0
  %2931 = vmatpush1.msra.mxu0 0.0
  %2932 = vmatprep.subr.mxu0 0.0
  %2933 = vmatpush1.msra.mxu0 0.0
  %2934 = vmatprep.subr.mxu0 0.0
  %2935 = vmatpush1.msra.mxu0 0.0
  %2936 = vmatprep.subr.mxu0 0.0
  %2937 = vmatpush1.msra.mxu0 0.0
  %2938 = vmatprep.subr.mxu0 0.0
  %2939 = vmatpush1.msra.mxu0 0.0
  %2940 = vmatprep.subr.mxu0 0.0
  %2941 = vmatpush1.msra.mxu0 0.0
  %2942 = vmatprep.subr.mxu0 0.0
  %2943 = vmatpush1.msra.mxu0 0.0
  %2944 = vmatprep.subr.mxu0 0.0
  %2945 = vmatpush1.msra.mxu0 0.0
  %2946 = vmatprep.subr.mxu0 0.0
  %2947 = vmatpush1.msra.mxu0 0.0
  %2948 = vmatprep.subr.mxu0 0.0
  %2949 = vmatpush1.msra.mxu0 0.0
  %2950 = vmatprep.subr.mxu0 0.0
  %2951 = vmatpush1.msra.mxu0 0.0
  %2952 = vmatprep.mubr.f32.mxu0 0.0
  %2953 = vmatmul.mubr.f32.gmra.mrb[0].mxu0 %v2886
  %v2954 = vpop.f32.mrb[0].mxu0
  %v2955 = vadd.f32 0.0, %v2954
  %v2956 = vpop.f32.mrb[0].mxu0
  %2957 = vdwg.mxu0
  %v2959 = vsel %vm307, %v2878, 0
  %v2962 = vsel %vm307, %v2955, 0
  %2964 = vmatprep.subr.mxu0 0.0
  %2965 = vmatpush1.msra.mxu0 %v2313
  %2966 = vmatprep.subr.mxu0 0.0
  %2967 = vmatpush1.msra.mxu0 0.0
  %2968 = vmatprep.subr.mxu0 0.0
  %2969 = vmatpush1.msra.mxu0 0.0
  %2970 = vmatprep.subr.mxu0 0.0
  %2971 = vmatpush1.msra.mxu0 0.0
  %2972 = vmatprep.subr.mxu0 0.0
  %2973 = vmatpush1.msra.mxu0 0.0
  %2974 = vmatprep.subr.mxu0 0.0
  %2975 = vmatpush1.msra.mxu0 0.0
  %2976 = vmatprep.subr.mxu0 0.0
  %2977 = vmatpush1.msra.mxu0 0.0
  %2978 = vmatprep.subr.mxu0 0.0
  %2979 = vmatpush1.msra.mxu0 0.0
  %2980 = vmatprep.subr.mxu0 0.0
  %2981 = vmatpush1.msra.mxu0 0.0
  %2982 = vmatprep.subr.mxu0 0.0
  %2983 = vmatpush1.msra.mxu0 0.0
  %2984 = vmatprep.subr.mxu0 0.0
  %2985 = vmatpush1.msra.mxu0 0.0
  %2986 = vmatprep.subr.mxu0 0.0
  %2987 = vmatpush1.msra.mxu0 0.0
  %2988 = vmatprep.subr.mxu0 0.0
  %2989 = vmatpush1.msra.mxu0 0.0
  %2990 = vmatprep.subr.mxu0 0.0
  %2991 = vmatpush1.msra.mxu0 0.0
  %2992 = vmatprep.subr.mxu0 0.0
  %2993 = vmatpush1.msra.mxu0 0.0
  %2994 = vmatprep.subr.mxu0 0.0
  %2995 = vmatpush1.msra.mxu0 0.0
  %2996 = vmatprep.subr.mxu0 0.0
  %2997 = vmatpush1.msra.mxu0 0.0
  %2998 = vmatprep.subr.mxu0 0.0
  %2999 = vmatpush1.msra.mxu0 0.0
  %3000 = vmatprep.subr.mxu0 0.0
  %3001 = vmatpush1.msra.mxu0 0.0
  %3002 = vmatprep.subr.mxu0 0.0
  %3003 = vmatpush1.msra.mxu0 0.0
  %3004 = vmatprep.subr.mxu0 0.0
  %3005 = vmatpush1.msra.mxu0 0.0
  %3006 = vmatprep.subr.mxu0 0.0
  %3007 = vmatpush1.msra.mxu0 0.0
  %3008 = vmatprep.subr.mxu0 0.0
  %3009 = vmatpush1.msra.mxu0 0.0
  %3010 = vmatprep.subr.mxu0 0.0
  %3011 = vmatpush1.msra.mxu0 0.0
  %3012 = vmatprep.subr.mxu0 0.0
  %3013 = vmatpush1.msra.mxu0 0.0
  %3014 = vmatprep.subr.mxu0 0.0
  %3015 = vmatpush1.msra.mxu0 0.0
  %3016 = vmatprep.subr.mxu0 0.0
  %3017 = vmatpush1.msra.mxu0 0.0
  %3018 = vmatprep.subr.mxu0 0.0
  %3019 = vmatpush1.msra.mxu0 0.0
  %3020 = vmatprep.subr.mxu0 0.0
  %3021 = vmatpush1.msra.mxu0 0.0
  %3022 = vmatprep.subr.mxu0 0.0
  %3023 = vmatpush1.msra.mxu0 0.0
  %3024 = vmatprep.subr.mxu0 0.0
  %3025 = vmatpush1.msra.mxu0 0.0
  %3026 = vmatprep.subr.mxu0 0.0
  %3027 = vmatpush1.msra.mxu0 0.0
  %3028 = vmatprep.mubr.f32.mxu0 0.0
  %3029 = vmatmul.mubr.f32.gmra.mrb[0].mxu0 %v2959
  %v3030 = vpop.f32.mrb[0].mxu0
  %v3031 = vadd.f32 0.0, %v3030
  %v3032 = vpop.f32.mrb[0].mxu0
  %3033 = vmatprep.mubr.f32.mxu0 0.0
  %3034 = vmatmul.mubr.f32.gmra.mrb[0].mxu0 %v2962
  %v3035 = vpop.f32.mrb[0].mxu0
  %v3036 = vadd.f32 0.0, %v3035
  %v3037 = vpop.f32.mrb[0].mxu0
  %3038 = vdwg.mxu0
  %v3040 = vsel %vm307, %v2556, 0
  %v3043 = vsel %vm307, %v2629, 0
  %3045 = vmatprep.subr.mxu0 0.0
  %3046 = vmatpush1.msra.mxu0 %v2312
  %3047 = vmatprep.subr.mxu0 0.0
  %3048 = vmatpush1.msra.mxu0 0.0
  %3049 = vmatprep.subr.mxu0 0.0
  %3050 = vmatpush1.msra.mxu0 0.0
  %3051 = vmatprep.subr.mxu0 0.0
  %3052 = vmatpush1.msra.mxu0 0.0
  %3053 = vmatprep.subr.mxu0 0.0
  %3054 = vmatpush1.msra.mxu0 0.0
  %3055 = vmatprep.subr.mxu0 0.0
  %3056 = vmatpush1.msra.mxu0 0.0
  %3057 = vmatprep.subr.mxu0 0.0
  %3058 = vmatpush1.msra.mxu0 0.0
  %3059 = vmatprep.subr.mxu0 0.0
  %3060 = vmatpush1.msra.mxu0 0.0
  %3061 = vmatprep.subr.mxu0 0.0
  %3062 = vmatpush1.msra.mxu0 0.0
  %3063 = vmatprep.subr.mxu0 0.0
  %3064 = vmatpush1.msra.mxu0 0.0
  %3065 = vmatprep.subr.mxu0 0.0
  %3066 = vmatpush1.msra.mxu0 0.0
  %3067 = vmatprep.subr.mxu0 0.0
  %3068 = vmatpush1.msra.mxu0 0.0
  %3069 = vmatprep.subr.mxu0 0.0
  %3070 = vmatpush1.msra.mxu0 0.0
  %3071 = vmatprep.subr.mxu0 0.0
  %3072 = vmatpush1.msra.mxu0 0.0
  %3073 = vmatprep.subr.mxu0 0.0
  %3074 = vmatpush1.msra.mxu0 0.0
  %3075 = vmatprep.subr.mxu0 0.0
  %3076 = vmatpush1.msra.mxu0 0.0
  %3077 = vmatprep.subr.mxu0 0.0
  %3078 = vmatpush1.msra.mxu0 0.0
  %3079 = vmatprep.subr.mxu0 0.0
  %3080 = vmatpush1.msra.mxu0 0.0
  %3081 = vmatprep.subr.mxu0 0.0
  %3082 = vmatpush1.msra.mxu0 0.0
  %3083 = vmatprep.subr.mxu0 0.0
  %3084 = vmatpush1.msra.mxu0 0.0
  %3085 = vmatprep.subr.mxu0 0.0
  %3086 = vmatpush1.msra.mxu0 0.0
  %3087 = vmatprep.subr.mxu0 0.0
  %3088 = vmatpush1.msra.mxu0 0.0
  %3089 = vmatprep.subr.mxu0 0.0
  %3090 = vmatpush1.msra.mxu0 0.0
  %3091 = vmatprep.subr.mxu0 0.0
  %3092 = vmatpush1.msra.mxu0 0.0
  %3093 = vmatprep.subr.mxu0 0.0
  %3094 = vmatpush1.msra.mxu0 0.0
  %3095 = vmatprep.subr.mxu0 0.0
  %3096 = vmatpush1.msra.mxu0 0.0
  %3097 = vmatprep.subr.mxu0 0.0
  %3098 = vmatpush1.msra.mxu0 0.0
  %3099 = vmatprep.subr.mxu0 0.0
  %3100 = vmatpush1.msra.mxu0 0.0
  %3101 = vmatprep.subr.mxu0 0.0
  %3102 = vmatpush1.msra.mxu0 0.0
  %3103 = vmatprep.subr.mxu0 0.0
  %3104 = vmatpush1.msra.mxu0 0.0
  %3105 = vmatprep.subr.mxu0 0.0
  %3106 = vmatpush1.msra.mxu0 0.0
  %3107 = vmatprep.subr.mxu0 0.0
  %3108 = vmatpush1.msra.mxu0 0.0
  %3109 = vmatprep.mubr.f32.mxu0 0.0
  %3110 = vmatmul.mubr.f32.gmra.mrb[0].mxu0 %v3040
  %v3111 = vpop.f32.mrb[0].mxu0
  %v3112 = vadd.f32 %v3031, %v3111
  %v3113 = vpop.f32.mrb[0].mxu0
  %3114 = vmatprep.mubr.f32.mxu0 0.0
  %3115 = vmatmul.mubr.f32.gmra.mrb[0].mxu0 %v3043
  %v3116 = vpop.f32.mrb[0].mxu0
  %v3117 = vadd.f32 %v3036, %v3116
  %v3118 = vpop.f32.mrb[0].mxu0
  %3119 = vdwg.mxu0
  %3120 = vrot.lane.b32.xlu0 %v2309, 112
  %v3121 = vpop.permute.xlu0 %3120
  %v3122 = vsel %vm307, %v3121, 0
  %3124 = vmatprep.subr.mxu0 0.0
  %3125 = vmatpush1.xpose.msra.mxu0 %v3122
  %3126 = vmatprep.subr.mxu0 0.0
  %3127 = vmatpush1.xpose.msra.mxu0 0.0
  %3128 = vmatprep.subr.mxu0 0.0
  %3129 = vmatpush1.xpose.msra.mxu0 0.0
  %3130 = vmatprep.subr.mxu0 0.0
  %3131 = vmatpush1.xpose.msra.mxu0 0.0
  %3132 = vmatprep.subr.mxu0 0.0
  %3133 = vmatpush1.xpose.msra.mxu0 0.0
  %3134 = vmatprep.subr.mxu0 0.0
  %3135 = vmatpush1.xpose.msra.mxu0 0.0
  %3136 = vmatprep.subr.mxu0 0.0
  %3137 = vmatpush1.xpose.msra.mxu0 0.0
  %3138 = vmatprep.subr.mxu0 0.0
  %3139 = vmatpush1.xpose.msra.mxu0 0.0
  %3140 = vmatprep.subr.mxu0 0.0
  %3141 = vmatpush1.xpose.msra.mxu0 0.0
  %3142 = vmatprep.subr.mxu0 0.0
  %3143 = vmatpush1.xpose.msra.mxu0 0.0
  %3144 = vmatprep.subr.mxu0 0.0
  %3145 = vmatpush1.xpose.msra.mxu0 0.0
  %3146 = vmatprep.subr.mxu0 0.0
  %3147 = vmatpush1.xpose.msra.mxu0 0.0
  %3148 = vmatprep.subr.mxu0 0.0
  %3149 = vmatpush1.xpose.msra.mxu0 0.0
  %3150 = vmatprep.subr.mxu0 0.0
  %3151 = vmatpush1.xpose.msra.mxu0 0.0
  %3152 = vmatprep.subr.mxu0 0.0
  %3153 = vmatpush1.xpose.msra.mxu0 0.0
  %3154 = vmatprep.subr.mxu0 0.0
  %3155 = vmatpush1.xpose.msra.mxu0 0.0
  %3156 = vmatprep.subr.mxu0 0.0
  %3157 = vmatpush1.xpose.msra.mxu0 0.0
  %3158 = vmatprep.subr.mxu0 0.0
  %3159 = vmatpush1.xpose.msra.mxu0 0.0
  %3160 = vmatprep.subr.mxu0 0.0
  %3161 = vmatpush1.xpose.msra.mxu0 0.0
  %3162 = vmatprep.subr.mxu0 0.0
  %3163 = vmatpush1.xpose.msra.mxu0 0.0
  %3164 = vmatprep.subr.mxu0 0.0
  %3165 = vmatpush1.xpose.msra.mxu0 0.0
  %3166 = vmatprep.subr.mxu0 0.0
  %3167 = vmatpush1.xpose.msra.mxu0 0.0
  %3168 = vmatprep.subr.mxu0 0.0
  %3169 = vmatpush1.xpose.msra.mxu0 0.0
  %3170 = vmatprep.subr.mxu0 0.0
  %3171 = vmatpush1.xpose.msra.mxu0 0.0
  %3172 = vmatprep.subr.mxu0 0.0
  %3173 = vmatpush1.xpose.msra.mxu0 0.0
  %3174 = vmatprep.subr.mxu0 0.0
  %3175 = vmatpush1.xpose.msra.mxu0 0.0
  %3176 = vmatprep.subr.mxu0 0.0
  %3177 = vmatpush1.xpose.msra.mxu0 0.0
  %3178 = vmatprep.subr.mxu0 0.0
  %3179 = vmatpush1.xpose.msra.mxu0 0.0
  %3180 = vmatprep.subr.mxu0 0.0
  %3181 = vmatpush1.xpose.msra.mxu0 0.0
  %3182 = vmatprep.subr.mxu0 0.0
  %3183 = vmatpush1.xpose.msra.mxu0 0.0
  %3184 = vmatprep.subr.mxu0 0.0
  %3185 = vmatpush1.xpose.msra.mxu0 0.0
  %3186 = vmatprep.subr.mxu0 0.0
  %3187 = vmatpush1.xpose.msra.mxu0 0.0
  %3188 = vmatprep.mubr.f32.mxu0 0.0
  %3189 = vmatmul.mubr.f32.gmra.mrb[0].mxu0 %v3122
  %v3190 = vpop.f32.mrb[0].mxu0
  %v3191 = vadd.f32 0.0, %v3190
  %v3192 = vpop.f32.mrb[0].mxu0
  %3193 = vdwg.mxu0
  %3194 = vrot.lane.b32.xlu0 %v2310, 112
  %v3195 = vpop.permute.xlu0 %3194
  %v3196 = vsel %vm307, %v3195, 0
  %3198 = vmatprep.subr.mxu0 0.0
  %3199 = vmatpush1.xpose.msra.mxu0 %v3196
  %3200 = vmatprep.subr.mxu0 0.0
  %3201 = vmatpush1.xpose.msra.mxu0 0.0
  %3202 = vmatprep.subr.mxu0 0.0
  %3203 = vmatpush1.xpose.msra.mxu0 0.0
  %3204 = vmatprep.subr.mxu0 0.0
  %3205 = vmatpush1.xpose.msra.mxu0 0.0
  %3206 = vmatprep.subr.mxu0 0.0
  %3207 = vmatpush1.xpose.msra.mxu0 0.0
  %3208 = vmatprep.subr.mxu0 0.0
  %3209 = vmatpush1.xpose.msra.mxu0 0.0
  %3210 = vmatprep.subr.mxu0 0.0
  %3211 = vmatpush1.xpose.msra.mxu0 0.0
  %3212 = vmatprep.subr.mxu0 0.0
  %3213 = vmatpush1.xpose.msra.mxu0 0.0
  %3214 = vmatprep.subr.mxu0 0.0
  %3215 = vmatpush1.xpose.msra.mxu0 0.0
  %3216 = vmatprep.subr.mxu0 0.0
  %3217 = vmatpush1.xpose.msra.mxu0 0.0
  %3218 = vmatprep.subr.mxu0 0.0
  %3219 = vmatpush1.xpose.msra.mxu0 0.0
  %3220 = vmatprep.subr.mxu0 0.0
  %3221 = vmatpush1.xpose.msra.mxu0 0.0
  %3222 = vmatprep.subr.mxu0 0.0
  %3223 = vmatpush1.xpose.msra.mxu0 0.0
  %3224 = vmatprep.subr.mxu0 0.0
  %3225 = vmatpush1.xpose.msra.mxu0 0.0
  %3226 = vmatprep.subr.mxu0 0.0
  %3227 = vmatpush1.xpose.msra.mxu0 0.0
  %3228 = vmatprep.subr.mxu0 0.0
  %3229 = vmatpush1.xpose.msra.mxu0 0.0
  %3230 = vmatprep.subr.mxu0 0.0
  %3231 = vmatpush1.xpose.msra.mxu0 0.0
  %3232 = vmatprep.subr.mxu0 0.0
  %3233 = vmatpush1.xpose.msra.mxu0 0.0
  %3234 = vmatprep.subr.mxu0 0.0
  %3235 = vmatpush1.xpose.msra.mxu0 0.0
  %3236 = vmatprep.subr.mxu0 0.0
  %3237 = vmatpush1.xpose.msra.mxu0 0.0
  %3238 = vmatprep.subr.mxu0 0.0
  %3239 = vmatpush1.xpose.msra.mxu0 0.0
  %3240 = vmatprep.subr.mxu0 0.0
  %3241 = vmatpush1.xpose.msra.mxu0 0.0
  %3242 = vmatprep.subr.mxu0 0.0
  %3243 = vmatpush1.xpose.msra.mxu0 0.0
  %3244 = vmatprep.subr.mxu0 0.0
  %3245 = vmatpush1.xpose.msra.mxu0 0.0
  %3246 = vmatprep.subr.mxu0 0.0
  %3247 = vmatpush1.xpose.msra.mxu0 0.0
  %3248 = vmatprep.subr.mxu0 0.0
  %3249 = vmatpush1.xpose.msra.mxu0 0.0
  %3250 = vmatprep.subr.mxu0 0.0
  %3251 = vmatpush1.xpose.msra.mxu0 0.0
  %3252 = vmatprep.subr.mxu0 0.0
  %3253 = vmatpush1.xpose.msra.mxu0 0.0
  %3254 = vmatprep.subr.mxu0 0.0
  %3255 = vmatpush1.xpose.msra.mxu0 0.0
  %3256 = vmatprep.subr.mxu0 0.0
  %3257 = vmatpush1.xpose.msra.mxu0 0.0
  %3258 = vmatprep.subr.mxu0 0.0
  %3259 = vmatpush1.xpose.msra.mxu0 0.0
  %3260 = vmatprep.subr.mxu0 0.0
  %3261 = vmatpush1.xpose.msra.mxu0 0.0
  %3262 = vmatprep.mubr.f32.mxu0 0.0
  %3263 = vmatmul.mubr.f32.gmra.mrb[0].mxu0 %v3196
  %v3264 = vpop.f32.mrb[0].mxu0
  %v3265 = vadd.f32 0.0, %v3264
  %v3266 = vpop.f32.mrb[0].mxu0
  %3267 = vdwg.mxu0
  %v3268 = vsel %vm169, %v3191, -1e+30
  %v3269 = vsel %vm169, %v3265, -1e+30
  %v3270 = vsel %vm307, %v3268, -inf
  %3271 = vmax.xlane.f32.xlu0 %v3270
  %v3272 = vpop.xlane.xlu0 %3271
  %v3273 = vsel %vm307, %v3269, -inf
  %3274 = vmax.xlane.f32.xlu0 %v3273
  %v3275 = vpop.xlane.xlu0 %3274
  %v3276 = vsub.f32 %v3268, %v3272
  %v3277 = vsub.f32 %v3269, %v3275
  %v3278 = vmul.f32 %v3276, 1.442695
  %v3279 = vpow.pop %v3278
  %v3280 = vmul.f32 %v3277, 1.442695
  %v3281 = vpow.pop %v3280
  %v3282 = vsel %vm307, %v3279, 0.0
  %3283 = vadd.xlane.f32.xlu0 %v3282
  %v3284 = vpop.xlane.xlu0 %3283
  %v3285 = vsel %vm307, %v3281, 0.0
  %3286 = vadd.xlane.f32.xlu0 %v3285
  %v3287 = vpop.xlane.xlu0 %3286
  %v3288 = vrcp.pop %v3284
  %v3289 = vrcp.pop %v3287
  %v3290 = vmul.f32 %v3279, %v3288
  %v3291 = vmul.f32 %v3281, %v3289
  %3292 = vrot.lane.b32.xlu0 %v2301, 112
  %v3293 = vpop.permute.xlu0 %3292
  %v3296 = vsel %vm307, %v3290, 0
  %3298 = vmatprep.subr.mxu0 0.0
  %3299 = vmatpush1.msra.mxu0 %v3293
  %3300 = vmatprep.subr.mxu0 0.0
  %3301 = vmatpush1.msra.mxu0 0.0
  %3302 = vmatprep.subr.mxu0 0.0
  %3303 = vmatpush1.msra.mxu0 0.0
  %3304 = vmatprep.subr.mxu0 0.0
  %3305 = vmatpush1.msra.mxu0 0.0
  %3306 = vmatprep.subr.mxu0 0.0
  %3307 = vmatpush1.msra.mxu0 0.0
  %3308 = vmatprep.subr.mxu0 0.0
  %3309 = vmatpush1.msra.mxu0 0.0
  %3310 = vmatprep.subr.mxu0 0.0
  %3311 = vmatpush1.msra.mxu0 0.0
  %3312 = vmatprep.subr.mxu0 0.0
  %3313 = vmatpush1.msra.mxu0 0.0
  %3314 = vmatprep.subr.mxu0 0.0
  %3315 = vmatpush1.msra.mxu0 0.0
  %3316 = vmatprep.subr.mxu0 0.0
  %3317 = vmatpush1.msra.mxu0 0.0
  %3318 = vmatprep.subr.mxu0 0.0
  %3319 = vmatpush1.msra.mxu0 0.0
  %3320 = vmatprep.subr.mxu0 0.0
  %3321 = vmatpush1.msra.mxu0 0.0
  %3322 = vmatprep.subr.mxu0 0.0
  %3323 = vmatpush1.msra.mxu0 0.0
  %3324 = vmatprep.subr.mxu0 0.0
  %3325 = vmatpush1.msra.mxu0 0.0
  %3326 = vmatprep.subr.mxu0 0.0
  %3327 = vmatpush1.msra.mxu0 0.0
  %3328 = vmatprep.subr.mxu0 0.0
  %3329 = vmatpush1.msra.mxu0 0.0
  %3330 = vmatprep.subr.mxu0 0.0
  %3331 = vmatpush1.msra.mxu0 0.0
  %3332 = vmatprep.subr.mxu0 0.0
  %3333 = vmatpush1.msra.mxu0 0.0
  %3334 = vmatprep.subr.mxu0 0.0
  %3335 = vmatpush1.msra.mxu0 0.0
  %3336 = vmatprep.subr.mxu0 0.0
  %3337 = vmatpush1.msra.mxu0 0.0
  %3338 = vmatprep.subr.mxu0 0.0
  %3339 = vmatpush1.msra.mxu0 0.0
  %3340 = vmatprep.subr.mxu0 0.0
  %3341 = vmatpush1.msra.mxu0 0.0
  %3342 = vmatprep.subr.mxu0 0.0
  %3343 = vmatpush1.msra.mxu0 0.0
  %3344 = vmatprep.subr.mxu0 0.0
  %3345 = vmatpush1.msra.mxu0 0.0
  %3346 = vmatprep.subr.mxu0 0.0
  %3347 = vmatpush1.msra.mxu0 0.0
  %3348 = vmatprep.subr.mxu0 0.0
  %3349 = vmatpush1.msra.mxu0 0.0
  %3350 = vmatprep.subr.mxu0 0.0
  %3351 = vmatpush1.msra.mxu0 0.0
  %3352 = vmatprep.subr.mxu0 0.0
  %3353 = vmatpush1.msra.mxu0 0.0
  %3354 = vmatprep.subr.mxu0 0.0
  %3355 = vmatpush1.msra.mxu0 0.0
  %3356 = vmatprep.subr.mxu0 0.0
  %3357 = vmatpush1.msra.mxu0 0.0
  %3358 = vmatprep.subr.mxu0 0.0
  %3359 = vmatpush1.msra.mxu0 0.0
  %3360 = vmatprep.subr.mxu0 0.0
  %3361 = vmatpush1.msra.mxu0 0.0
  %3362 = vmatprep.mubr.f32.mxu0 0.0
  %3363 = vmatmul.mubr.f32.gmra.mrb[0].mxu0 %v3296
  %v3364 = vpop.f32.mrb[0].mxu0
  %v3365 = vadd.f32 0.0, %v3364
  %v3366 = vpop.f32.mrb[0].mxu0
  %3367 = vdwg.mxu0
  %3368 = vrot.lane.b32.xlu0 %v2306, 112
  %v3369 = vpop.permute.xlu0 %3368
  %v3372 = vsel %vm307, %v3291, 0
  %3374 = vmatprep.subr.mxu0 0.0
  %3375 = vmatpush1.msra.mxu0 %v3369
  %3376 = vmatprep.subr.mxu0 0.0
  %3377 = vmatpush1.msra.mxu0 0.0
  %3378 = vmatprep.subr.mxu0 0.0
  %3379 = vmatpush1.msra.mxu0 0.0
  %3380 = vmatprep.subr.mxu0 0.0
  %3381 = vmatpush1.msra.mxu0 0.0
  %3382 = vmatprep.subr.mxu0 0.0
  %3383 = vmatpush1.msra.mxu0 0.0
  %3384 = vmatprep.subr.mxu0 0.0
  %3385 = vmatpush1.msra.mxu0 0.0
  %3386 = vmatprep.subr.mxu0 0.0
  %3387 = vmatpush1.msra.mxu0 0.0
  %3388 = vmatprep.subr.mxu0 0.0
  %3389 = vmatpush1.msra.mxu0 0.0
  %3390 = vmatprep.subr.mxu0 0.0
  %3391 = vmatpush1.msra.mxu0 0.0
  %3392 = vmatprep.subr.mxu0 0.0
  %3393 = vmatpush1.msra.mxu0 0.0
  %3394 = vmatprep.subr.mxu0 0.0
  %3395 = vmatpush1.msra.mxu0 0.0
  %3396 = vmatprep.subr.mxu0 0.0
  %3397 = vmatpush1.msra.mxu0 0.0
  %3398 = vmatprep.subr.mxu0 0.0
  %3399 = vmatpush1.msra.mxu0 0.0
  %3400 = vmatprep.subr.mxu0 0.0
  %3401 = vmatpush1.msra.mxu0 0.0
  %3402 = vmatprep.subr.mxu0 0.0
  %3403 = vmatpush1.msra.mxu0 0.0
  %3404 = vmatprep.subr.mxu0 0.0
  %3405 = vmatpush1.msra.mxu0 0.0
  %3406 = vmatprep.subr.mxu0 0.0
  %3407 = vmatpush1.msra.mxu0 0.0
  %3408 = vmatprep.subr.mxu0 0.0
  %3409 = vmatpush1.msra.mxu0 0.0
  %3410 = vmatprep.subr.mxu0 0.0
  %3411 = vmatpush1.msra.mxu0 0.0
  %3412 = vmatprep.subr.mxu0 0.0
  %3413 = vmatpush1.msra.mxu0 0.0
  %3414 = vmatprep.subr.mxu0 0.0
  %3415 = vmatpush1.msra.mxu0 0.0
  %3416 = vmatprep.subr.mxu0 0.0
  %3417 = vmatpush1.msra.mxu0 0.0
  %3418 = vmatprep.subr.mxu0 0.0
  %3419 = vmatpush1.msra.mxu0 0.0
  %3420 = vmatprep.subr.mxu0 0.0
  %3421 = vmatpush1.msra.mxu0 0.0
  %3422 = vmatprep.subr.mxu0 0.0
  %3423 = vmatpush1.msra.mxu0 0.0
  %3424 = vmatprep.subr.mxu0 0.0
  %3425 = vmatpush1.msra.mxu0 0.0
  %3426 = vmatprep.subr.mxu0 0.0
  %3427 = vmatpush1.msra.mxu0 0.0
  %3428 = vmatprep.subr.mxu0 0.0
  %3429 = vmatpush1.msra.mxu0 0.0
  %3430 = vmatprep.subr.mxu0 0.0
  %3431 = vmatpush1.msra.mxu0 0.0
  %3432 = vmatprep.subr.mxu0 0.0
  %3433 = vmatpush1.msra.mxu0 0.0
  %3434 = vmatprep.subr.mxu0 0.0
  %3435 = vmatpush1.msra.mxu0 0.0
  %3436 = vmatprep.subr.mxu0 0.0
  %3437 = vmatpush1.msra.mxu0 0.0
  %3438 = vmatprep.mubr.f32.mxu0 0.0
  %3439 = vmatmul.mubr.f32.gmra.mrb[0].mxu0 %v3372
  %v3440 = vpop.f32.mrb[0].mxu0
  %v3441 = vadd.f32 0.0, %v3440
  %v3442 = vpop.f32.mrb[0].mxu0
  %3443 = vdwg.mxu0
  %v3445 = vsel %vm307, %v3365, 0
  %v3448 = vsel %vm307, %v3441, 0
  %3450 = vmatprep.subr.mxu0 0.0
  %3451 = vmatpush1.msra.mxu0 %v2314
  %3452 = vmatprep.subr.mxu0 0.0
  %3453 = vmatpush1.msra.mxu0 0.0
  %3454 = vmatprep.subr.mxu0 0.0
  %3455 = vmatpush1.msra.mxu0 0.0
  %3456 = vmatprep.subr.mxu0 0.0
  %3457 = vmatpush1.msra.mxu0 0.0
  %3458 = vmatprep.subr.mxu0 0.0
  %3459 = vmatpush1.msra.mxu0 0.0
  %3460 = vmatprep.subr.mxu0 0.0
  %3461 = vmatpush1.msra.mxu0 0.0
  %3462 = vmatprep.subr.mxu0 0.0
  %3463 = vmatpush1.msra.mxu0 0.0
  %3464 = vmatprep.subr.mxu0 0.0
  %3465 = vmatpush1.msra.mxu0 0.0
  %3466 = vmatprep.subr.mxu0 0.0
  %3467 = vmatpush1.msra.mxu0 0.0
  %3468 = vmatprep.subr.mxu0 0.0
  %3469 = vmatpush1.msra.mxu0 0.0
  %3470 = vmatprep.subr.mxu0 0.0
  %3471 = vmatpush1.msra.mxu0 0.0
  %3472 = vmatprep.subr.mxu0 0.0
  %3473 = vmatpush1.msra.mxu0 0.0
  %3474 = vmatprep.subr.mxu0 0.0
  %3475 = vmatpush1.msra.mxu0 0.0
  %3476 = vmatprep.subr.mxu0 0.0
  %3477 = vmatpush1.msra.mxu0 0.0
  %3478 = vmatprep.subr.mxu0 0.0
  %3479 = vmatpush1.msra.mxu0 0.0
  %3480 = vmatprep.subr.mxu0 0.0
  %3481 = vmatpush1.msra.mxu0 0.0
  %3482 = vmatprep.subr.mxu0 0.0
  %3483 = vmatpush1.msra.mxu0 0.0
  %3484 = vmatprep.subr.mxu0 0.0
  %3485 = vmatpush1.msra.mxu0 0.0
  %3486 = vmatprep.subr.mxu0 0.0
  %3487 = vmatpush1.msra.mxu0 0.0
  %3488 = vmatprep.subr.mxu0 0.0
  %3489 = vmatpush1.msra.mxu0 0.0
  %3490 = vmatprep.subr.mxu0 0.0
  %3491 = vmatpush1.msra.mxu0 0.0
  %3492 = vmatprep.subr.mxu0 0.0
  %3493 = vmatpush1.msra.mxu0 0.0
  %3494 = vmatprep.subr.mxu0 0.0
  %3495 = vmatpush1.msra.mxu0 0.0
  %3496 = vmatprep.subr.mxu0 0.0
  %3497 = vmatpush1.msra.mxu0 0.0
  %3498 = vmatprep.subr.mxu0 0.0
  %3499 = vmatpush1.msra.mxu0 0.0
  %3500 = vmatprep.subr.mxu0 0.0
  %3501 = vmatpush1.msra.mxu0 0.0
  %3502 = vmatprep.subr.mxu0 0.0
  %3503 = vmatpush1.msra.mxu0 0.0
  %3504 = vmatprep.subr.mxu0 0.0
  %3505 = vmatpush1.msra.mxu0 0.0
  %3506 = vmatprep.subr.mxu0 0.0
  %3507 = vmatpush1.msra.mxu0 0.0
  %3508 = vmatprep.subr.mxu0 0.0
  %3509 = vmatpush1.msra.mxu0 0.0
  %3510 = vmatprep.subr.mxu0 0.0
  %3511 = vmatpush1.msra.mxu0 0.0
  %3512 = vmatprep.subr.mxu0 0.0
  %3513 = vmatpush1.msra.mxu0 0.0
  %3514 = vmatprep.mubr.f32.mxu0 0.0
  %3515 = vmatmul.mubr.f32.gmra.mrb[0].mxu0 %v3445
  %v3516 = vpop.f32.mrb[0].mxu0
  %v3517 = vadd.f32 0.0, %v3516
  %v3518 = vpop.f32.mrb[0].mxu0
  %3519 = vmatprep.mubr.f32.mxu0 0.0
  %3520 = vmatmul.mubr.f32.gmra.mrb[0].mxu0 %v3448
  %v3521 = vpop.f32.mrb[0].mxu0
  %v3522 = vadd.f32 0.0, %v3521
  %v3523 = vpop.f32.mrb[0].mxu0
  %3524 = vdwg.mxu0
  %v3525 = vadd.f32 %v3112, %v3517
  %v3526 = vadd.f32 %v3117, %v3522
  %3527 = vrot.lane.b32.xlu0 %v2309, 104
  %v3528 = vpop.permute.xlu0 %3527
  %v3529 = vsel %vm307, %v3528, 0
  %3531 = vmatprep.subr.mxu0 0.0
  %3532 = vmatpush1.xpose.msra.mxu0 %v3529
  %3533 = vmatprep.subr.mxu0 0.0
  %3534 = vmatpush1.xpose.msra.mxu0 0.0
  %3535 = vmatprep.subr.mxu0 0.0
  %3536 = vmatpush1.xpose.msra.mxu0 0.0
  %3537 = vmatprep.subr.mxu0 0.0
  %3538 = vmatpush1.xpose.msra.mxu0 0.0
  %3539 = vmatprep.subr.mxu0 0.0
  %3540 = vmatpush1.xpose.msra.mxu0 0.0
  %3541 = vmatprep.subr.mxu0 0.0
  %3542 = vmatpush1.xpose.msra.mxu0 0.0
  %3543 = vmatprep.subr.mxu0 0.0
  %3544 = vmatpush1.xpose.msra.mxu0 0.0
  %3545 = vmatprep.subr.mxu0 0.0
  %3546 = vmatpush1.xpose.msra.mxu0 0.0
  %3547 = vmatprep.subr.mxu0 0.0
  %3548 = vmatpush1.xpose.msra.mxu0 0.0
  %3549 = vmatprep.subr.mxu0 0.0
  %3550 = vmatpush1.xpose.msra.mxu0 0.0
  %3551 = vmatprep.subr.mxu0 0.0
  %3552 = vmatpush1.xpose.msra.mxu0 0.0
  %3553 = vmatprep.subr.mxu0 0.0
  %3554 = vmatpush1.xpose.msra.mxu0 0.0
  %3555 = vmatprep.subr.mxu0 0.0
  %3556 = vmatpush1.xpose.msra.mxu0 0.0
  %3557 = vmatprep.subr.mxu0 0.0
  %3558 = vmatpush1.xpose.msra.mxu0 0.0
  %3559 = vmatprep.subr.mxu0 0.0
  %3560 = vmatpush1.xpose.msra.mxu0 0.0
  %3561 = vmatprep.subr.mxu0 0.0
  %3562 = vmatpush1.xpose.msra.mxu0 0.0
  %3563 = vmatprep.subr.mxu0 0.0
  %3564 = vmatpush1.xpose.msra.mxu0 0.0
  %3565 = vmatprep.subr.mxu0 0.0
  %3566 = vmatpush1.xpose.msra.mxu0 0.0
  %3567 = vmatprep.subr.mxu0 0.0
  %3568 = vmatpush1.xpose.msra.mxu0 0.0
  %3569 = vmatprep.subr.mxu0 0.0
  %3570 = vmatpush1.xpose.msra.mxu0 0.0
  %3571 = vmatprep.subr.mxu0 0.0
  %3572 = vmatpush1.xpose.msra.mxu0 0.0
  %3573 = vmatprep.subr.mxu0 0.0
  %3574 = vmatpush1.xpose.msra.mxu0 0.0
  %3575 = vmatprep.subr.mxu0 0.0
  %3576 = vmatpush1.xpose.msra.mxu0 0.0
  %3577 = vmatprep.subr.mxu0 0.0
  %3578 = vmatpush1.xpose.msra.mxu0 0.0
  %3579 = vmatprep.subr.mxu0 0.0
  %3580 = vmatpush1.xpose.msra.mxu0 0.0
  %3581 = vmatprep.subr.mxu0 0.0
  %3582 = vmatpush1.xpose.msra.mxu0 0.0
  %3583 = vmatprep.subr.mxu0 0.0
  %3584 = vmatpush1.xpose.msra.mxu0 0.0
  %3585 = vmatprep.subr.mxu0 0.0
  %3586 = vmatpush1.xpose.msra.mxu0 0.0
  %3587 = vmatprep.subr.mxu0 0.0
  %3588 = vmatpush1.xpose.msra.mxu0 0.0
  %3589 = vmatprep.subr.mxu0 0.0
  %3590 = vmatpush1.xpose.msra.mxu0 0.0
  %3591 = vmatprep.subr.mxu0 0.0
  %3592 = vmatpush1.xpose.msra.mxu0 0.0
  %3593 = vmatprep.subr.mxu0 0.0
  %3594 = vmatpush1.xpose.msra.mxu0 0.0
  %3595 = vmatprep.mubr.f32.mxu0 0.0
  %3596 = vmatmul.mubr.f32.gmra.mrb[0].mxu0 %v3529
  %v3597 = vpop.f32.mrb[0].mxu0
  %v3598 = vadd.f32 0.0, %v3597
  %v3599 = vpop.f32.mrb[0].mxu0
  %3600 = vdwg.mxu0
  %3601 = vrot.lane.b32.xlu0 %v2310, 104
  %v3602 = vpop.permute.xlu0 %3601
  %v3603 = vsel %vm307, %v3602, 0
  %3605 = vmatprep.subr.mxu0 0.0
  %3606 = vmatpush1.xpose.msra.mxu0 %v3603
  %3607 = vmatprep.subr.mxu0 0.0
  %3608 = vmatpush1.xpose.msra.mxu0 0.0
  %3609 = vmatprep.subr.mxu0 0.0
  %3610 = vmatpush1.xpose.msra.mxu0 0.0
  %3611 = vmatprep.subr.mxu0 0.0
  %3612 = vmatpush1.xpose.msra.mxu0 0.0
  %3613 = vmatprep.subr.mxu0 0.0
  %3614 = vmatpush1.xpose.msra.mxu0 0.0
  %3615 = vmatprep.subr.mxu0 0.0
  %3616 = vmatpush1.xpose.msra.mxu0 0.0
  %3617 = vmatprep.subr.mxu0 0.0
  %3618 = vmatpush1.xpose.msra.mxu0 0.0
  %3619 = vmatprep.subr.mxu0 0.0
  %3620 = vmatpush1.xpose.msra.mxu0 0.0
  %3621 = vmatprep.subr.mxu0 0.0
  %3622 = vmatpush1.xpose.msra.mxu0 0.0
  %3623 = vmatprep.subr.mxu0 0.0
  %3624 = vmatpush1.xpose.msra.mxu0 0.0
  %3625 = vmatprep.subr.mxu0 0.0
  %3626 = vmatpush1.xpose.msra.mxu0 0.0
  %3627 = vmatprep.subr.mxu0 0.0
  %3628 = vmatpush1.xpose.msra.mxu0 0.0
  %3629 = vmatprep.subr.mxu0 0.0
  %3630 = vmatpush1.xpose.msra.mxu0 0.0
  %3631 = vmatprep.subr.mxu0 0.0
  %3632 = vmatpush1.xpose.msra.mxu0 0.0
  %3633 = vmatprep.subr.mxu0 0.0
  %3634 = vmatpush1.xpose.msra.mxu0 0.0
  %3635 = vmatprep.subr.mxu0 0.0
  %3636 = vmatpush1.xpose.msra.mxu0 0.0
  %3637 = vmatprep.subr.mxu0 0.0
  %3638 = vmatpush1.xpose.msra.mxu0 0.0
  %3639 = vmatprep.subr.mxu0 0.0
  %3640 = vmatpush1.xpose.msra.mxu0 0.0
  %3641 = vmatprep.subr.mxu0 0.0
  %3642 = vmatpush1.xpose.msra.mxu0 0.0
  %3643 = vmatprep.subr.mxu0 0.0
  %3644 = vmatpush1.xpose.msra.mxu0 0.0
  %3645 = vmatprep.subr.mxu0 0.0
  %3646 = vmatpush1.xpose.msra.mxu0 0.0
  %3647 = vmatprep.subr.mxu0 0.0
  %3648 = vmatpush1.xpose.msra.mxu0 0.0
  %3649 = vmatprep.subr.mxu0 0.0
  %3650 = vmatpush1.xpose.msra.mxu0 0.0
  %3651 = vmatprep.subr.mxu0 0.0
  %3652 = vmatpush1.xpose.msra.mxu0 0.0
  %3653 = vmatprep.subr.mxu0 0.0
  %3654 = vmatpush1.xpose.msra.mxu0 0.0
  %3655 = vmatprep.subr.mxu0 0.0
  %3656 = vmatpush1.xpose.msra.mxu0 0.0
  %3657 = vmatprep.subr.mxu0 0.0
  %3658 = vmatpush1.xpose.msra.mxu0 0.0
  %3659 = vmatprep.subr.mxu0 0.0
  %3660 = vmatpush1.xpose.msra.mxu0 0.0
  %3661 = vmatprep.subr.mxu0 0.0
  %3662 = vmatpush1.xpose.msra.mxu0 0.0
  %3663 = vmatprep.subr.mxu0 0.0
  %3664 = vmatpush1.xpose.msra.mxu0 0.0
  %3665 = vmatprep.subr.mxu0 0.0
  %3666 = vmatpush1.xpose.msra.mxu0 0.0
  %3667 = vmatprep.subr.mxu0 0.0
  %3668 = vmatpush1.xpose.msra.mxu0 0.0
  %3669 = vmatprep.mubr.f32.mxu0 0.0
  %3670 = vmatmul.mubr.f32.gmra.mrb[0].mxu0 %v3603
  %v3671 = vpop.f32.mrb[0].mxu0
  %v3672 = vadd.f32 0.0, %v3671
  %v3673 = vpop.f32.mrb[0].mxu0
  %3674 = vdwg.mxu0
  %v3675 = vsel %vm169, %v3598, -1e+30
  %v3676 = vsel %vm169, %v3672, -1e+30
  %v3677 = vsel %vm307, %v3675, -inf
  %3678 = vmax.xlane.f32.xlu0 %v3677
  %v3679 = vpop.xlane.xlu0 %3678
  %v3680 = vsel %vm307, %v3676, -inf
  %3681 = vmax.xlane.f32.xlu0 %v3680
  %v3682 = vpop.xlane.xlu0 %3681
  %v3683 = vsub.f32 %v3675, %v3679
  %v3684 = vsub.f32 %v3676, %v3682
  %v3685 = vmul.f32 %v3683, 1.442695
  %v3686 = vpow.pop %v3685
  %v3687 = vmul.f32 %v3684, 1.442695
  %v3688 = vpow.pop %v3687
  %v3689 = vsel %vm307, %v3686, 0.0
  %3690 = vadd.xlane.f32.xlu0 %v3689
  %v3691 = vpop.xlane.xlu0 %3690
  %v3692 = vsel %vm307, %v3688, 0.0
  %3693 = vadd.xlane.f32.xlu0 %v3692
  %v3694 = vpop.xlane.xlu0 %3693
  %v3695 = vrcp.pop %v3691
  %v3696 = vrcp.pop %v3694
  %v3697 = vmul.f32 %v3686, %v3695
  %v3698 = vmul.f32 %v3688, %v3696
  %3699 = vrot.lane.b32.xlu0 %v2301, 104
  %v3700 = vpop.permute.xlu0 %3699
  %v3703 = vsel %vm307, %v3697, 0
  %3705 = vmatprep.subr.mxu0 0.0
  %3706 = vmatpush1.msra.mxu0 %v3700
  %3707 = vmatprep.subr.mxu0 0.0
  %3708 = vmatpush1.msra.mxu0 0.0
  %3709 = vmatprep.subr.mxu0 0.0
  %3710 = vmatpush1.msra.mxu0 0.0
  %3711 = vmatprep.subr.mxu0 0.0
  %3712 = vmatpush1.msra.mxu0 0.0
  %3713 = vmatprep.subr.mxu0 0.0
  %3714 = vmatpush1.msra.mxu0 0.0
  %3715 = vmatprep.subr.mxu0 0.0
  %3716 = vmatpush1.msra.mxu0 0.0
  %3717 = vmatprep.subr.mxu0 0.0
  %3718 = vmatpush1.msra.mxu0 0.0
  %3719 = vmatprep.subr.mxu0 0.0
  %3720 = vmatpush1.msra.mxu0 0.0
  %3721 = vmatprep.subr.mxu0 0.0
  %3722 = vmatpush1.msra.mxu0 0.0
  %3723 = vmatprep.subr.mxu0 0.0
  %3724 = vmatpush1.msra.mxu0 0.0
  %3725 = vmatprep.subr.mxu0 0.0
  %3726 = vmatpush1.msra.mxu0 0.0
  %3727 = vmatprep.subr.mxu0 0.0
  %3728 = vmatpush1.msra.mxu0 0.0
  %3729 = vmatprep.subr.mxu0 0.0
  %3730 = vmatpush1.msra.mxu0 0.0
  %3731 = vmatprep.subr.mxu0 0.0
  %3732 = vmatpush1.msra.mxu0 0.0
  %3733 = vmatprep.subr.mxu0 0.0
  %3734 = vmatpush1.msra.mxu0 0.0
  %3735 = vmatprep.subr.mxu0 0.0
  %3736 = vmatpush1.msra.mxu0 0.0
  %3737 = vmatprep.subr.mxu0 0.0
  %3738 = vmatpush1.msra.mxu0 0.0
  %3739 = vmatprep.subr.mxu0 0.0
  %3740 = vmatpush1.msra.mxu0 0.0
  %3741 = vmatprep.subr.mxu0 0.0
  %3742 = vmatpush1.msra.mxu0 0.0
  %3743 = vmatprep.subr.mxu0 0.0
  %3744 = vmatpush1.msra.mxu0 0.0
  %3745 = vmatprep.subr.mxu0 0.0
  %3746 = vmatpush1.msra.mxu0 0.0
  %3747 = vmatprep.subr.mxu0 0.0
  %3748 = vmatpush1.msra.mxu0 0.0
  %3749 = vmatprep.subr.mxu0 0.0
  %3750 = vmatpush1.msra.mxu0 0.0
  %3751 = vmatprep.subr.mxu0 0.0
  %3752 = vmatpush1.msra.mxu0 0.0
  %3753 = vmatprep.subr.mxu0 0.0
  %3754 = vmatpush1.msra.mxu0 0.0
  %3755 = vmatprep.subr.mxu0 0.0
  %3756 = vmatpush1.msra.mxu0 0.0
  %3757 = vmatprep.subr.mxu0 0.0
  %3758 = vmatpush1.msra.mxu0 0.0
  %3759 = vmatprep.subr.mxu0 0.0
  %3760 = vmatpush1.msra.mxu0 0.0
  %3761 = vmatprep.subr.mxu0 0.0
  %3762 = vmatpush1.msra.mxu0 0.0
  %3763 = vmatprep.subr.mxu0 0.0
  %3764 = vmatpush1.msra.mxu0 0.0
  %3765 = vmatprep.subr.mxu0 0.0
  %3766 = vmatpush1.msra.mxu0 0.0
  %3767 = vmatprep.subr.mxu0 0.0
  %3768 = vmatpush1.msra.mxu0 0.0
  %3769 = vmatprep.mubr.f32.mxu0 0.0
  %3770 = vmatmul.mubr.f32.gmra.mrb[0].mxu0 %v3703
  %v3771 = vpop.f32.mrb[0].mxu0
  %v3772 = vadd.f32 0.0, %v3771
  %v3773 = vpop.f32.mrb[0].mxu0
  %3774 = vdwg.mxu0
  %3775 = vrot.lane.b32.xlu0 %v2306, 104
  %v3776 = vpop.permute.xlu0 %3775
  %v3779 = vsel %vm307, %v3698, 0
  %3781 = vmatprep.subr.mxu0 0.0
  %3782 = vmatpush1.msra.mxu0 %v3776
  %3783 = vmatprep.subr.mxu0 0.0
  %3784 = vmatpush1.msra.mxu0 0.0
  %3785 = vmatprep.subr.mxu0 0.0
  %3786 = vmatpush1.msra.mxu0 0.0
  %3787 = vmatprep.subr.mxu0 0.0
  %3788 = vmatpush1.msra.mxu0 0.0
  %3789 = vmatprep.subr.mxu0 0.0
  %3790 = vmatpush1.msra.mxu0 0.0
  %3791 = vmatprep.subr.mxu0 0.0
  %3792 = vmatpush1.msra.mxu0 0.0
  %3793 = vmatprep.subr.mxu0 0.0
  %3794 = vmatpush1.msra.mxu0 0.0
  %3795 = vmatprep.subr.mxu0 0.0
  %3796 = vmatpush1.msra.mxu0 0.0
  %3797 = vmatprep.subr.mxu0 0.0
  %3798 = vmatpush1.msra.mxu0 0.0
  %3799 = vmatprep.subr.mxu0 0.0
  %3800 = vmatpush1.msra.mxu0 0.0
  %3801 = vmatprep.subr.mxu0 0.0
  %3802 = vmatpush1.msra.mxu0 0.0
  %3803 = vmatprep.subr.mxu0 0.0
  %3804 = vmatpush1.msra.mxu0 0.0
  %3805 = vmatprep.subr.mxu0 0.0
  %3806 = vmatpush1.msra.mxu0 0.0
  %3807 = vmatprep.subr.mxu0 0.0
  %3808 = vmatpush1.msra.mxu0 0.0
  %3809 = vmatprep.subr.mxu0 0.0
  %3810 = vmatpush1.msra.mxu0 0.0
  %3811 = vmatprep.subr.mxu0 0.0
  %3812 = vmatpush1.msra.mxu0 0.0
  %3813 = vmatprep.subr.mxu0 0.0
  %3814 = vmatpush1.msra.mxu0 0.0
  %3815 = vmatprep.subr.mxu0 0.0
  %3816 = vmatpush1.msra.mxu0 0.0
  %3817 = vmatprep.subr.mxu0 0.0
  %3818 = vmatpush1.msra.mxu0 0.0
  %3819 = vmatprep.subr.mxu0 0.0
  %3820 = vmatpush1.msra.mxu0 0.0
  %3821 = vmatprep.subr.mxu0 0.0
  %3822 = vmatpush1.msra.mxu0 0.0
  %3823 = vmatprep.subr.mxu0 0.0
  %3824 = vmatpush1.msra.mxu0 0.0
  %3825 = vmatprep.subr.mxu0 0.0
  %3826 = vmatpush1.msra.mxu0 0.0
  %3827 = vmatprep.subr.mxu0 0.0
  %3828 = vmatpush1.msra.mxu0 0.0
  %3829 = vmatprep.subr.mxu0 0.0
  %3830 = vmatpush1.msra.mxu0 0.0
  %3831 = vmatprep.subr.mxu0 0.0
  %3832 = vmatpush1.msra.mxu0 0.0
  %3833 = vmatprep.subr.mxu0 0.0
  %3834 = vmatpush1.msra.mxu0 0.0
  %3835 = vmatprep.subr.mxu0 0.0
  %3836 = vmatpush1.msra.mxu0 0.0
  %3837 = vmatprep.subr.mxu0 0.0
  %3838 = vmatpush1.msra.mxu0 0.0
  %3839 = vmatprep.subr.mxu0 0.0
  %3840 = vmatpush1.msra.mxu0 0.0
  %3841 = vmatprep.subr.mxu0 0.0
  %3842 = vmatpush1.msra.mxu0 0.0
  %3843 = vmatprep.subr.mxu0 0.0
  %3844 = vmatpush1.msra.mxu0 0.0
  %3845 = vmatprep.mubr.f32.mxu0 0.0
  %3846 = vmatmul.mubr.f32.gmra.mrb[0].mxu0 %v3779
  %v3847 = vpop.f32.mrb[0].mxu0
  %v3848 = vadd.f32 0.0, %v3847
  %v3849 = vpop.f32.mrb[0].mxu0
  %3850 = vdwg.mxu0
  %v3852 = vsel %vm307, %v3772, 0
  %v3855 = vsel %vm307, %v3848, 0
  %3857 = vmatprep.subr.mxu0 0.0
  %3858 = vmatpush1.msra.mxu0 %v2315
  %3859 = vmatprep.subr.mxu0 0.0
  %3860 = vmatpush1.msra.mxu0 0.0
  %3861 = vmatprep.subr.mxu0 0.0
  %3862 = vmatpush1.msra.mxu0 0.0
  %3863 = vmatprep.subr.mxu0 0.0
  %3864 = vmatpush1.msra.mxu0 0.0
  %3865 = vmatprep.subr.mxu0 0.0
  %3866 = vmatpush1.msra.mxu0 0.0
  %3867 = vmatprep.subr.mxu0 0.0
  %3868 = vmatpush1.msra.mxu0 0.0
  %3869 = vmatprep.subr.mxu0 0.0
  %3870 = vmatpush1.msra.mxu0 0.0
  %3871 = vmatprep.subr.mxu0 0.0
  %3872 = vmatpush1.msra.mxu0 0.0
  %3873 = vmatprep.subr.mxu0 0.0
  %3874 = vmatpush1.msra.mxu0 0.0
  %3875 = vmatprep.subr.mxu0 0.0
  %3876 = vmatpush1.msra.mxu0 0.0
  %3877 = vmatprep.subr.mxu0 0.0
  %3878 = vmatpush1.msra.mxu0 0.0
  %3879 = vmatprep.subr.mxu0 0.0
  %3880 = vmatpush1.msra.mxu0 0.0
  %3881 = vmatprep.subr.mxu0 0.0
  %3882 = vmatpush1.msra.mxu0 0.0
  %3883 = vmatprep.subr.mxu0 0.0
  %3884 = vmatpush1.msra.mxu0 0.0
  %3885 = vmatprep.subr.mxu0 0.0
  %3886 = vmatpush1.msra.mxu0 0.0
  %3887 = vmatprep.subr.mxu0 0.0
  %3888 = vmatpush1.msra.mxu0 0.0
  %3889 = vmatprep.subr.mxu0 0.0
  %3890 = vmatpush1.msra.mxu0 0.0
  %3891 = vmatprep.subr.mxu0 0.0
  %3892 = vmatpush1.msra.mxu0 0.0
  %3893 = vmatprep.subr.mxu0 0.0
  %3894 = vmatpush1.msra.mxu0 0.0
  %3895 = vmatprep.subr.mxu0 0.0
  %3896 = vmatpush1.msra.mxu0 0.0
  %3897 = vmatprep.subr.mxu0 0.0
  %3898 = vmatpush1.msra.mxu0 0.0
  %3899 = vmatprep.subr.mxu0 0.0
  %3900 = vmatpush1.msra.mxu0 0.0
  %3901 = vmatprep.subr.mxu0 0.0
  %3902 = vmatpush1.msra.mxu0 0.0
  %3903 = vmatprep.subr.mxu0 0.0
  %3904 = vmatpush1.msra.mxu0 0.0
  %3905 = vmatprep.subr.mxu0 0.0
  %3906 = vmatpush1.msra.mxu0 0.0
  %3907 = vmatprep.subr.mxu0 0.0
  %3908 = vmatpush1.msra.mxu0 0.0
  %3909 = vmatprep.subr.mxu0 0.0
  %3910 = vmatpush1.msra.mxu0 0.0
  %3911 = vmatprep.subr.mxu0 0.0
  %3912 = vmatpush1.msra.mxu0 0.0
  %3913 = vmatprep.subr.mxu0 0.0
  %3914 = vmatpush1.msra.mxu0 0.0
  %3915 = vmatprep.subr.mxu0 0.0
  %3916 = vmatpush1.msra.mxu0 0.0
  %3917 = vmatprep.subr.mxu0 0.0
  %3918 = vmatpush1.msra.mxu0 0.0
  %3919 = vmatprep.subr.mxu0 0.0
  %3920 = vmatpush1.msra.mxu0 0.0
  %3921 = vmatprep.mubr.f32.mxu0 0.0
  %3922 = vmatmul.mubr.f32.gmra.mrb[0].mxu0 %v3852
  %v3923 = vpop.f32.mrb[0].mxu0
  %v3924 = vadd.f32 0.0, %v3923
  %v3925 = vpop.f32.mrb[0].mxu0
  %3926 = vmatprep.mubr.f32.mxu0 0.0
  %3927 = vmatmul.mubr.f32.gmra.mrb[0].mxu0 %v3855
  %v3928 = vpop.f32.mrb[0].mxu0
  %v3929 = vadd.f32 0.0, %v3928
  %v3930 = vpop.f32.mrb[0].mxu0
  %3931 = vdwg.mxu0
  %v3932 = vadd.f32 %v3525, %v3924
  %v3933 = vadd.f32 %v3526, %v3929
  %v3934 = vadd.f32 %v2175, %v3932
  %v3935 = vadd.f32 %v2176, %v3933
  %s3936 = scalar_lea.vmem %s7, 1
  %v3937 = vld [vmem:[%s3936] sm:$0x1]
  %v3939 = vlaneseq
  %v3940 = vshrl.u32 %v3939, 7
  %v3941 = vsub.s32 0, %v3940
  %v3942 = vrot.slane %v3937, %v3941
  %v3944 = vadd.f32 %v3934, %v3942
  %v3945 = vadd.f32 %v3935, %v3942
  %s3946 = scalar_lea.vmem %s8, 1
  %v3947 = vld [vmem:[%s3946] sm:$0x1]
  %s3948 = scalar_lea.vmem %s9, 1
  %v3949 = vld [vmem:[%s3948] sm:$0x1]
  %v3950 = vsel %vm172, %v3944, 0.0
  %3951 = vadd.xlane.f32.xlu0 %v3950
  %v3952 = vpop.xlane.xlu0 %3951
  %v3953 = vsel %vm172, %v3945, 0.0
  %3954 = vadd.xlane.f32.xlu0 %v3953
  %v3955 = vpop.xlane.xlu0 %3954
  %v3956 = vmul.f32 %v3952, %v179
  %v3957 = vmul.f32 %v3955, %v179
  %v3958 = vsub.f32 %v3944, %v3956
  %v3959 = vsub.f32 %v3945, %v3957
  %v3960 = vmul.f32 %v3958, %v3958
  %v3961 = vmul.f32 %v3959, %v3959
  %v3962 = vsel %vm172, %v3960, 0.0
  %3963 = vadd.xlane.f32.xlu0 %v3962
  %v3964 = vpop.xlane.xlu0 %3963
  %v3965 = vsel %vm172, %v3961, 0.0
  %3966 = vadd.xlane.f32.xlu0 %v3965
  %v3967 = vpop.xlane.xlu0 %3966
  %v3968 = vmul.f32 %v3964, %v179
  %v3969 = vmul.f32 %v3967, %v179
  %v3970 = vadd.f32 %v3968, 1e-05
  %v3971 = vadd.f32 %v3969, 1e-05
  %v3972 = vrsqrt.pop %v3970
  %v3973 = vrsqrt.pop %v3971
  %v3974 = vmul.f32 %v3958, %v3972
  %v3975 = vmul.f32 %v3959, %v3973
  %v3977 = vlaneseq
  %v3978 = vshrl.u32 %v3977, 7
  %v3979 = vsub.s32 0, %v3978
  %v3980 = vrot.slane %v3947, %v3979
  %v3982 = vmul.f32 %v3974, %v3980
  %v3983 = vmul.f32 %v3975, %v3980
  %v3985 = vlaneseq
  %v3986 = vshrl.u32 %v3985, 7
  %v3987 = vsub.s32 0, %v3986
  %v3988 = vrot.slane %v3949, %v3987
  %v3990 = vadd.f32 %v3982, %v3988
  %v3991 = vadd.f32 %v3983, %v3988
  %s3992 = scalar_lea.vmem %s10, 32
  %v3993 = vld [vmem:[%s3992] sm:$0xff]
  %v3994 = vld [vmem:[%s3992 + $0x8] sm:$0xff]
  %v3995 = vld [vmem:[%s3992 + $0x10] sm:$0xff]
  %v3996 = vld [vmem:[%s3992 + $0x18] sm:$0xff]
  %s3997 = scalar_lea.vmem %s11, 1
  %v3998 = vld [vmem:[%s3997] sm:$0x1]
  %v4000 = vlaneseq
  %v4001 = vshrl.u32 %v4000, 7
  %v4002 = vsub.s32 0, %v4001
  %v4003 = vrot.slane %v3998, %v4002
  %v4006 = vsel %vm172, %v3990, 0
  %v4009 = vsel %vm172, %v3991, 0
  %4011 = vmatprep.subr.mxu0 0.0
  %4012 = vmatpush1.msra.mxu0 %v3993
  %4013 = vmatprep.subr.mxu0 0.0
  %4014 = vmatpush1.msra.mxu0 %v3994
  %4015 = vmatprep.subr.mxu0 0.0
  %4016 = vmatpush1.msra.mxu0 %v3995
  %4017 = vmatprep.subr.mxu0 0.0
  %4018 = vmatpush1.msra.mxu0 %v3996
  %4019 = vmatprep.subr.mxu0 0.0
  %4020 = vmatpush1.msra.mxu0 0.0
  %4021 = vmatprep.subr.mxu0 0.0
  %4022 = vmatpush1.msra.mxu0 0.0
  %4023 = vmatprep.subr.mxu0 0.0
  %4024 = vmatpush1.msra.mxu0 0.0
  %4025 = vmatprep.subr.mxu0 0.0
  %4026 = vmatpush1.msra.mxu0 0.0
  %4027 = vmatprep.subr.mxu0 0.0
  %4028 = vmatpush1.msra.mxu0 0.0
  %4029 = vmatprep.subr.mxu0 0.0
  %4030 = vmatpush1.msra.mxu0 0.0
  %4031 = vmatprep.subr.mxu0 0.0
  %4032 = vmatpush1.msra.mxu0 0.0
  %4033 = vmatprep.subr.mxu0 0.0
  %4034 = vmatpush1.msra.mxu0 0.0
  %4035 = vmatprep.subr.mxu0 0.0
  %4036 = vmatpush1.msra.mxu0 0.0
  %4037 = vmatprep.subr.mxu0 0.0
  %4038 = vmatpush1.msra.mxu0 0.0
  %4039 = vmatprep.subr.mxu0 0.0
  %4040 = vmatpush1.msra.mxu0 0.0
  %4041 = vmatprep.subr.mxu0 0.0
  %4042 = vmatpush1.msra.mxu0 0.0
  %4043 = vmatprep.subr.mxu0 0.0
  %4044 = vmatpush1.msra.mxu0 0.0
  %4045 = vmatprep.subr.mxu0 0.0
  %4046 = vmatpush1.msra.mxu0 0.0
  %4047 = vmatprep.subr.mxu0 0.0
  %4048 = vmatpush1.msra.mxu0 0.0
  %4049 = vmatprep.subr.mxu0 0.0
  %4050 = vmatpush1.msra.mxu0 0.0
  %4051 = vmatprep.subr.mxu0 0.0
  %4052 = vmatpush1.msra.mxu0 0.0
  %4053 = vmatprep.subr.mxu0 0.0
  %4054 = vmatpush1.msra.mxu0 0.0
  %4055 = vmatprep.subr.mxu0 0.0
  %4056 = vmatpush1.msra.mxu0 0.0
  %4057 = vmatprep.subr.mxu0 0.0
  %4058 = vmatpush1.msra.mxu0 0.0
  %4059 = vmatprep.subr.mxu0 0.0
  %4060 = vmatpush1.msra.mxu0 0.0
  %4061 = vmatprep.subr.mxu0 0.0
  %4062 = vmatpush1.msra.mxu0 0.0
  %4063 = vmatprep.subr.mxu0 0.0
  %4064 = vmatpush1.msra.mxu0 0.0
  %4065 = vmatprep.subr.mxu0 0.0
  %4066 = vmatpush1.msra.mxu0 0.0
  %4067 = vmatprep.subr.mxu0 0.0
  %4068 = vmatpush1.msra.mxu0 0.0
  %4069 = vmatprep.subr.mxu0 0.0
  %4070 = vmatpush1.msra.mxu0 0.0
  %4071 = vmatprep.subr.mxu0 0.0
  %4072 = vmatpush1.msra.mxu0 0.0
  %4073 = vmatprep.subr.mxu0 0.0
  %4074 = vmatpush1.msra.mxu0 0.0
  %4075 = vmatprep.mubr.f32.mxu0 0.0
  %4076 = vmatmul.mubr.f32.gmra.mrb[0].mxu0 %v4006
  %v4077 = vpop.f32.mrb[0].mxu0
  %v4078 = vadd.f32 %v4003, %v4077
  %v4079 = vpop.f32.mrb[0].mxu0
  %4080 = vmatprep.mubr.f32.mxu0 0.0
  %4081 = vmatmul.mubr.f32.gmra.mrb[0].mxu0 %v4009
  %v4082 = vpop.f32.mrb[0].mxu0
  %v4083 = vadd.f32 %v4003, %v4082
  %v4084 = vpop.f32.mrb[0].mxu0
  %4085 = vdwg.mxu0
  %v4086 = vmax.f32 %v4078, 0.0
  %v4087 = vmax.f32 %v4083, 0.0
  %s4088 = scalar_lea.vmem %s12, 128
  %v4089 = vld [vmem:[%s4088] sm:$0xff]
  %v4090 = vld [vmem:[%s4088 + $0x8] sm:$0xff]
  %v4091 = vld [vmem:[%s4088 + $0x10] sm:$0xff]
  %v4092 = vld [vmem:[%s4088 + $0x18] sm:$0xff]
  %v4093 = vld [vmem:[%s4088 + $0x20] sm:$0xff]
  %v4094 = vld [vmem:[%s4088 + $0x28] sm:$0xff]
  %v4095 = vld [vmem:[%s4088 + $0x30] sm:$0xff]
  %v4096 = vld [vmem:[%s4088 + $0x38] sm:$0xff]
  %v4097 = vld [vmem:[%s4088 + $0x40] sm:$0xff]
  %v4098 = vld [vmem:[%s4088 + $0x48] sm:$0xff]
  %v4099 = vld [vmem:[%s4088 + $0x50] sm:$0xff]
  %v4100 = vld [vmem:[%s4088 + $0x58] sm:$0xff]
  %v4101 = vld [vmem:[%s4088 + $0x60] sm:$0xff]
  %v4102 = vld [vmem:[%s4088 + $0x68] sm:$0xff]
  %v4103 = vld [vmem:[%s4088 + $0x70] sm:$0xff]
  %v4104 = vld [vmem:[%s4088 + $0x78] sm:$0xff]
  %4105 = vmatprep.subr.mxu0 0.0
  %4106 = vmatpush1.msra.mxu0 %v4089
  %4107 = vmatprep.subr.mxu0 0.0
  %4108 = vmatpush1.msra.mxu0 %v4090
  %4109 = vmatprep.subr.mxu0 0.0
  %4110 = vmatpush1.msra.mxu0 %v4091
  %4111 = vmatprep.subr.mxu0 0.0
  %4112 = vmatpush1.msra.mxu0 %v4092
  %4113 = vmatprep.subr.mxu0 0.0
  %4114 = vmatpush1.msra.mxu0 %v4093
  %4115 = vmatprep.subr.mxu0 0.0
  %4116 = vmatpush1.msra.mxu0 %v4094
  %4117 = vmatprep.subr.mxu0 0.0
  %4118 = vmatpush1.msra.mxu0 %v4095
  %4119 = vmatprep.subr.mxu0 0.0
  %4120 = vmatpush1.msra.mxu0 %v4096
  %4121 = vmatprep.subr.mxu0 0.0
  %4122 = vmatpush1.msra.mxu0 %v4097
  %4123 = vmatprep.subr.mxu0 0.0
  %4124 = vmatpush1.msra.mxu0 %v4098
  %4125 = vmatprep.subr.mxu0 0.0
  %4126 = vmatpush1.msra.mxu0 %v4099
  %4127 = vmatprep.subr.mxu0 0.0
  %4128 = vmatpush1.msra.mxu0 %v4100
  %4129 = vmatprep.subr.mxu0 0.0
  %4130 = vmatpush1.msra.mxu0 %v4101
  %4131 = vmatprep.subr.mxu0 0.0
  %4132 = vmatpush1.msra.mxu0 %v4102
  %4133 = vmatprep.subr.mxu0 0.0
  %4134 = vmatpush1.msra.mxu0 %v4103
  %4135 = vmatprep.subr.mxu0 0.0
  %4136 = vmatpush1.msra.mxu0 %v4104
  %4137 = vmatprep.subr.mxu0 0.0
  %4138 = vmatpush1.msra.mxu0 0.0
  %4139 = vmatprep.subr.mxu0 0.0
  %4140 = vmatpush1.msra.mxu0 0.0
  %4141 = vmatprep.subr.mxu0 0.0
  %4142 = vmatpush1.msra.mxu0 0.0
  %4143 = vmatprep.subr.mxu0 0.0
  %4144 = vmatpush1.msra.mxu0 0.0
  %4145 = vmatprep.subr.mxu0 0.0
  %4146 = vmatpush1.msra.mxu0 0.0
  %4147 = vmatprep.subr.mxu0 0.0
  %4148 = vmatpush1.msra.mxu0 0.0
  %4149 = vmatprep.subr.mxu0 0.0
  %4150 = vmatpush1.msra.mxu0 0.0
  %4151 = vmatprep.subr.mxu0 0.0
  %4152 = vmatpush1.msra.mxu0 0.0
  %4153 = vmatprep.subr.mxu0 0.0
  %4154 = vmatpush1.msra.mxu0 0.0
  %4155 = vmatprep.subr.mxu0 0.0
  %4156 = vmatpush1.msra.mxu0 0.0
  %4157 = vmatprep.subr.mxu0 0.0
  %4158 = vmatpush1.msra.mxu0 0.0
  %4159 = vmatprep.subr.mxu0 0.0
  %4160 = vmatpush1.msra.mxu0 0.0
  %4161 = vmatprep.subr.mxu0 0.0
  %4162 = vmatpush1.msra.mxu0 0.0
  %4163 = vmatprep.subr.mxu0 0.0
  %4164 = vmatpush1.msra.mxu0 0.0
  %4165 = vmatprep.subr.mxu0 0.0
  %4166 = vmatpush1.msra.mxu0 0.0
  %4167 = vmatprep.subr.mxu0 0.0
  %4168 = vmatpush1.msra.mxu0 0.0
  %4169 = vmatprep.mubr.f32.mxu0 0.0
  %4170 = vmatmul.mubr.f32.gmra.mrb[0].mxu0 %v4086
  %v4171 = vpop.f32.mrb[0].mxu0
  %v4172 = vadd.f32 0.0, %v4171
  %v4173 = vpop.f32.mrb[0].mxu0
  %4174 = vmatprep.mubr.f32.mxu0 0.0
  %4175 = vmatmul.mubr.f32.gmra.mrb[0].mxu0 %v4087
  %v4176 = vpop.f32.mrb[0].mxu0
  %v4177 = vadd.f32 0.0, %v4176
  %v4178 = vpop.f32.mrb[0].mxu0
  %4179 = vdwg.mxu0
  %v4180 = vadd.f32 %v3944, %v4172
  %v4181 = vadd.f32 %v3945, %v4177
  %s4182 = scalar_lea.vmem %s13, 1
  %v4183 = vld [vmem:[%s4182] sm:$0x1]
  %v4185 = vlaneseq
  %v4186 = vshrl.u32 %v4185, 7
  %v4187 = vsub.s32 0, %v4186
  %v4188 = vrot.slane %v4183, %v4187
  %v4190 = vadd.f32 %v4180, %v4188
  %v4191 = vadd.f32 %v4181, %v4188
  %v4192 = vld [vmem:[%s14] sm:$0x1]
  %v4193 = vld [vmem:[%s15] sm:$0x1]
  %v4194 = vsel %vm172, %v4190, 0.0
  %4195 = vadd.xlane.f32.xlu0 %v4194
  %v4196 = vpop.xlane.xlu0 %4195
  %v4197 = vsel %vm172, %v4191, 0.0
  %4198 = vadd.xlane.f32.xlu0 %v4197
  %v4199 = vpop.xlane.xlu0 %4198
  %v4200 = vmul.f32 %v4196, %v179
  %v4201 = vmul.f32 %v4199, %v179
  %v4202 = vsub.f32 %v4190, %v4200
  %v4203 = vsub.f32 %v4191, %v4201
  %v4204 = vmul.f32 %v4202, %v4202
  %v4205 = vmul.f32 %v4203, %v4203
  %v4206 = vsel %vm172, %v4204, 0.0
  %4207 = vadd.xlane.f32.xlu0 %v4206
  %v4208 = vpop.xlane.xlu0 %4207
  %v4209 = vsel %vm172, %v4205, 0.0
  %4210 = vadd.xlane.f32.xlu0 %v4209
  %v4211 = vpop.xlane.xlu0 %4210
  %v4212 = vmul.f32 %v4208, %v179
  %v4213 = vmul.f32 %v4211, %v179
  %v4214 = vadd.f32 %v4212, 1e-05
  %v4215 = vadd.f32 %v4213, 1e-05
  %v4216 = vrsqrt.pop %v4214
  %v4217 = vrsqrt.pop %v4215
  %v4218 = vmul.f32 %v4202, %v4216
  %v4219 = vmul.f32 %v4203, %v4217
  %v4221 = vlaneseq
  %v4222 = vshrl.u32 %v4221, 7
  %v4223 = vsub.s32 0, %v4222
  %v4224 = vrot.slane %v4192, %v4223
  %v4226 = vmul.f32 %v4218, %v4224
  %v4227 = vmul.f32 %v4219, %v4224
  %v4229 = vlaneseq
  %v4230 = vshrl.u32 %v4229, 7
  %v4231 = vsub.s32 0, %v4230
  %v4232 = vrot.slane %v4193, %v4231
  %v4234 = vadd.f32 %v4226, %v4232
  %v4235 = vadd.f32 %v4227, %v4232
  %v4236 = vld [vmem:[%s16] sm:$0xff]
  %v4237 = vld [vmem:[%s16 + $0x8] sm:$0xff]
  %v4238 = vld [vmem:[%s16 + $0x10] sm:$0xff]
  %v4239 = vld [vmem:[%s16 + $0x18] sm:$0xff]
  %v4240 = vld [vmem:[%s17] sm:$0x1]
  %v4242 = vlaneseq
  %v4243 = vshrl.u32 %v4242, 7
  %v4244 = vsub.s32 0, %v4243
  %v4245 = vrot.slane %v4240, %v4244
  %v4248 = vsel %vm172, %v4234, 0
  %v4251 = vsel %vm172, %v4235, 0
  %4253 = vmatprep.subr.mxu0 0.0
  %4254 = vmatpush1.msra.mxu0 %v4236
  %4255 = vmatprep.subr.mxu0 0.0
  %4256 = vmatpush1.msra.mxu0 %v4237
  %4257 = vmatprep.subr.mxu0 0.0
  %4258 = vmatpush1.msra.mxu0 %v4238
  %4259 = vmatprep.subr.mxu0 0.0
  %4260 = vmatpush1.msra.mxu0 %v4239
  %4261 = vmatprep.subr.mxu0 0.0
  %4262 = vmatpush1.msra.mxu0 0.0
  %4263 = vmatprep.subr.mxu0 0.0
  %4264 = vmatpush1.msra.mxu0 0.0
  %4265 = vmatprep.subr.mxu0 0.0
  %4266 = vmatpush1.msra.mxu0 0.0
  %4267 = vmatprep.subr.mxu0 0.0
  %4268 = vmatpush1.msra.mxu0 0.0
  %4269 = vmatprep.subr.mxu0 0.0
  %4270 = vmatpush1.msra.mxu0 0.0
  %4271 = vmatprep.subr.mxu0 0.0
  %4272 = vmatpush1.msra.mxu0 0.0
  %4273 = vmatprep.subr.mxu0 0.0
  %4274 = vmatpush1.msra.mxu0 0.0
  %4275 = vmatprep.subr.mxu0 0.0
  %4276 = vmatpush1.msra.mxu0 0.0
  %4277 = vmatprep.subr.mxu0 0.0
  %4278 = vmatpush1.msra.mxu0 0.0
  %4279 = vmatprep.subr.mxu0 0.0
  %4280 = vmatpush1.msra.mxu0 0.0
  %4281 = vmatprep.subr.mxu0 0.0
  %4282 = vmatpush1.msra.mxu0 0.0
  %4283 = vmatprep.subr.mxu0 0.0
  %4284 = vmatpush1.msra.mxu0 0.0
  %4285 = vmatprep.subr.mxu0 0.0
  %4286 = vmatpush1.msra.mxu0 0.0
  %4287 = vmatprep.subr.mxu0 0.0
  %4288 = vmatpush1.msra.mxu0 0.0
  %4289 = vmatprep.subr.mxu0 0.0
  %4290 = vmatpush1.msra.mxu0 0.0
  %4291 = vmatprep.subr.mxu0 0.0
  %4292 = vmatpush1.msra.mxu0 0.0
  %4293 = vmatprep.subr.mxu0 0.0
  %4294 = vmatpush1.msra.mxu0 0.0
  %4295 = vmatprep.subr.mxu0 0.0
  %4296 = vmatpush1.msra.mxu0 0.0
  %4297 = vmatprep.subr.mxu0 0.0
  %4298 = vmatpush1.msra.mxu0 0.0
  %4299 = vmatprep.subr.mxu0 0.0
  %4300 = vmatpush1.msra.mxu0 0.0
  %4301 = vmatprep.subr.mxu0 0.0
  %4302 = vmatpush1.msra.mxu0 0.0
  %4303 = vmatprep.subr.mxu0 0.0
  %4304 = vmatpush1.msra.mxu0 0.0
  %4305 = vmatprep.subr.mxu0 0.0
  %4306 = vmatpush1.msra.mxu0 0.0
  %4307 = vmatprep.subr.mxu0 0.0
  %4308 = vmatpush1.msra.mxu0 0.0
  %4309 = vmatprep.subr.mxu0 0.0
  %4310 = vmatpush1.msra.mxu0 0.0
  %4311 = vmatprep.subr.mxu0 0.0
  %4312 = vmatpush1.msra.mxu0 0.0
  %4313 = vmatprep.subr.mxu0 0.0
  %4314 = vmatpush1.msra.mxu0 0.0
  %4315 = vmatprep.subr.mxu0 0.0
  %4316 = vmatpush1.msra.mxu0 0.0
  %4317 = vmatprep.mubr.f32.mxu0 0.0
  %4318 = vmatmul.mubr.f32.gmra.mrb[0].mxu0 %v4248
  %v4319 = vpop.f32.mrb[0].mxu0
  %v4320 = vadd.f32 %v4245, %v4319
  %v4321 = vpop.f32.mrb[0].mxu0
  %4322 = vmatprep.mubr.f32.mxu0 0.0
  %4323 = vmatmul.mubr.f32.gmra.mrb[0].mxu0 %v4251
  %v4324 = vpop.f32.mrb[0].mxu0
  %v4325 = vadd.f32 %v4245, %v4324
  %v4326 = vpop.f32.mrb[0].mxu0
  %4327 = vdwg.mxu0
  %4328 = vst [vmem:[%s18] sm:$0xff] %v4320
  %4329 = vst [vmem:[%s18 + $0x8] sm:$0xff] %v4325
  // Predicated region
  $region74: #{llm_forward.1} parent=0 // pred_check
    _
  $region75: #{llm_forward.1} parent=0 // pred_check_branch
    %4331 = sbr.rel (0) target = $region77
  $region76: #{llm_forward.1} parent=0 // pred_region
    _
  $region77: #{llm_forward.1} parent=0 // pred_fallthru
    _
  // Predicated region
  $region78: #{llm_forward.1} parent=0 // pred_check
    _
  $region79: #{llm_forward.1} parent=0 // pred_check_branch
    %4333 = sbr.rel (0) target = $region81
  $region80: #{llm_forward.1} parent=0 // pred_region
    _
  $region81: #{llm_forward.1} parent=0 // pred_fallthru
    _

</llo_original>
